<compile_context>
chip_gen: v7x
topology: tpu7x:2x2x1
jax: 0.10.0
libtpu: 0.0.40
codegen_flags: <defaults>
</compile_context>

<pallas_src>
import functools

import numpy as np
import jax
import jax.numpy as jnp
from jax import lax
from jax.experimental import pallas as pl
from jax.experimental.pallas import tpu as pltpu

_SUBLANE = 8           # f32 sublane granularity
_FULL_UNROLL_MAX = 32  # fully unroll time loops up to this trip count
_LOOP_UNROLL = 4       # fori_loop unroll factor for long loops


def _sigmoid(x):
    # Exact identity: sigmoid(x) = 0.5*(tanh(0.5*x)+1). One EUP op per gate
    # instead of exp + reciprocal on the serial recurrence.
    return 0.5 * jnp.tanh(0.5 * x) + 0.5


def _lstm_cell(gates, c):
    """gates: (BT, 4H) pre-activations, c: (BT, H). PyTorch gate order [i,f,g,o]."""
    h = c.shape[-1]
    i_g = _sigmoid(gates[:, 0 * h:1 * h])
    f_g = _sigmoid(gates[:, 1 * h:2 * h])
    g_g = jnp.tanh(gates[:, 2 * h:3 * h])
    o_g = _sigmoid(gates[:, 3 * h:4 * h])
    c_new = f_g * c + i_g * g_g
    h_new = o_g * jnp.tanh(c_new)
    return h_new, c_new


def _rows(t, bt):
    """Row-slice [t*bt, (t+1)*bt) of a 2-D (time*batch, feat) scratch."""
    start = t * bt
    if not isinstance(start, (int, np.integer)):
        start = pl.multiple_of(start, bt)   # bt is a multiple of 8 -> aligned
    return pl.ds(start, bt)


def _serial_loop(lo, hi, body, carry):
    """Serial time loop: full unroll when short, fori_loop(unroll=4) when long."""
    n = hi - lo
    if n <= 0:
        return carry
    if n <= _FULL_UNROLL_MAX:
        for t in range(lo, hi):
            carry = body(t, carry)
        return carry
    return lax.fori_loop(lo, hi, body, carry, unroll=_LOOP_UNROLL)


def _fused_forward_kernel(
    # inputs
    x_ref,                                   # (T, BT, Din)  time-major batch tile
    w_in_ref, b_in_ref,                      # (Din, 64), (1, 64)
    e0_wih_ref, e0_whh_ref, e0_b_ref,        # (64, 4H), (H, 4H), (1, 4H)
    e1_wcat_ref, e1_b_ref,                   # (2H, 4H)  [W_ih1; W_hh1], (1, 4H)
    d0_wih_ref, d0_whh_ref, d0_b_ref,        # (H, 4*DH), (DH, 4*DH), (1, 4*DH)
    d1_wcat_ref, d1_b_ref,                   # (2*DH, 4*DH), (1, 4*DH)
    w_out_ref, b_out_ref,                    # (DH, Din), (1, Din)
    # output
    out_ref,                                 # (T_dec, BT, Din)
    # scratch (VMEM)
    ge0_scr,                                 # (T*BT, 4H)   hoisted enc-L0 input proj
    hd1_scr,                                 # (T_dec*BT, DH) dec-L1 hidden sequence
):
    f32 = jnp.float32
    T, BT, Din = x_ref.shape
    H = e0_whh_ref.shape[0]        # encoder hidden
    DH = d0_whh_ref.shape[0]       # decoder hidden (= 64)
    T_dec = out_ref.shape[0]

    # ------------------------------------------------------------------ encoder
    # Input Linear + ReLU and encoder-L0 input projection: one batched matmul each
    # (hoisted off the recurrence).
    x2d = x_ref[...].reshape(T * BT, Din)
    hin = jnp.maximum(
        jnp.dot(x2d, w_in_ref[...], preferred_element_type=f32) + b_in_ref[...], 0.0)
    ge0_scr[...] = (jnp.dot(hin, e0_wih_ref[...], preferred_element_type=f32)
                    + e0_b_ref[...])

    e0_whh = e0_whh_ref[...]
    e1_wcat = e1_wcat_ref[...]
    e1_b = e1_b_ref[...]

    # Fused interleaved 2-layer encoder: iteration t runs L1 step t-1 (independent)
    # and L0 step t -> serial chain ~T cells instead of 2T.
    zH = jnp.zeros((BT, H), f32)
    # prologue: L0 step 0 (h0 = c0 = 0 -> recurrent matmul is zero, skip it)
    h0, c0 = _lstm_cell(ge0_scr[_rows(0, BT), :], zH)

    def enc_body(t, carry):
        h0, c0, h1, c1 = carry
        # L1 step t-1 : single matmul on [h0_prev | h1]
        g1 = (jnp.dot(jnp.concatenate([h0, h1], axis=-1), e1_wcat,
                      preferred_element_type=f32) + e1_b)
        h1n, c1n = _lstm_cell(g1, c1)
        # L0 step t
        g0 = ge0_scr[_rows(t, BT), :] + jnp.dot(h0, e0_whh, preferred_element_type=f32)
        h0n, c0n = _lstm_cell(g0, c0)
        return (h0n, c0n, h1n, c1n)

    h0, c0, h1, c1 = _serial_loop(1, T, enc_body, (h0, c0, zH, zH))
    # epilogue: L1 step T-1 -> encoded = last top-layer hidden (== x[:, -1, :])
    g1 = (jnp.dot(jnp.concatenate([h0, h1], axis=-1), e1_wcat,
                  preferred_element_type=f32) + e1_b)
    encoded, _ = _lstm_cell(g1, c1)                                   # (BT, H)

    # ------------------------------------------------------------------ decoder
    # Decoder L0 input is the encoded vector repeated over time -> its input
    # projection is computed exactly once and reused every step.
    d0_whh = d0_whh_ref[...]
    d1_wcat = d1_wcat_ref[...]
    d1_b = d1_b_ref[...]
    gd0_const = (jnp.dot(encoded, d0_wih_ref[...], preferred_element_type=f32)
                 + d0_b_ref[...])                                     # (BT, 4*DH)

    zD = jnp.zeros((BT, DH), f32)
    # prologue: dec L0 step 0
    dh0, dc0 = _lstm_cell(gd0_const, zD)

    def dec_body(t, carry):
        h0, c0, h1, c1 = carry
        # L1 step t-1 : single matmul on [h0_prev | h1]
        g1 = (jnp.dot(jnp.concatenate([h0, h1], axis=-1), d1_wcat,
                      preferred_element_type=f32) + d1_b)
        h1n, c1n = _lstm_cell(g1, c1)
        hd1_scr[_rows(t - 1, BT), :] = h1n
        # L0 step t
        g0 = gd0_const + jnp.dot(h0, d0_whh, preferred_element_type=f32)
        h0n, c0n = _lstm_cell(g0, c0)
        return (h0n, c0n, h1n, c1n)

    dh0, dc0, dh1, dc1 = _serial_loop(1, T_dec, dec_body, (dh0, dc0, zD, zD))
    # epilogue: dec L1 step T_dec-1
    g1 = (jnp.dot(jnp.concatenate([dh0, dh1], axis=-1), d1_wcat,
                  preferred_element_type=f32) + d1_b)
    dh1, _ = _lstm_cell(g1, dc1)
    hd1_scr[_rows(T_dec - 1, BT), :] = dh1

    # Output Linear over the whole decoder sequence; one bulk store.
    y = (jnp.dot(hd1_scr[...], w_out_ref[...], preferred_element_type=f32)
         + b_out_ref[...])                                            # (T_dec*BT, Din)
    out_ref[...] = y.reshape(T_dec, BT, Din).astype(out_ref.dtype)


def _nbytes(shape):
    n = 1
    for s in shape:
        n *= int(s)
    return 4 * n


def item_autoencoder_forward(params, x, *, input_size=100, batch_tile=64):
    """x: (B, T, input_dim) batch-first, like the PyTorch module.
    Returns (B, input_size, input_dim)."""
    B, T, d_in = x.shape
    H = params["enc0_whh"].shape[0]       # encoder hidden
    DH = params["dec0_whh"].shape[0]      # decoder hidden (= 64)
    T_dec = input_size

    # Batch tile: multiple of the 8-row sublane granularity, bounded so per-tile
    # VMEM scratch stays small; grid over tiles shards batch across TensorCores.
    BT = max(_SUBLANE, (min(batch_tile, max(B, 1)) + _SUBLANE - 1) // _SUBLANE * _SUBLANE)
    BP = ((B + BT - 1) // BT) * BT
    nb = BP // BT

    # One-time layout prep (tiny): time-major + padded batch.
    x_tm = jnp.transpose(x.astype(jnp.float32), (1, 0, 2))
    if BP != B:
        x_tm = jnp.pad(x_tm, ((0, 0), (0, BP - B), (0, 0)))

    # Pre-concatenate layer-1 weights: [W_ih1; W_hh1] -> one per-step matmul.
    e1_wcat = jnp.concatenate([params["enc1_wih"], params["enc1_whh"]], axis=0)
    d1_wcat = jnp.concatenate([params["dec1_wih"], params["dec1_whh"]], axis=0)

    args = (
        x_tm,
        params["w_in"], params["b_in"][None, :],
        params["enc0_wih"], params["enc0_whh"], params["enc0_b"][None, :],
        e1_wcat, params["enc1_b"][None, :],
        params["dec0_wih"], params["dec0_whh"], params["dec0_b"][None, :],
        d1_wcat, params["dec1_b"][None, :],
        params["w_out"], params["b_out"][None, :],
    )

    in_specs = [pl.BlockSpec((T, BT, d_in), lambda b: (0, b, 0))]
    in_specs += [pl.BlockSpec(a.shape, lambda b: (0, 0)) for a in args[1:]]
    out_spec = pl.BlockSpec((T_dec, BT, d_in), lambda b: (0, b, 0))

    scratch_shapes = [
        pltpu.VMEM((T * BT, 4 * H), jnp.float32),      # ge0: enc-L0 hoisted gates
        pltpu.VMEM((T_dec * BT, DH), jnp.float32),     # hd1: dec-L1 hidden sequence
    ]

    # Explicit VMEM budget (per grid step), with headroom for double-buffering;
    # keeps the same config valid on v7x's smaller 64 MiB physical VMEM.
    per_step = (2 * _nbytes((T, BT, d_in)) + 2 * _nbytes((T_dec, BT, d_in))
                + sum(_nbytes(a.shape) for a in args[1:])
                + _nbytes((T * BT, 4 * H)) + _nbytes((T_dec * BT, DH)))
    vmem_limit = int(min(64 * 2 ** 20, max(8 * 2 ** 20, 4 * per_step)))

    out = pl.pallas_call(
        _fused_forward_kernel,
        out_shape=jax.ShapeDtypeStruct((T_dec, BP, d_in), jnp.float32),
        grid_spec=pltpu.PrefetchScalarGridSpec(
            num_scalar_prefetch=0,
            grid=(nb,),
            in_specs=in_specs,
            out_specs=out_spec,
            scratch_shapes=scratch_shapes,
        ),
        compiler_params=pltpu.CompilerParams(
            dimension_semantics=("parallel",),
            vmem_limit_bytes=vmem_limit,
        ),
    )(*args)

    # Back to batch-first; drop padded batch rows (tiny).
    return jnp.transpose(out, (1, 0, 2))[:B]


# ----------------------------------------------------------------------------
# Parameter construction (deterministic, synthetic).
# ----------------------------------------------------------------------------
def init_params(key, input_dim, hidden_dim):
    def u(key, shape, scale=0.1):
        return jax.random.uniform(key, shape, jnp.float32, -scale, scale)

    keys = jax.random.split(key, 16)
    p = {}
    p["w_in"] = u(keys[0], (input_dim, 64))
    p["b_in"] = u(keys[1], (64,))
    p["enc0_wih"] = u(keys[2], (64, 4 * hidden_dim))
    p["enc0_whh"] = u(keys[3], (hidden_dim, 4 * hidden_dim))
    p["enc0_b"] = u(keys[4], (4 * hidden_dim,))            # b_ih + b_hh folded
    p["enc1_wih"] = u(keys[5], (hidden_dim, 4 * hidden_dim))
    p["enc1_whh"] = u(keys[6], (hidden_dim, 4 * hidden_dim))
    p["enc1_b"] = u(keys[7], (4 * hidden_dim,))
    p["dec0_wih"] = u(keys[8], (hidden_dim, 4 * 64))
    p["dec0_whh"] = u(keys[9], (64, 4 * 64))
    p["dec0_b"] = u(keys[10], (4 * 64,))
    p["dec1_wih"] = u(keys[11], (64, 4 * 64))
    p["dec1_whh"] = u(keys[12], (64, 4 * 64))
    p["dec1_b"] = u(keys[13], (4 * 64,))
    p["w_out"] = u(keys[14], (64, input_dim))
    p["b_out"] = u(keys[15], (input_dim,))
    return p


# ----------------------------------------------------------------------------
# Pure-JAX reference (same math, no Pallas) for correctness checking.
# ----------------------------------------------------------------------------
def _reference_forward(params, x, *, input_size):
    def lstm_seq(xs, w_ih, w_hh, b):          # xs: (B, T, Din) -> (B, T, H)
        B = xs.shape[0]
        H = w_hh.shape[0]

        def cell(carry, x_t):
            h, c = carry
            g = x_t @ w_ih + h @ w_hh + b
            i = jax.nn.sigmoid(g[:, 0 * H:1 * H])
            f = jax.nn.sigmoid(g[:, 1 * H:2 * H])
            gg = jnp.tanh(g[:, 2 * H:3 * H])
            o = jax.nn.sigmoid(g[:, 3 * H:4 * H])
            c = f * c + i * gg
            h = o * jnp.tanh(c)
            return (h, c), h

        init = (jnp.zeros((B, H), jnp.float32), jnp.zeros((B, H), jnp.float32))
        _, hs = lax.scan(cell, init, jnp.swapaxes(xs, 0, 1))
        return jnp.swapaxes(hs, 0, 1)

    B, T, Din = x.shape
    h = jax.nn.relu(x.reshape(B * T, Din) @ params["w_in"] + params["b_in"])
    h = h.reshape(B, T, 64)
    h = lstm_seq(h, params["enc0_wih"], params["enc0_whh"], params["enc0_b"])
    h = lstm_seq(h, params["enc1_wih"], params["enc1_whh"], params["enc1_b"])
    enc = h[:, -1, :]
    d = jnp.broadcast_to(enc[:, None, :], (B, input_size, enc.shape[-1]))
    d = lstm_seq(d, params["dec0_wih"], params["dec0_whh"], params["dec0_b"])
    d = lstm_seq(d, params["dec1_wih"], params["dec1_whh"], params["dec1_b"])
    y = d.reshape(B * input_size, 64) @ params["w_out"] + params["b_out"]
    return y.reshape(B, input_size, Din)


if __name__ == "__main__":
    batch = 2
    seq_len = 8          # encoder input sequence length
    input_dim = 16
    hidden_dim = 32
    input_size = 8       # decoder output sequence length (module default 100)

    key = jax.random.PRNGKey(0)
    k_param, k_x = jax.random.split(key)
    params = init_params(k_param, input_dim, hidden_dim)
    x = jax.random.normal(k_x, (batch, seq_len, input_dim), jnp.float32)

    fwd = jax.jit(functools.partial(item_autoencoder_forward, input_size=input_size))
    out = fwd(params, x)
    jax.block_until_ready(out)

    assert out.shape == (batch, input_size, input_dim), out.shape
    assert out.dtype == jnp.float32

    ref = jax.jit(functools.partial(_reference_forward, input_size=input_size))(params, x)
    max_abs = float(jnp.max(jnp.abs(out - ref)))
    assert max_abs < 2e-2, f"mismatch vs reference: max_abs={max_abs}"

    print("KERNEL_OK")
</pallas_src>

<mosaic_0001>
module attributes {stable_mosaic.version = 11 : i64} {
  func.func @_fused_forward_kernel(%arg0: i32, %arg1: memref<8x8x16xf32, #tpu.memory_space<vmem>>, %arg2: memref<16x64xf32, #tpu.memory_space<vmem>>, %arg3: memref<1x64xf32, #tpu.memory_space<vmem>>, %arg4: memref<64x128xf32, #tpu.memory_space<vmem>>, %arg5: memref<32x128xf32, #tpu.memory_space<vmem>>, %arg6: memref<1x128xf32, #tpu.memory_space<vmem>>, %arg7: memref<64x128xf32, #tpu.memory_space<vmem>>, %arg8: memref<1x128xf32, #tpu.memory_space<vmem>>, %arg9: memref<32x256xf32, #tpu.memory_space<vmem>>, %arg10: memref<64x256xf32, #tpu.memory_space<vmem>>, %arg11: memref<1x256xf32, #tpu.memory_space<vmem>>, %arg12: memref<128x256xf32, #tpu.memory_space<vmem>>, %arg13: memref<1x256xf32, #tpu.memory_space<vmem>>, %arg14: memref<64x16xf32, #tpu.memory_space<vmem>>, %arg15: memref<1x16xf32, #tpu.memory_space<vmem>>, %arg16: memref<8x8x16xf32, #tpu.memory_space<vmem>>, %arg17: memref<64x128xf32, #tpu.memory_space<vmem>>, %arg18: memref<64x64xf32, #tpu.memory_space<vmem>>) attributes {dimension_semantics = [#tpu.dimension_semantics<parallel>], iteration_bounds = array<i64: 1>, scalar_prefetch = 0 : i64, scratch_operands = 2 : i64, tpu.core_type = #tpu.core_type<tc>, window_params = [{transform_indices = @transform_0, window_bounds = array<i64: 8, 8, 16>}, {pipeline_mode = #tpu.pipeline_mode<synchronous>, transform_indices = @transform_1, window_bounds = array<i64: 16, 64>}, {pipeline_mode = #tpu.pipeline_mode<synchronous>, transform_indices = @transform_2, window_bounds = array<i64: 1, 64>}, {pipeline_mode = #tpu.pipeline_mode<synchronous>, transform_indices = @transform_3, window_bounds = array<i64: 64, 128>}, {pipeline_mode = #tpu.pipeline_mode<synchronous>, transform_indices = @transform_4, window_bounds = array<i64: 32, 128>}, {pipeline_mode = #tpu.pipeline_mode<synchronous>, transform_indices = @transform_5, window_bounds = array<i64: 1, 128>}, {pipeline_mode = #tpu.pipeline_mode<synchronous>, transform_indices = @transform_6, window_bounds = array<i64: 64, 128>}, {pipeline_mode = #tpu.pipeline_mode<synchronous>, transform_indices = @transform_7, window_bounds = array<i64: 1, 128>}, {pipeline_mode = #tpu.pipeline_mode<synchronous>, transform_indices = @transform_8, window_bounds = array<i64: 32, 256>}, {pipeline_mode = #tpu.pipeline_mode<synchronous>, transform_indices = @transform_9, window_bounds = array<i64: 64, 256>}, {pipeline_mode = #tpu.pipeline_mode<synchronous>, transform_indices = @transform_10, window_bounds = array<i64: 1, 256>}, {pipeline_mode = #tpu.pipeline_mode<synchronous>, transform_indices = @transform_11, window_bounds = array<i64: 128, 256>}, {pipeline_mode = #tpu.pipeline_mode<synchronous>, transform_indices = @transform_12, window_bounds = array<i64: 1, 256>}, {pipeline_mode = #tpu.pipeline_mode<synchronous>, transform_indices = @transform_13, window_bounds = array<i64: 64, 16>}, {pipeline_mode = #tpu.pipeline_mode<synchronous>, transform_indices = @transform_14, window_bounds = array<i64: 1, 16>}, {transform_indices = @transform_15, window_bounds = array<i64: 8, 8, 16>}]} {
    %c0 = arith.constant 0 : index
    %c0_0 = arith.constant 0 : index
    %c0_1 = arith.constant 0 : index
    %0 = vector.load %arg1[%c0, %c0_0, %c0_1] : memref<8x8x16xf32, #tpu.memory_space<vmem>>, vector<8x8x16xf32>
    %1 = vector.shape_cast %0 : vector<8x8x16xf32> to vector<64x16xf32>
    %c0_2 = arith.constant 0 : index
    %c0_3 = arith.constant 0 : index
    %2 = vector.load %arg2[%c0_2, %c0_3] : memref<16x64xf32, #tpu.memory_space<vmem>>, vector<16x64xf32>
    %cst = arith.constant dense<0.000000e+00> : vector<64x64xf32>
    %3 = tpu.matmul %1, %2, %cst {dimension_numbers = #tpu.dot_dimension_numbers<[1], [0], [0], [1], [0, 0, 1, 1], [], []>} : vector<64x16xf32>, vector<16x64xf32>, vector<64x64xf32> -> vector<64x64xf32>
    %c0_4 = arith.constant 0 : index
    %c0_5 = arith.constant 0 : index
    %4 = vector.load %arg3[%c0_4, %c0_5] : memref<1x64xf32, #tpu.memory_space<vmem>>, vector<1x64xf32>
    %5 = vector.broadcast %4 : vector<1x64xf32> to vector<64x64xf32>
    %6 = arith.addf %3, %5 : vector<64x64xf32>
    %cst_6 = arith.constant 0.000000e+00 : f32
    %7 = vector.broadcast %cst_6 : f32 to vector<64x64xf32>
    %8 = arith.maximumf %6, %7 : vector<64x64xf32>
    %c0_7 = arith.constant 0 : index
    %c0_8 = arith.constant 0 : index
    %9 = vector.load %arg4[%c0_7, %c0_8] : memref<64x128xf32, #tpu.memory_space<vmem>>, vector<64x128xf32>
    %cst_9 = arith.constant dense<0.000000e+00> : vector<64x128xf32>
    %10 = tpu.matmul %8, %9, %cst_9 {dimension_numbers = #tpu.dot_dimension_numbers<[1], [0], [0], [1], [0, 0, 1, 1], [], []>} : vector<64x64xf32>, vector<64x128xf32>, vector<64x128xf32> -> vector<64x128xf32>
    %c0_10 = arith.constant 0 : index
    %c0_11 = arith.constant 0 : index
    %11 = vector.load %arg6[%c0_10, %c0_11] : memref<1x128xf32, #tpu.memory_space<vmem>>, vector<1x128xf32>
    %12 = vector.broadcast %11 : vector<1x128xf32> to vector<64x128xf32>
    %13 = arith.addf %10, %12 : vector<64x128xf32>
    %c0_12 = arith.constant 0 : index
    %c0_13 = arith.constant 0 : index
    %14 = vector.load %arg17[%c0_12, %c0_13] : memref<64x128xf32, #tpu.memory_space<vmem>>, vector<64x128xf32>
    tpu.vector_store %arg17[%c0_12, %c0_13], %13 {strides = array<i32>} : memref<64x128xf32, #tpu.memory_space<vmem>>, vector<64x128xf32>,
    %c0_14 = arith.constant 0 : index
    %c0_15 = arith.constant 0 : index
    %15 = vector.load %arg5[%c0_14, %c0_15] : memref<32x128xf32, #tpu.memory_space<vmem>>, vector<32x128xf32>
    %c0_16 = arith.constant 0 : index
    %c0_17 = arith.constant 0 : index
    %16 = vector.load %arg7[%c0_16, %c0_17] : memref<64x128xf32, #tpu.memory_space<vmem>>, vector<64x128xf32>
    %c0_18 = arith.constant 0 : index
    %c0_19 = arith.constant 0 : index
    %17 = vector.load %arg8[%c0_18, %c0_19] : memref<1x128xf32, #tpu.memory_space<vmem>>, vector<1x128xf32>
    %cst_20 = arith.constant 0.000000e+00 : f32
    %18 = vector.broadcast %cst_20 : f32 to vector<8x32xf32>
    %c0_21 = arith.constant 0 : index
    %c0_22 = arith.constant 0 : index
    %19 = vector.load %arg17[%c0_21, %c0_22] : memref<64x128xf32, #tpu.memory_space<vmem>>, vector<8x128xf32>
    %20 = vector.extract_strided_slice %19 {offsets = [0, 0], sizes = [8, 32], strides = [1, 1]} : vector<8x128xf32> to vector<8x32xf32>
    %cst_23 = arith.constant 5.000000e-01 : f32
    %21 = vector.broadcast %cst_23 : f32 to vector<8x32xf32>
    %22 = arith.mulf %21, %20 : vector<8x32xf32>
    %23 = math.tanh %22 : vector<8x32xf32>
    %cst_24 = arith.constant 5.000000e-01 : f32
    %24 = vector.broadcast %cst_24 : f32 to vector<8x32xf32>
    %25 = arith.mulf %24, %23 : vector<8x32xf32>
    %cst_25 = arith.constant 5.000000e-01 : f32
    %26 = vector.broadcast %cst_25 : f32 to vector<8x32xf32>
    %27 = arith.addf %25, %26 : vector<8x32xf32>
    %28 = vector.extract_strided_slice %19 {offsets = [0, 32], sizes = [8, 32], strides = [1, 1]} : vector<8x128xf32> to vector<8x32xf32>
    %cst_26 = arith.constant 5.000000e-01 : f32
    %29 = vector.broadcast %cst_26 : f32 to vector<8x32xf32>
    %30 = arith.mulf %29, %28 : vector<8x32xf32>
    %31 = math.tanh %30 : vector<8x32xf32>
    %cst_27 = arith.constant 5.000000e-01 : f32
    %32 = vector.broadcast %cst_27 : f32 to vector<8x32xf32>
    %33 = arith.mulf %32, %31 : vector<8x32xf32>
    %cst_28 = arith.constant 5.000000e-01 : f32
    %34 = vector.broadcast %cst_28 : f32 to vector<8x32xf32>
    %35 = arith.addf %33, %34 : vector<8x32xf32>
    %36 = vector.extract_strided_slice %19 {offsets = [0, 64], sizes = [8, 32], strides = [1, 1]} : vector<8x128xf32> to vector<8x32xf32>
    %37 = math.tanh %36 : vector<8x32xf32>
    %38 = vector.extract_strided_slice %19 {offsets = [0, 96], sizes = [8, 32], strides = [1, 1]} : vector<8x128xf32> to vector<8x32xf32>
    %cst_29 = arith.constant 5.000000e-01 : f32
    %39 = vector.broadcast %cst_29 : f32 to vector<8x32xf32>
    %40 = arith.mulf %39, %38 : vector<8x32xf32>
    %41 = math.tanh %40 : vector<8x32xf32>
    %cst_30 = arith.constant 5.000000e-01 : f32
    %42 = vector.broadcast %cst_30 : f32 to vector<8x32xf32>
    %43 = arith.mulf %42, %41 : vector<8x32xf32>
    %cst_31 = arith.constant 5.000000e-01 : f32
    %44 = vector.broadcast %cst_31 : f32 to vector<8x32xf32>
    %45 = arith.addf %43, %44 : vector<8x32xf32>
    %46 = arith.mulf %35, %18 : vector<8x32xf32>
    %47 = arith.mulf %27, %37 : vector<8x32xf32>
    %48 = arith.addf %46, %47 : vector<8x32xf32>
    %49 = math.tanh %48 : vector<8x32xf32>
    %50 = arith.mulf %45, %49 : vector<8x32xf32>
    %51 = tpu.concatenate %50, %18 in 1 : vector<8x32xf32>, vector<8x32xf32> -> vector<8x64xf32>
    %cst_32 = arith.constant dense<0.000000e+00> : vector<8x128xf32>
    %52 = tpu.matmul %51, %16, %cst_32 {dimension_numbers = #tpu.dot_dimension_numbers<[1], [0], [0], [1], [0, 0, 1, 1], [], []>} : vector<8x64xf32>, vector<64x128xf32>, vector<8x128xf32> -> vector<8x128xf32>
    %53 = vector.broadcast %17 : vector<1x128xf32> to vector<8x128xf32>
    %54 = arith.addf %52, %53 : vector<8x128xf32>
    %55 = vector.extract_strided_slice %54 {offsets = [0, 0], sizes = [8, 32], strides = [1, 1]} : vector<8x128xf32> to vector<8x32xf32>
    %cst_33 = arith.constant 5.000000e-01 : f32
    %56 = vector.broadcast %cst_33 : f32 to vector<8x32xf32>
    %57 = arith.mulf %56, %55 : vector<8x32xf32>
    %58 = math.tanh %57 : vector<8x32xf32>
    %cst_34 = arith.constant 5.000000e-01 : f32
    %59 = vector.broadcast %cst_34 : f32 to vector<8x32xf32>
    %60 = arith.mulf %59, %58 : vector<8x32xf32>
    %cst_35 = arith.constant 5.000000e-01 : f32
    %61 = vector.broadcast %cst_35 : f32 to vector<8x32xf32>
    %62 = arith.addf %60, %61 : vector<8x32xf32>
    %63 = vector.extract_strided_slice %54 {offsets = [0, 32], sizes = [8, 32], strides = [1, 1]} : vector<8x128xf32> to vector<8x32xf32>
    %cst_36 = arith.constant 5.000000e-01 : f32
    %64 = vector.broadcast %cst_36 : f32 to vector<8x32xf32>
    %65 = arith.mulf %64, %63 : vector<8x32xf32>
    %66 = math.tanh %65 : vector<8x32xf32>
    %cst_37 = arith.constant 5.000000e-01 : f32
    %67 = vector.broadcast %cst_37 : f32 to vector<8x32xf32>
    %68 = arith.mulf %67, %66 : vector<8x32xf32>
    %cst_38 = arith.constant 5.000000e-01 : f32
    %69 = vector.broadcast %cst_38 : f32 to vector<8x32xf32>
    %70 = arith.addf %68, %69 : vector<8x32xf32>
    %71 = vector.extract_strided_slice %54 {offsets = [0, 64], sizes = [8, 32], strides = [1, 1]} : vector<8x128xf32> to vector<8x32xf32>
    %72 = math.tanh %71 : vector<8x32xf32>
    %73 = vector.extract_strided_slice %54 {offsets = [0, 96], sizes = [8, 32], strides = [1, 1]} : vector<8x128xf32> to vector<8x32xf32>
    %cst_39 = arith.constant 5.000000e-01 : f32
    %74 = vector.broadcast %cst_39 : f32 to vector<8x32xf32>
    %75 = arith.mulf %74, %73 : vector<8x32xf32>
    %76 = math.tanh %75 : vector<8x32xf32>
    %cst_40 = arith.constant 5.000000e-01 : f32
    %77 = vector.broadcast %cst_40 : f32 to vector<8x32xf32>
    %78 = arith.mulf %77, %76 : vector<8x32xf32>
    %cst_41 = arith.constant 5.000000e-01 : f32
    %79 = vector.broadcast %cst_41 : f32 to vector<8x32xf32>
    %80 = arith.addf %78, %79 : vector<8x32xf32>
    %81 = arith.mulf %70, %18 : vector<8x32xf32>
    %82 = arith.mulf %62, %72 : vector<8x32xf32>
    %83 = arith.addf %81, %82 : vector<8x32xf32>
    %84 = math.tanh %83 : vector<8x32xf32>
    %85 = arith.mulf %80, %84 : vector<8x32xf32>
    %c8 = arith.constant 8 : index
    %c0_42 = arith.constant 0 : index
    %86 = vector.load %arg17[%c8, %c0_42] : memref<64x128xf32, #tpu.memory_space<vmem>>, vector<8x128xf32>
    %cst_43 = arith.constant dense<0.000000e+00> : vector<8x128xf32>
    %87 = tpu.matmul %50, %15, %cst_43 {dimension_numbers = #tpu.dot_dimension_numbers<[1], [0], [0], [1], [0, 0, 1, 1], [], []>} : vector<8x32xf32>, vector<32x128xf32>, vector<8x128xf32> -> vector<8x128xf32>
    %88 = arith.addf %86, %87 : vector<8x128xf32>
    %89 = vector.extract_strided_slice %88 {offsets = [0, 0], sizes = [8, 32], strides = [1, 1]} : vector<8x128xf32> to vector<8x32xf32>
    %cst_44 = arith.constant 5.000000e-01 : f32
    %90 = vector.broadcast %cst_44 : f32 to vector<8x32xf32>
    %91 = arith.mulf %90, %89 : vector<8x32xf32>
    %92 = math.tanh %91 : vector<8x32xf32>
    %cst_45 = arith.constant 5.000000e-01 : f32
    %93 = vector.broadcast %cst_45 : f32 to vector<8x32xf32>
    %94 = arith.mulf %93, %92 : vector<8x32xf32>
    %cst_46 = arith.constant 5.000000e-01 : f32
    %95 = vector.broadcast %cst_46 : f32 to vector<8x32xf32>
    %96 = arith.addf %94, %95 : vector<8x32xf32>
    %97 = vector.extract_strided_slice %88 {offsets = [0, 32], sizes = [8, 32], strides = [1, 1]} : vector<8x128xf32> to vector<8x32xf32>
    %cst_47 = arith.constant 5.000000e-01 : f32
    %98 = vector.broadcast %cst_47 : f32 to vector<8x32xf32>
    %99 = arith.mulf %98, %97 : vector<8x32xf32>
    %100 = math.tanh %99 : vector<8x32xf32>
    %cst_48 = arith.constant 5.000000e-01 : f32
    %101 = vector.broadcast %cst_48 : f32 to vector<8x32xf32>
    %102 = arith.mulf %101, %100 : vector<8x32xf32>
    %cst_49 = arith.constant 5.000000e-01 : f32
    %103 = vector.broadcast %cst_49 : f32 to vector<8x32xf32>
    %104 = arith.addf %102, %103 : vector<8x32xf32>
    %105 = vector.extract_strided_slice %88 {offsets = [0, 64], sizes = [8, 32], strides = [1, 1]} : vector<8x128xf32> to vector<8x32xf32>
    %106 = math.tanh %105 : vector<8x32xf32>
    %107 = vector.extract_strided_slice %88 {offsets = [0, 96], sizes = [8, 32], strides = [1, 1]} : vector<8x128xf32> to vector<8x32xf32>
    %cst_50 = arith.constant 5.000000e-01 : f32
    %108 = vector.broadcast %cst_50 : f32 to vector<8x32xf32>
    %109 = arith.mulf %108, %107 : vector<8x32xf32>
    %110 = math.tanh %109 : vector<8x32xf32>
    %cst_51 = arith.constant 5.000000e-01 : f32
    %111 = vector.broadcast %cst_51 : f32 to vector<8x32xf32>
    %112 = arith.mulf %111, %110 : vector<8x32xf32>
    %cst_52 = arith.constant 5.000000e-01 : f32
    %113 = vector.broadcast %cst_52 : f32 to vector<8x32xf32>
    %114 = arith.addf %112, %113 : vector<8x32xf32>
    %115 = arith.mulf %104, %48 : vector<8x32xf32>
    %116 = arith.mulf %96, %106 : vector<8x32xf32>
    %117 = arith.addf %115, %116 : vector<8x32xf32>
    %118 = math.tanh %117 : vector<8x32xf32>
    %119 = arith.mulf %114, %118 : vector<8x32xf32>
    %120 = tpu.concatenate %119, %85 in 1 : vector<8x32xf32>, vector<8x32xf32> -> vector<8x64xf32>
    %cst_53 = arith.constant dense<0.000000e+00> : vector<8x128xf32>
    %121 = tpu.matmul %120, %16, %cst_53 {dimension_numbers = #tpu.dot_dimension_numbers<[1], [0], [0], [1], [0, 0, 1, 1], [], []>} : vector<8x64xf32>, vector<64x128xf32>, vector<8x128xf32> -> vector<8x128xf32>
    %122 = vector.broadcast %17 : vector<1x128xf32> to vector<8x128xf32>
    %123 = arith.addf %121, %122 : vector<8x128xf32>
    %124 = vector.extract_strided_slice %123 {offsets = [0, 0], sizes = [8, 32], strides = [1, 1]} : vector<8x128xf32> to vector<8x32xf32>
    %cst_54 = arith.constant 5.000000e-01 : f32
    %125 = vector.broadcast %cst_54 : f32 to vector<8x32xf32>
    %126 = arith.mulf %125, %124 : vector<8x32xf32>
    %127 = math.tanh %126 : vector<8x32xf32>
    %cst_55 = arith.constant 5.000000e-01 : f32
    %128 = vector.broadcast %cst_55 : f32 to vector<8x32xf32>
    %129 = arith.mulf %128, %127 : vector<8x32xf32>
    %cst_56 = arith.constant 5.000000e-01 : f32
    %130 = vector.broadcast %cst_56 : f32 to vector<8x32xf32>
    %131 = arith.addf %129, %130 : vector<8x32xf32>
    %132 = vector.extract_strided_slice %123 {offsets = [0, 32], sizes = [8, 32], strides = [1, 1]} : vector<8x128xf32> to vector<8x32xf32>
    %cst_57 = arith.constant 5.000000e-01 : f32
    %133 = vector.broadcast %cst_57 : f32 to vector<8x32xf32>
    %134 = arith.mulf %133, %132 : vector<8x32xf32>
    %135 = math.tanh %134 : vector<8x32xf32>
    %cst_58 = arith.constant 5.000000e-01 : f32
    %136 = vector.broadcast %cst_58 : f32 to vector<8x32xf32>
    %137 = arith.mulf %136, %135 : vector<8x32xf32>
    %cst_59 = arith.constant 5.000000e-01 : f32
    %138 = vector.broadcast %cst_59 : f32 to vector<8x32xf32>
    %139 = arith.addf %137, %138 : vector<8x32xf32>
    %140 = vector.extract_strided_slice %123 {offsets = [0, 64], sizes = [8, 32], strides = [1, 1]} : vector<8x128xf32> to vector<8x32xf32>
    %141 = math.tanh %140 : vector<8x32xf32>
    %142 = vector.extract_strided_slice %123 {offsets = [0, 96], sizes = [8, 32], strides = [1, 1]} : vector<8x128xf32> to vector<8x32xf32>
    %cst_60 = arith.constant 5.000000e-01 : f32
    %143 = vector.broadcast %cst_60 : f32 to vector<8x32xf32>
    %144 = arith.mulf %143, %142 : vector<8x32xf32>
    %145 = math.tanh %144 : vector<8x32xf32>
    %cst_61 = arith.constant 5.000000e-01 : f32
    %146 = vector.broadcast %cst_61 : f32 to vector<8x32xf32>
    %147 = arith.mulf %146, %145 : vector<8x32xf32>
    %cst_62 = arith.constant 5.000000e-01 : f32
    %148 = vector.broadcast %cst_62 : f32 to vector<8x32xf32>
    %149 = arith.addf %147, %148 : vector<8x32xf32>
    %150 = arith.mulf %139, %83 : vector<8x32xf32>
    %151 = arith.mulf %131, %141 : vector<8x32xf32>
    %152 = arith.addf %150, %151 : vector<8x32xf32>
    %153 = math.tanh %152 : vector<8x32xf32>
    %154 = arith.mulf %149, %153 : vector<8x32xf32>
    %c16 = arith.constant 16 : index
    %c0_63 = arith.constant 0 : index
    %155 = vector.load %arg17[%c16, %c0_63] : memref<64x128xf32, #tpu.memory_space<vmem>>, vector<8x128xf32>
    %cst_64 = arith.constant dense<0.000000e+00> : vector<8x128xf32>
    %156 = tpu.matmul %119, %15, %cst_64 {dimension_numbers = #tpu.dot_dimension_numbers<[1], [0], [0], [1], [0, 0, 1, 1], [], []>} : vector<8x32xf32>, vector<32x128xf32>, vector<8x128xf32> -> vector<8x128xf32>
    %157 = arith.addf %155, %156 : vector<8x128xf32>
    %158 = vector.extract_strided_slice %157 {offsets = [0, 0], sizes = [8, 32], strides = [1, 1]} : vector<8x128xf32> to vector<8x32xf32>
    %cst_65 = arith.constant 5.000000e-01 : f32
    %159 = vector.broadcast %cst_65 : f32 to vector<8x32xf32>
    %160 = arith.mulf %159, %158 : vector<8x32xf32>
    %161 = math.tanh %160 : vector<8x32xf32>
    %cst_66 = arith.constant 5.000000e-01 : f32
    %162 = vector.broadcast %cst_66 : f32 to vector<8x32xf32>
    %163 = arith.mulf %162, %161 : vector<8x32xf32>
    %cst_67 = arith.constant 5.000000e-01 : f32
    %164 = vector.broadcast %cst_67 : f32 to vector<8x32xf32>
    %165 = arith.addf %163, %164 : vector<8x32xf32>
    %166 = vector.extract_strided_slice %157 {offsets = [0, 32], sizes = [8, 32], strides = [1, 1]} : vector<8x128xf32> to vector<8x32xf32>
    %cst_68 = arith.constant 5.000000e-01 : f32
    %167 = vector.broadcast %cst_68 : f32 to vector<8x32xf32>
    %168 = arith.mulf %167, %166 : vector<8x32xf32>
    %169 = math.tanh %168 : vector<8x32xf32>
    %cst_69 = arith.constant 5.000000e-01 : f32
    %170 = vector.broadcast %cst_69 : f32 to vector<8x32xf32>
    %171 = arith.mulf %170, %169 : vector<8x32xf32>
    %cst_70 = arith.constant 5.000000e-01 : f32
    %172 = vector.broadcast %cst_70 : f32 to vector<8x32xf32>
    %173 = arith.addf %171, %172 : vector<8x32xf32>
    %174 = vector.extract_strided_slice %157 {offsets = [0, 64], sizes = [8, 32], strides = [1, 1]} : vector<8x128xf32> to vector<8x32xf32>
    %175 = math.tanh %174 : vector<8x32xf32>
    %176 = vector.extract_strided_slice %157 {offsets = [0, 96], sizes = [8, 32], strides = [1, 1]} : vector<8x128xf32> to vector<8x32xf32>
    %cst_71 = arith.constant 5.000000e-01 : f32
    %177 = vector.broadcast %cst_71 : f32 to vector<8x32xf32>
    %178 = arith.mulf %177, %176 : vector<8x32xf32>
    %179 = math.tanh %178 : vector<8x32xf32>
    %cst_72 = arith.constant 5.000000e-01 : f32
    %180 = vector.broadcast %cst_72 : f32 to vector<8x32xf32>
    %181 = arith.mulf %180, %179 : vector<8x32xf32>
    %cst_73 = arith.constant 5.000000e-01 : f32
    %182 = vector.broadcast %cst_73 : f32 to vector<8x32xf32>
    %183 = arith.addf %181, %182 : vector<8x32xf32>
    %184 = arith.mulf %173, %117 : vector<8x32xf32>
    %185 = arith.mulf %165, %175 : vector<8x32xf32>
    %186 = arith.addf %184, %185 : vector<8x32xf32>
    %187 = math.tanh %186 : vector<8x32xf32>
    %188 = arith.mulf %183, %187 : vector<8x32xf32>
    %189 = tpu.concatenate %188, %154 in 1 : vector<8x32xf32>, vector<8x32xf32> -> vector<8x64xf32>
    %cst_74 = arith.constant dense<0.000000e+00> : vector<8x128xf32>
    %190 = tpu.matmul %189, %16, %cst_74 {dimension_numbers = #tpu.dot_dimension_numbers<[1], [0], [0], [1], [0, 0, 1, 1], [], []>} : vector<8x64xf32>, vector<64x128xf32>, vector<8x128xf32> -> vector<8x128xf32>
    %191 = vector.broadcast %17 : vector<1x128xf32> to vector<8x128xf32>
    %192 = arith.addf %190, %191 : vector<8x128xf32>
    %193 = vector.extract_strided_slice %192 {offsets = [0, 0], sizes = [8, 32], strides = [1, 1]} : vector<8x128xf32> to vector<8x32xf32>
    %cst_75 = arith.constant 5.000000e-01 : f32
    %194 = vector.broadcast %cst_75 : f32 to vector<8x32xf32>
    %195 = arith.mulf %194, %193 : vector<8x32xf32>
    %196 = math.tanh %195 : vector<8x32xf32>
    %cst_76 = arith.constant 5.000000e-01 : f32
    %197 = vector.broadcast %cst_76 : f32 to vector<8x32xf32>
    %198 = arith.mulf %197, %196 : vector<8x32xf32>
    %cst_77 = arith.constant 5.000000e-01 : f32
    %199 = vector.broadcast %cst_77 : f32 to vector<8x32xf32>
    %200 = arith.addf %198, %199 : vector<8x32xf32>
    %201 = vector.extract_strided_slice %192 {offsets = [0, 32], sizes = [8, 32], strides = [1, 1]} : vector<8x128xf32> to vector<8x32xf32>
    %cst_78 = arith.constant 5.000000e-01 : f32
    %202 = vector.broadcast %cst_78 : f32 to vector<8x32xf32>
    %203 = arith.mulf %202, %201 : vector<8x32xf32>
    %204 = math.tanh %203 : vector<8x32xf32>
    %cst_79 = arith.constant 5.000000e-01 : f32
    %205 = vector.broadcast %cst_79 : f32 to vector<8x32xf32>
    %206 = arith.mulf %205, %204 : vector<8x32xf32>
    %cst_80 = arith.constant 5.000000e-01 : f32
    %207 = vector.broadcast %cst_80 : f32 to vector<8x32xf32>
    %208 = arith.addf %206, %207 : vector<8x32xf32>
    %209 = vector.extract_strided_slice %192 {offsets = [0, 64], sizes = [8, 32], strides = [1, 1]} : vector<8x128xf32> to vector<8x32xf32>
    %210 = math.tanh %209 : vector<8x32xf32>
    %211 = vector.extract_strided_slice %192 {offsets = [0, 96], sizes = [8, 32], strides = [1, 1]} : vector<8x128xf32> to vector<8x32xf32>
    %cst_81 = arith.constant 5.000000e-01 : f32
    %212 = vector.broadcast %cst_81 : f32 to vector<8x32xf32>
    %213 = arith.mulf %212, %211 : vector<8x32xf32>
    %214 = math.tanh %213 : vector<8x32xf32>
    %cst_82 = arith.constant 5.000000e-01 : f32
    %215 = vector.broadcast %cst_82 : f32 to vector<8x32xf32>
    %216 = arith.mulf %215, %214 : vector<8x32xf32>
    %cst_83 = arith.constant 5.000000e-01 : f32
    %217 = vector.broadcast %cst_83 : f32 to vector<8x32xf32>
    %218 = arith.addf %216, %217 : vector<8x32xf32>
    %219 = arith.mulf %208, %152 : vector<8x32xf32>
    %220 = arith.mulf %200, %210 : vector<8x32xf32>
    %221 = arith.addf %219, %220 : vector<8x32xf32>
    %222 = math.tanh %221 : vector<8x32xf32>
    %223 = arith.mulf %218, %222 : vector<8x32xf32>
    %c24 = arith.constant 24 : index
    %c0_84 = arith.constant 0 : index
    %224 = vector.load %arg17[%c24, %c0_84] : memref<64x128xf32, #tpu.memory_space<vmem>>, vector<8x128xf32>
    %cst_85 = arith.constant dense<0.000000e+00> : vector<8x128xf32>
    %225 = tpu.matmul %188, %15, %cst_85 {dimension_numbers = #tpu.dot_dimension_numbers<[1], [0], [0], [1], [0, 0, 1, 1], [], []>} : vector<8x32xf32>, vector<32x128xf32>, vector<8x128xf32> -> vector<8x128xf32>
    %226 = arith.addf %224, %225 : vector<8x128xf32>
    %227 = vector.extract_strided_slice %226 {offsets = [0, 0], sizes = [8, 32], strides = [1, 1]} : vector<8x128xf32> to vector<8x32xf32>
    %cst_86 = arith.constant 5.000000e-01 : f32
    %228 = vector.broadcast %cst_86 : f32 to vector<8x32xf32>
    %229 = arith.mulf %228, %227 : vector<8x32xf32>
    %230 = math.tanh %229 : vector<8x32xf32>
    %cst_87 = arith.constant 5.000000e-01 : f32
    %231 = vector.broadcast %cst_87 : f32 to vector<8x32xf32>
    %232 = arith.mulf %231, %230 : vector<8x32xf32>
    %cst_88 = arith.constant 5.000000e-01 : f32
    %233 = vector.broadcast %cst_88 : f32 to vector<8x32xf32>
    %234 = arith.addf %232, %233 : vector<8x32xf32>
    %235 = vector.extract_strided_slice %226 {offsets = [0, 32], sizes = [8, 32], strides = [1, 1]} : vector<8x128xf32> to vector<8x32xf32>
    %cst_89 = arith.constant 5.000000e-01 : f32
    %236 = vector.broadcast %cst_89 : f32 to vector<8x32xf32>
    %237 = arith.mulf %236, %235 : vector<8x32xf32>
    %238 = math.tanh %237 : vector<8x32xf32>
    %cst_90 = arith.constant 5.000000e-01 : f32
    %239 = vector.broadcast %cst_90 : f32 to vector<8x32xf32>
    %240 = arith.mulf %239, %238 : vector<8x32xf32>
    %cst_91 = arith.constant 5.000000e-01 : f32
    %241 = vector.broadcast %cst_91 : f32 to vector<8x32xf32>
    %242 = arith.addf %240, %241 : vector<8x32xf32>
    %243 = vector.extract_strided_slice %226 {offsets = [0, 64], sizes = [8, 32], strides = [1, 1]} : vector<8x128xf32> to vector<8x32xf32>
    %244 = math.tanh %243 : vector<8x32xf32>
    %245 = vector.extract_strided_slice %226 {offsets = [0, 96], sizes = [8, 32], strides = [1, 1]} : vector<8x128xf32> to vector<8x32xf32>
    %cst_92 = arith.constant 5.000000e-01 : f32
    %246 = vector.broadcast %cst_92 : f32 to vector<8x32xf32>
    %247 = arith.mulf %246, %245 : vector<8x32xf32>
    %248 = math.tanh %247 : vector<8x32xf32>
    %cst_93 = arith.constant 5.000000e-01 : f32
    %249 = vector.broadcast %cst_93 : f32 to vector<8x32xf32>
    %250 = arith.mulf %249, %248 : vector<8x32xf32>
    %cst_94 = arith.constant 5.000000e-01 : f32
    %251 = vector.broadcast %cst_94 : f32 to vector<8x32xf32>
    %252 = arith.addf %250, %251 : vector<8x32xf32>
    %253 = arith.mulf %242, %186 : vector<8x32xf32>
    %254 = arith.mulf %234, %244 : vector<8x32xf32>
    %255 = arith.addf %253, %254 : vector<8x32xf32>
    %256 = math.tanh %255 : vector<8x32xf32>
    %257 = arith.mulf %252, %256 : vector<8x32xf32>
    %258 = tpu.concatenate %257, %223 in 1 : vector<8x32xf32>, vector<8x32xf32> -> vector<8x64xf32>
    %cst_95 = arith.constant dense<0.000000e+00> : vector<8x128xf32>
    %259 = tpu.matmul %258, %16, %cst_95 {dimension_numbers = #tpu.dot_dimension_numbers<[1], [0], [0], [1], [0, 0, 1, 1], [], []>} : vector<8x64xf32>, vector<64x128xf32>, vector<8x128xf32> -> vector<8x128xf32>
    %260 = vector.broadcast %17 : vector<1x128xf32> to vector<8x128xf32>
    %261 = arith.addf %259, %260 : vector<8x128xf32>
    %262 = vector.extract_strided_slice %261 {offsets = [0, 0], sizes = [8, 32], strides = [1, 1]} : vector<8x128xf32> to vector<8x32xf32>
    %cst_96 = arith.constant 5.000000e-01 : f32
    %263 = vector.broadcast %cst_96 : f32 to vector<8x32xf32>
    %264 = arith.mulf %263, %262 : vector<8x32xf32>
    %265 = math.tanh %264 : vector<8x32xf32>
    %cst_97 = arith.constant 5.000000e-01 : f32
    %266 = vector.broadcast %cst_97 : f32 to vector<8x32xf32>
    %267 = arith.mulf %266, %265 : vector<8x32xf32>
    %cst_98 = arith.constant 5.000000e-01 : f32
    %268 = vector.broadcast %cst_98 : f32 to vector<8x32xf32>
    %269 = arith.addf %267, %268 : vector<8x32xf32>
    %270 = vector.extract_strided_slice %261 {offsets = [0, 32], sizes = [8, 32], strides = [1, 1]} : vector<8x128xf32> to vector<8x32xf32>
    %cst_99 = arith.constant 5.000000e-01 : f32
    %271 = vector.broadcast %cst_99 : f32 to vector<8x32xf32>
    %272 = arith.mulf %271, %270 : vector<8x32xf32>
    %273 = math.tanh %272 : vector<8x32xf32>
    %cst_100 = arith.constant 5.000000e-01 : f32
    %274 = vector.broadcast %cst_100 : f32 to vector<8x32xf32>
    %275 = arith.mulf %274, %273 : vector<8x32xf32>
    %cst_101 = arith.constant 5.000000e-01 : f32
    %276 = vector.broadcast %cst_101 : f32 to vector<8x32xf32>
    %277 = arith.addf %275, %276 : vector<8x32xf32>
    %278 = vector.extract_strided_slice %261 {offsets = [0, 64], sizes = [8, 32], strides = [1, 1]} : vector<8x128xf32> to vector<8x32xf32>
    %279 = math.tanh %278 : vector<8x32xf32>
    %280 = vector.extract_strided_slice %261 {offsets = [0, 96], sizes = [8, 32], strides = [1, 1]} : vector<8x128xf32> to vector<8x32xf32>
    %cst_102 = arith.constant 5.000000e-01 : f32
    %281 = vector.broadcast %cst_102 : f32 to vector<8x32xf32>
    %282 = arith.mulf %281, %280 : vector<8x32xf32>
    %283 = math.tanh %282 : vector<8x32xf32>
    %cst_103 = arith.constant 5.000000e-01 : f32
    %284 = vector.broadcast %cst_103 : f32 to vector<8x32xf32>
    %285 = arith.mulf %284, %283 : vector<8x32xf32>
    %cst_104 = arith.constant 5.000000e-01 : f32
    %286 = vector.broadcast %cst_104 : f32 to vector<8x32xf32>
    %287 = arith.addf %285, %286 : vector<8x32xf32>
    %288 = arith.mulf %277, %221 : vector<8x32xf32>
    %289 = arith.mulf %269, %279 : vector<8x32xf32>
    %290 = arith.addf %288, %289 : vector<8x32xf32>
    %291 = math.tanh %290 : vector<8x32xf32>
    %292 = arith.mulf %287, %291 : vector<8x32xf32>
    %c32 = arith.constant 32 : index
    %c0_105 = arith.constant 0 : index
    %293 = vector.load %arg17[%c32, %c0_105] : memref<64x128xf32, #tpu.memory_space<vmem>>, vector<8x128xf32>
    %cst_106 = arith.constant dense<0.000000e+00> : vector<8x128xf32>
    %294 = tpu.matmul %257, %15, %cst_106 {dimension_numbers = #tpu.dot_dimension_numbers<[1], [0], [0], [1], [0, 0, 1, 1], [], []>} : vector<8x32xf32>, vector<32x128xf32>, vector<8x128xf32> -> vector<8x128xf32>
    %295 = arith.addf %293, %294 : vector<8x128xf32>
    %296 = vector.extract_strided_slice %295 {offsets = [0, 0], sizes = [8, 32], strides = [1, 1]} : vector<8x128xf32> to vector<8x32xf32>
    %cst_107 = arith.constant 5.000000e-01 : f32
    %297 = vector.broadcast %cst_107 : f32 to vector<8x32xf32>
    %298 = arith.mulf %297, %296 : vector<8x32xf32>
    %299 = math.tanh %298 : vector<8x32xf32>
    %cst_108 = arith.constant 5.000000e-01 : f32
    %300 = vector.broadcast %cst_108 : f32 to vector<8x32xf32>
    %301 = arith.mulf %300, %299 : vector<8x32xf32>
    %cst_109 = arith.constant 5.000000e-01 : f32
    %302 = vector.broadcast %cst_109 : f32 to vector<8x32xf32>
    %303 = arith.addf %301, %302 : vector<8x32xf32>
    %304 = vector.extract_strided_slice %295 {offsets = [0, 32], sizes = [8, 32], strides = [1, 1]} : vector<8x128xf32> to vector<8x32xf32>
    %cst_110 = arith.constant 5.000000e-01 : f32
    %305 = vector.broadcast %cst_110 : f32 to vector<8x32xf32>
    %306 = arith.mulf %305, %304 : vector<8x32xf32>
    %307 = math.tanh %306 : vector<8x32xf32>
    %cst_111 = arith.constant 5.000000e-01 : f32
    %308 = vector.broadcast %cst_111 : f32 to vector<8x32xf32>
    %309 = arith.mulf %308, %307 : vector<8x32xf32>
    %cst_112 = arith.constant 5.000000e-01 : f32
    %310 = vector.broadcast %cst_112 : f32 to vector<8x32xf32>
    %311 = arith.addf %309, %310 : vector<8x32xf32>
    %312 = vector.extract_strided_slice %295 {offsets = [0, 64], sizes = [8, 32], strides = [1, 1]} : vector<8x128xf32> to vector<8x32xf32>
    %313 = math.tanh %312 : vector<8x32xf32>
    %314 = vector.extract_strided_slice %295 {offsets = [0, 96], sizes = [8, 32], strides = [1, 1]} : vector<8x128xf32> to vector<8x32xf32>
    %cst_113 = arith.constant 5.000000e-01 : f32
    %315 = vector.broadcast %cst_113 : f32 to vector<8x32xf32>
    %316 = arith.mulf %315, %314 : vector<8x32xf32>
    %317 = math.tanh %316 : vector<8x32xf32>
    %cst_114 = arith.constant 5.000000e-01 : f32
    %318 = vector.broadcast %cst_114 : f32 to vector<8x32xf32>
    %319 = arith.mulf %318, %317 : vector<8x32xf32>
    %cst_115 = arith.constant 5.000000e-01 : f32
    %320 = vector.broadcast %cst_115 : f32 to vector<8x32xf32>
    %321 = arith.addf %319, %320 : vector<8x32xf32>
    %322 = arith.mulf %311, %255 : vector<8x32xf32>
    %323 = arith.mulf %303, %313 : vector<8x32xf32>
    %324 = arith.addf %322, %323 : vector<8x32xf32>
    %325 = math.tanh %324 : vector<8x32xf32>
    %326 = arith.mulf %321, %325 : vector<8x32xf32>
    %327 = tpu.concatenate %326, %292 in 1 : vector<8x32xf32>, vector<8x32xf32> -> vector<8x64xf32>
    %cst_116 = arith.constant dense<0.000000e+00> : vector<8x128xf32>
    %328 = tpu.matmul %327, %16, %cst_116 {dimension_numbers = #tpu.dot_dimension_numbers<[1], [0], [0], [1], [0, 0, 1, 1], [], []>} : vector<8x64xf32>, vector<64x128xf32>, vector<8x128xf32> -> vector<8x128xf32>
    %329 = vector.broadcast %17 : vector<1x128xf32> to vector<8x128xf32>
    %330 = arith.addf %328, %329 : vector<8x128xf32>
    %331 = vector.extract_strided_slice %330 {offsets = [0, 0], sizes = [8, 32], strides = [1, 1]} : vector<8x128xf32> to vector<8x32xf32>
    %cst_117 = arith.constant 5.000000e-01 : f32
    %332 = vector.broadcast %cst_117 : f32 to vector<8x32xf32>
    %333 = arith.mulf %332, %331 : vector<8x32xf32>
    %334 = math.tanh %333 : vector<8x32xf32>
    %cst_118 = arith.constant 5.000000e-01 : f32
    %335 = vector.broadcast %cst_118 : f32 to vector<8x32xf32>
    %336 = arith.mulf %335, %334 : vector<8x32xf32>
    %cst_119 = arith.constant 5.000000e-01 : f32
    %337 = vector.broadcast %cst_119 : f32 to vector<8x32xf32>
    %338 = arith.addf %336, %337 : vector<8x32xf32>
    %339 = vector.extract_strided_slice %330 {offsets = [0, 32], sizes = [8, 32], strides = [1, 1]} : vector<8x128xf32> to vector<8x32xf32>
    %cst_120 = arith.constant 5.000000e-01 : f32
    %340 = vector.broadcast %cst_120 : f32 to vector<8x32xf32>
    %341 = arith.mulf %340, %339 : vector<8x32xf32>
    %342 = math.tanh %341 : vector<8x32xf32>
    %cst_121 = arith.constant 5.000000e-01 : f32
    %343 = vector.broadcast %cst_121 : f32 to vector<8x32xf32>
    %344 = arith.mulf %343, %342 : vector<8x32xf32>
    %cst_122 = arith.constant 5.000000e-01 : f32
    %345 = vector.broadcast %cst_122 : f32 to vector<8x32xf32>
    %346 = arith.addf %344, %345 : vector<8x32xf32>
    %347 = vector.extract_strided_slice %330 {offsets = [0, 64], sizes = [8, 32], strides = [1, 1]} : vector<8x128xf32> to vector<8x32xf32>
    %348 = math.tanh %347 : vector<8x32xf32>
    %349 = vector.extract_strided_slice %330 {offsets = [0, 96], sizes = [8, 32], strides = [1, 1]} : vector<8x128xf32> to vector<8x32xf32>
    %cst_123 = arith.constant 5.000000e-01 : f32
    %350 = vector.broadcast %cst_123 : f32 to vector<8x32xf32>
    %351 = arith.mulf %350, %349 : vector<8x32xf32>
    %352 = math.tanh %351 : vector<8x32xf32>
    %cst_124 = arith.constant 5.000000e-01 : f32
    %353 = vector.broadcast %cst_124 : f32 to vector<8x32xf32>
    %354 = arith.mulf %353, %352 : vector<8x32xf32>
    %cst_125 = arith.constant 5.000000e-01 : f32
    %355 = vector.broadcast %cst_125 : f32 to vector<8x32xf32>
    %356 = arith.addf %354, %355 : vector<8x32xf32>
    %357 = arith.mulf %346, %290 : vector<8x32xf32>
    %358 = arith.mulf %338, %348 : vector<8x32xf32>
    %359 = arith.addf %357, %358 : vector<8x32xf32>
    %360 = math.tanh %359 : vector<8x32xf32>
    %361 = arith.mulf %356, %360 : vector<8x32xf32>
    %c40 = arith.constant 40 : index
    %c0_126 = arith.constant 0 : index
    %362 = vector.load %arg17[%c40, %c0_126] : memref<64x128xf32, #tpu.memory_space<vmem>>, vector<8x128xf32>
    %cst_127 = arith.constant dense<0.000000e+00> : vector<8x128xf32>
    %363 = tpu.matmul %326, %15, %cst_127 {dimension_numbers = #tpu.dot_dimension_numbers<[1], [0], [0], [1], [0, 0, 1, 1], [], []>} : vector<8x32xf32>, vector<32x128xf32>, vector<8x128xf32> -> vector<8x128xf32>
    %364 = arith.addf %362, %363 : vector<8x128xf32>
    %365 = vector.extract_strided_slice %364 {offsets = [0, 0], sizes = [8, 32], strides = [1, 1]} : vector<8x128xf32> to vector<8x32xf32>
    %cst_128 = arith.constant 5.000000e-01 : f32
    %366 = vector.broadcast %cst_128 : f32 to vector<8x32xf32>
    %367 = arith.mulf %366, %365 : vector<8x32xf32>
    %368 = math.tanh %367 : vector<8x32xf32>
    %cst_129 = arith.constant 5.000000e-01 : f32
    %369 = vector.broadcast %cst_129 : f32 to vector<8x32xf32>
    %370 = arith.mulf %369, %368 : vector<8x32xf32>
    %cst_130 = arith.constant 5.000000e-01 : f32
    %371 = vector.broadcast %cst_130 : f32 to vector<8x32xf32>
    %372 = arith.addf %370, %371 : vector<8x32xf32>
    %373 = vector.extract_strided_slice %364 {offsets = [0, 32], sizes = [8, 32], strides = [1, 1]} : vector<8x128xf32> to vector<8x32xf32>
    %cst_131 = arith.constant 5.000000e-01 : f32
    %374 = vector.broadcast %cst_131 : f32 to vector<8x32xf32>
    %375 = arith.mulf %374, %373 : vector<8x32xf32>
    %376 = math.tanh %375 : vector<8x32xf32>
    %cst_132 = arith.constant 5.000000e-01 : f32
    %377 = vector.broadcast %cst_132 : f32 to vector<8x32xf32>
    %378 = arith.mulf %377, %376 : vector<8x32xf32>
    %cst_133 = arith.constant 5.000000e-01 : f32
    %379 = vector.broadcast %cst_133 : f32 to vector<8x32xf32>
    %380 = arith.addf %378, %379 : vector<8x32xf32>
    %381 = vector.extract_strided_slice %364 {offsets = [0, 64], sizes = [8, 32], strides = [1, 1]} : vector<8x128xf32> to vector<8x32xf32>
    %382 = math.tanh %381 : vector<8x32xf32>
    %383 = vector.extract_strided_slice %364 {offsets = [0, 96], sizes = [8, 32], strides = [1, 1]} : vector<8x128xf32> to vector<8x32xf32>
    %cst_134 = arith.constant 5.000000e-01 : f32
    %384 = vector.broadcast %cst_134 : f32 to vector<8x32xf32>
    %385 = arith.mulf %384, %383 : vector<8x32xf32>
    %386 = math.tanh %385 : vector<8x32xf32>
    %cst_135 = arith.constant 5.000000e-01 : f32
    %387 = vector.broadcast %cst_135 : f32 to vector<8x32xf32>
    %388 = arith.mulf %387, %386 : vector<8x32xf32>
    %cst_136 = arith.constant 5.000000e-01 : f32
    %389 = vector.broadcast %cst_136 : f32 to vector<8x32xf32>
    %390 = arith.addf %388, %389 : vector<8x32xf32>
    %391 = arith.mulf %380, %324 : vector<8x32xf32>
    %392 = arith.mulf %372, %382 : vector<8x32xf32>
    %393 = arith.addf %391, %392 : vector<8x32xf32>
    %394 = math.tanh %393 : vector<8x32xf32>
    %395 = arith.mulf %390, %394 : vector<8x32xf32>
    %396 = tpu.concatenate %395, %361 in 1 : vector<8x32xf32>, vector<8x32xf32> -> vector<8x64xf32>
    %cst_137 = arith.constant dense<0.000000e+00> : vector<8x128xf32>
    %397 = tpu.matmul %396, %16, %cst_137 {dimension_numbers = #tpu.dot_dimension_numbers<[1], [0], [0], [1], [0, 0, 1, 1], [], []>} : vector<8x64xf32>, vector<64x128xf32>, vector<8x128xf32> -> vector<8x128xf32>
    %398 = vector.broadcast %17 : vector<1x128xf32> to vector<8x128xf32>
    %399 = arith.addf %397, %398 : vector<8x128xf32>
    %400 = vector.extract_strided_slice %399 {offsets = [0, 0], sizes = [8, 32], strides = [1, 1]} : vector<8x128xf32> to vector<8x32xf32>
    %cst_138 = arith.constant 5.000000e-01 : f32
    %401 = vector.broadcast %cst_138 : f32 to vector<8x32xf32>
    %402 = arith.mulf %401, %400 : vector<8x32xf32>
    %403 = math.tanh %402 : vector<8x32xf32>
    %cst_139 = arith.constant 5.000000e-01 : f32
    %404 = vector.broadcast %cst_139 : f32 to vector<8x32xf32>
    %405 = arith.mulf %404, %403 : vector<8x32xf32>
    %cst_140 = arith.constant 5.000000e-01 : f32
    %406 = vector.broadcast %cst_140 : f32 to vector<8x32xf32>
    %407 = arith.addf %405, %406 : vector<8x32xf32>
    %408 = vector.extract_strided_slice %399 {offsets = [0, 32], sizes = [8, 32], strides = [1, 1]} : vector<8x128xf32> to vector<8x32xf32>
    %cst_141 = arith.constant 5.000000e-01 : f32
    %409 = vector.broadcast %cst_141 : f32 to vector<8x32xf32>
    %410 = arith.mulf %409, %408 : vector<8x32xf32>
    %411 = math.tanh %410 : vector<8x32xf32>
    %cst_142 = arith.constant 5.000000e-01 : f32
    %412 = vector.broadcast %cst_142 : f32 to vector<8x32xf32>
    %413 = arith.mulf %412, %411 : vector<8x32xf32>
    %cst_143 = arith.constant 5.000000e-01 : f32
    %414 = vector.broadcast %cst_143 : f32 to vector<8x32xf32>
    %415 = arith.addf %413, %414 : vector<8x32xf32>
    %416 = vector.extract_strided_slice %399 {offsets = [0, 64], sizes = [8, 32], strides = [1, 1]} : vector<8x128xf32> to vector<8x32xf32>
    %417 = math.tanh %416 : vector<8x32xf32>
    %418 = vector.extract_strided_slice %399 {offsets = [0, 96], sizes = [8, 32], strides = [1, 1]} : vector<8x128xf32> to vector<8x32xf32>
    %cst_144 = arith.constant 5.000000e-01 : f32
    %419 = vector.broadcast %cst_144 : f32 to vector<8x32xf32>
    %420 = arith.mulf %419, %418 : vector<8x32xf32>
    %421 = math.tanh %420 : vector<8x32xf32>
    %cst_145 = arith.constant 5.000000e-01 : f32
    %422 = vector.broadcast %cst_145 : f32 to vector<8x32xf32>
    %423 = arith.mulf %422, %421 : vector<8x32xf32>
    %cst_146 = arith.constant 5.000000e-01 : f32
    %424 = vector.broadcast %cst_146 : f32 to vector<8x32xf32>
    %425 = arith.addf %423, %424 : vector<8x32xf32>
    %426 = arith.mulf %415, %359 : vector<8x32xf32>
    %427 = arith.mulf %407, %417 : vector<8x32xf32>
    %428 = arith.addf %426, %427 : vector<8x32xf32>
    %429 = math.tanh %428 : vector<8x32xf32>
    %430 = arith.mulf %425, %429 : vector<8x32xf32>
    %c48 = arith.constant 48 : index
    %c0_147 = arith.constant 0 : index
    %431 = vector.load %arg17[%c48, %c0_147] : memref<64x128xf32, #tpu.memory_space<vmem>>, vector<8x128xf32>
    %cst_148 = arith.constant dense<0.000000e+00> : vector<8x128xf32>
    %432 = tpu.matmul %395, %15, %cst_148 {dimension_numbers = #tpu.dot_dimension_numbers<[1], [0], [0], [1], [0, 0, 1, 1], [], []>} : vector<8x32xf32>, vector<32x128xf32>, vector<8x128xf32> -> vector<8x128xf32>
    %433 = arith.addf %431, %432 : vector<8x128xf32>
    %434 = vector.extract_strided_slice %433 {offsets = [0, 0], sizes = [8, 32], strides = [1, 1]} : vector<8x128xf32> to vector<8x32xf32>
    %cst_149 = arith.constant 5.000000e-01 : f32
    %435 = vector.broadcast %cst_149 : f32 to vector<8x32xf32>
    %436 = arith.mulf %435, %434 : vector<8x32xf32>
    %437 = math.tanh %436 : vector<8x32xf32>
    %cst_150 = arith.constant 5.000000e-01 : f32
    %438 = vector.broadcast %cst_150 : f32 to vector<8x32xf32>
    %439 = arith.mulf %438, %437 : vector<8x32xf32>
    %cst_151 = arith.constant 5.000000e-01 : f32
    %440 = vector.broadcast %cst_151 : f32 to vector<8x32xf32>
    %441 = arith.addf %439, %440 : vector<8x32xf32>
    %442 = vector.extract_strided_slice %433 {offsets = [0, 32], sizes = [8, 32], strides = [1, 1]} : vector<8x128xf32> to vector<8x32xf32>
    %cst_152 = arith.constant 5.000000e-01 : f32
    %443 = vector.broadcast %cst_152 : f32 to vector<8x32xf32>
    %444 = arith.mulf %443, %442 : vector<8x32xf32>
    %445 = math.tanh %444 : vector<8x32xf32>
    %cst_153 = arith.constant 5.000000e-01 : f32
    %446 = vector.broadcast %cst_153 : f32 to vector<8x32xf32>
    %447 = arith.mulf %446, %445 : vector<8x32xf32>
    %cst_154 = arith.constant 5.000000e-01 : f32
    %448 = vector.broadcast %cst_154 : f32 to vector<8x32xf32>
    %449 = arith.addf %447, %448 : vector<8x32xf32>
    %450 = vector.extract_strided_slice %433 {offsets = [0, 64], sizes = [8, 32], strides = [1, 1]} : vector<8x128xf32> to vector<8x32xf32>
    %451 = math.tanh %450 : vector<8x32xf32>
    %452 = vector.extract_strided_slice %433 {offsets = [0, 96], sizes = [8, 32], strides = [1, 1]} : vector<8x128xf32> to vector<8x32xf32>
    %cst_155 = arith.constant 5.000000e-01 : f32
    %453 = vector.broadcast %cst_155 : f32 to vector<8x32xf32>
    %454 = arith.mulf %453, %452 : vector<8x32xf32>
    %455 = math.tanh %454 : vector<8x32xf32>
    %cst_156 = arith.constant 5.000000e-01 : f32
    %456 = vector.broadcast %cst_156 : f32 to vector<8x32xf32>
    %457 = arith.mulf %456, %455 : vector<8x32xf32>
    %cst_157 = arith.constant 5.000000e-01 : f32
    %458 = vector.broadcast %cst_157 : f32 to vector<8x32xf32>
    %459 = arith.addf %457, %458 : vector<8x32xf32>
    %460 = arith.mulf %449, %393 : vector<8x32xf32>
    %461 = arith.mulf %441, %451 : vector<8x32xf32>
    %462 = arith.addf %460, %461 : vector<8x32xf32>
    %463 = math.tanh %462 : vector<8x32xf32>
    %464 = arith.mulf %459, %463 : vector<8x32xf32>
    %465 = tpu.concatenate %464, %430 in 1 : vector<8x32xf32>, vector<8x32xf32> -> vector<8x64xf32>
    %cst_158 = arith.constant dense<0.000000e+00> : vector<8x128xf32>
    %466 = tpu.matmul %465, %16, %cst_158 {dimension_numbers = #tpu.dot_dimension_numbers<[1], [0], [0], [1], [0, 0, 1, 1], [], []>} : vector<8x64xf32>, vector<64x128xf32>, vector<8x128xf32> -> vector<8x128xf32>
    %467 = vector.broadcast %17 : vector<1x128xf32> to vector<8x128xf32>
    %468 = arith.addf %466, %467 : vector<8x128xf32>
    %469 = vector.extract_strided_slice %468 {offsets = [0, 0], sizes = [8, 32], strides = [1, 1]} : vector<8x128xf32> to vector<8x32xf32>
    %cst_159 = arith.constant 5.000000e-01 : f32
    %470 = vector.broadcast %cst_159 : f32 to vector<8x32xf32>
    %471 = arith.mulf %470, %469 : vector<8x32xf32>
    %472 = math.tanh %471 : vector<8x32xf32>
    %cst_160 = arith.constant 5.000000e-01 : f32
    %473 = vector.broadcast %cst_160 : f32 to vector<8x32xf32>
    %474 = arith.mulf %473, %472 : vector<8x32xf32>
    %cst_161 = arith.constant 5.000000e-01 : f32
    %475 = vector.broadcast %cst_161 : f32 to vector<8x32xf32>
    %476 = arith.addf %474, %475 : vector<8x32xf32>
    %477 = vector.extract_strided_slice %468 {offsets = [0, 32], sizes = [8, 32], strides = [1, 1]} : vector<8x128xf32> to vector<8x32xf32>
    %cst_162 = arith.constant 5.000000e-01 : f32
    %478 = vector.broadcast %cst_162 : f32 to vector<8x32xf32>
    %479 = arith.mulf %478, %477 : vector<8x32xf32>
    %480 = math.tanh %479 : vector<8x32xf32>
    %cst_163 = arith.constant 5.000000e-01 : f32
    %481 = vector.broadcast %cst_163 : f32 to vector<8x32xf32>
    %482 = arith.mulf %481, %480 : vector<8x32xf32>
    %cst_164 = arith.constant 5.000000e-01 : f32
    %483 = vector.broadcast %cst_164 : f32 to vector<8x32xf32>
    %484 = arith.addf %482, %483 : vector<8x32xf32>
    %485 = vector.extract_strided_slice %468 {offsets = [0, 64], sizes = [8, 32], strides = [1, 1]} : vector<8x128xf32> to vector<8x32xf32>
    %486 = math.tanh %485 : vector<8x32xf32>
    %487 = vector.extract_strided_slice %468 {offsets = [0, 96], sizes = [8, 32], strides = [1, 1]} : vector<8x128xf32> to vector<8x32xf32>
    %cst_165 = arith.constant 5.000000e-01 : f32
    %488 = vector.broadcast %cst_165 : f32 to vector<8x32xf32>
    %489 = arith.mulf %488, %487 : vector<8x32xf32>
    %490 = math.tanh %489 : vector<8x32xf32>
    %cst_166 = arith.constant 5.000000e-01 : f32
    %491 = vector.broadcast %cst_166 : f32 to vector<8x32xf32>
    %492 = arith.mulf %491, %490 : vector<8x32xf32>
    %cst_167 = arith.constant 5.000000e-01 : f32
    %493 = vector.broadcast %cst_167 : f32 to vector<8x32xf32>
    %494 = arith.addf %492, %493 : vector<8x32xf32>
    %495 = arith.mulf %484, %428 : vector<8x32xf32>
    %496 = arith.mulf %476, %486 : vector<8x32xf32>
    %497 = arith.addf %495, %496 : vector<8x32xf32>
    %498 = math.tanh %497 : vector<8x32xf32>
    %499 = arith.mulf %494, %498 : vector<8x32xf32>
    %c56 = arith.constant 56 : index
    %c0_168 = arith.constant 0 : index
    %500 = vector.load %arg17[%c56, %c0_168] : memref<64x128xf32, #tpu.memory_space<vmem>>, vector<8x128xf32>
    %cst_169 = arith.constant dense<0.000000e+00> : vector<8x128xf32>
    %501 = tpu.matmul %464, %15, %cst_169 {dimension_numbers = #tpu.dot_dimension_numbers<[1], [0], [0], [1], [0, 0, 1, 1], [], []>} : vector<8x32xf32>, vector<32x128xf32>, vector<8x128xf32> -> vector<8x128xf32>
    %502 = arith.addf %500, %501 : vector<8x128xf32>
    %503 = vector.extract_strided_slice %502 {offsets = [0, 0], sizes = [8, 32], strides = [1, 1]} : vector<8x128xf32> to vector<8x32xf32>
    %cst_170 = arith.constant 5.000000e-01 : f32
    %504 = vector.broadcast %cst_170 : f32 to vector<8x32xf32>
    %505 = arith.mulf %504, %503 : vector<8x32xf32>
    %506 = math.tanh %505 : vector<8x32xf32>
    %cst_171 = arith.constant 5.000000e-01 : f32
    %507 = vector.broadcast %cst_171 : f32 to vector<8x32xf32>
    %508 = arith.mulf %507, %506 : vector<8x32xf32>
    %cst_172 = arith.constant 5.000000e-01 : f32
    %509 = vector.broadcast %cst_172 : f32 to vector<8x32xf32>
    %510 = arith.addf %508, %509 : vector<8x32xf32>
    %511 = vector.extract_strided_slice %502 {offsets = [0, 32], sizes = [8, 32], strides = [1, 1]} : vector<8x128xf32> to vector<8x32xf32>
    %cst_173 = arith.constant 5.000000e-01 : f32
    %512 = vector.broadcast %cst_173 : f32 to vector<8x32xf32>
    %513 = arith.mulf %512, %511 : vector<8x32xf32>
    %514 = math.tanh %513 : vector<8x32xf32>
    %cst_174 = arith.constant 5.000000e-01 : f32
    %515 = vector.broadcast %cst_174 : f32 to vector<8x32xf32>
    %516 = arith.mulf %515, %514 : vector<8x32xf32>
    %cst_175 = arith.constant 5.000000e-01 : f32
    %517 = vector.broadcast %cst_175 : f32 to vector<8x32xf32>
    %518 = arith.addf %516, %517 : vector<8x32xf32>
    %519 = vector.extract_strided_slice %502 {offsets = [0, 64], sizes = [8, 32], strides = [1, 1]} : vector<8x128xf32> to vector<8x32xf32>
    %520 = math.tanh %519 : vector<8x32xf32>
    %521 = vector.extract_strided_slice %502 {offsets = [0, 96], sizes = [8, 32], strides = [1, 1]} : vector<8x128xf32> to vector<8x32xf32>
    %cst_176 = arith.constant 5.000000e-01 : f32
    %522 = vector.broadcast %cst_176 : f32 to vector<8x32xf32>
    %523 = arith.mulf %522, %521 : vector<8x32xf32>
    %524 = math.tanh %523 : vector<8x32xf32>
    %cst_177 = arith.constant 5.000000e-01 : f32
    %525 = vector.broadcast %cst_177 : f32 to vector<8x32xf32>
    %526 = arith.mulf %525, %524 : vector<8x32xf32>
    %cst_178 = arith.constant 5.000000e-01 : f32
    %527 = vector.broadcast %cst_178 : f32 to vector<8x32xf32>
    %528 = arith.addf %526, %527 : vector<8x32xf32>
    %529 = arith.mulf %518, %462 : vector<8x32xf32>
    %530 = arith.mulf %510, %520 : vector<8x32xf32>
    %531 = arith.addf %529, %530 : vector<8x32xf32>
    %532 = math.tanh %531 : vector<8x32xf32>
    %533 = arith.mulf %528, %532 : vector<8x32xf32>
    %534 = tpu.concatenate %533, %499 in 1 : vector<8x32xf32>, vector<8x32xf32> -> vector<8x64xf32>
    %cst_179 = arith.constant dense<0.000000e+00> : vector<8x128xf32>
    %535 = tpu.matmul %534, %16, %cst_179 {dimension_numbers = #tpu.dot_dimension_numbers<[1], [0], [0], [1], [0, 0, 1, 1], [], []>} : vector<8x64xf32>, vector<64x128xf32>, vector<8x128xf32> -> vector<8x128xf32>
    %536 = vector.broadcast %17 : vector<1x128xf32> to vector<8x128xf32>
    %537 = arith.addf %535, %536 : vector<8x128xf32>
    %538 = vector.extract_strided_slice %537 {offsets = [0, 0], sizes = [8, 32], strides = [1, 1]} : vector<8x128xf32> to vector<8x32xf32>
    %cst_180 = arith.constant 5.000000e-01 : f32
    %539 = vector.broadcast %cst_180 : f32 to vector<8x32xf32>
    %540 = arith.mulf %539, %538 : vector<8x32xf32>
    %541 = math.tanh %540 : vector<8x32xf32>
    %cst_181 = arith.constant 5.000000e-01 : f32
    %542 = vector.broadcast %cst_181 : f32 to vector<8x32xf32>
    %543 = arith.mulf %542, %541 : vector<8x32xf32>
    %cst_182 = arith.constant 5.000000e-01 : f32
    %544 = vector.broadcast %cst_182 : f32 to vector<8x32xf32>
    %545 = arith.addf %543, %544 : vector<8x32xf32>
    %546 = vector.extract_strided_slice %537 {offsets = [0, 32], sizes = [8, 32], strides = [1, 1]} : vector<8x128xf32> to vector<8x32xf32>
    %cst_183 = arith.constant 5.000000e-01 : f32
    %547 = vector.broadcast %cst_183 : f32 to vector<8x32xf32>
    %548 = arith.mulf %547, %546 : vector<8x32xf32>
    %549 = math.tanh %548 : vector<8x32xf32>
    %cst_184 = arith.constant 5.000000e-01 : f32
    %550 = vector.broadcast %cst_184 : f32 to vector<8x32xf32>
    %551 = arith.mulf %550, %549 : vector<8x32xf32>
    %cst_185 = arith.constant 5.000000e-01 : f32
    %552 = vector.broadcast %cst_185 : f32 to vector<8x32xf32>
    %553 = arith.addf %551, %552 : vector<8x32xf32>
    %554 = vector.extract_strided_slice %537 {offsets = [0, 64], sizes = [8, 32], strides = [1, 1]} : vector<8x128xf32> to vector<8x32xf32>
    %555 = math.tanh %554 : vector<8x32xf32>
    %556 = vector.extract_strided_slice %537 {offsets = [0, 96], sizes = [8, 32], strides = [1, 1]} : vector<8x128xf32> to vector<8x32xf32>
    %cst_186 = arith.constant 5.000000e-01 : f32
    %557 = vector.broadcast %cst_186 : f32 to vector<8x32xf32>
    %558 = arith.mulf %557, %556 : vector<8x32xf32>
    %559 = math.tanh %558 : vector<8x32xf32>
    %cst_187 = arith.constant 5.000000e-01 : f32
    %560 = vector.broadcast %cst_187 : f32 to vector<8x32xf32>
    %561 = arith.mulf %560, %559 : vector<8x32xf32>
    %cst_188 = arith.constant 5.000000e-01 : f32
    %562 = vector.broadcast %cst_188 : f32 to vector<8x32xf32>
    %563 = arith.addf %561, %562 : vector<8x32xf32>
    %564 = arith.mulf %553, %497 : vector<8x32xf32>
    %565 = arith.mulf %545, %555 : vector<8x32xf32>
    %566 = arith.addf %564, %565 : vector<8x32xf32>
    %567 = math.tanh %566 : vector<8x32xf32>
    %568 = arith.mulf %563, %567 : vector<8x32xf32>
    %c0_189 = arith.constant 0 : index
    %c0_190 = arith.constant 0 : index
    %569 = vector.load %arg10[%c0_189, %c0_190] : memref<64x256xf32, #tpu.memory_space<vmem>>, vector<64x256xf32>
    %c0_191 = arith.constant 0 : index
    %c0_192 = arith.constant 0 : index
    %570 = vector.load %arg12[%c0_191, %c0_192] : memref<128x256xf32, #tpu.memory_space<vmem>>, vector<128x256xf32>
    %c0_193 = arith.constant 0 : index
    %c0_194 = arith.constant 0 : index
    %571 = vector.load %arg13[%c0_193, %c0_194] : memref<1x256xf32, #tpu.memory_space<vmem>>, vector<1x256xf32>
    %c0_195 = arith.constant 0 : index
    %c0_196 = arith.constant 0 : index
    %572 = vector.load %arg9[%c0_195, %c0_196] : memref<32x256xf32, #tpu.memory_space<vmem>>, vector<32x256xf32>
    %cst_197 = arith.constant dense<0.000000e+00> : vector<8x256xf32>
    %573 = tpu.matmul %568, %572, %cst_197 {dimension_numbers = #tpu.dot_dimension_numbers<[1], [0], [0], [1], [0, 0, 1, 1], [], []>} : vector<8x32xf32>, vector<32x256xf32>, vector<8x256xf32> -> vector<8x256xf32>
    %c0_198 = arith.constant 0 : index
    %c0_199 = arith.constant 0 : index
    %574 = vector.load %arg11[%c0_198, %c0_199] : memref<1x256xf32, #tpu.memory_space<vmem>>, vector<1x256xf32>
    %575 = vector.broadcast %574 : vector<1x256xf32> to vector<8x256xf32>
    %576 = arith.addf %573, %575 : vector<8x256xf32>
    %cst_200 = arith.constant 0.000000e+00 : f32
    %577 = vector.broadcast %cst_200 : f32 to vector<8x64xf32>
    %578 = vector.extract_strided_slice %576 {offsets = [0, 0], sizes = [8, 64], strides = [1, 1]} : vector<8x256xf32> to vector<8x64xf32>
    %cst_201 = arith.constant 5.000000e-01 : f32
    %579 = vector.broadcast %cst_201 : f32 to vector<8x64xf32>
    %580 = arith.mulf %579, %578 : vector<8x64xf32>
    %581 = math.tanh %580 : vector<8x64xf32>
    %cst_202 = arith.constant 5.000000e-01 : f32
    %582 = vector.broadcast %cst_202 : f32 to vector<8x64xf32>
    %583 = arith.mulf %582, %581 : vector<8x64xf32>
    %cst_203 = arith.constant 5.000000e-01 : f32
    %584 = vector.broadcast %cst_203 : f32 to vector<8x64xf32>
    %585 = arith.addf %583, %584 : vector<8x64xf32>
    %586 = vector.extract_strided_slice %576 {offsets = [0, 64], sizes = [8, 64], strides = [1, 1]} : vector<8x256xf32> to vector<8x64xf32>
    %cst_204 = arith.constant 5.000000e-01 : f32
    %587 = vector.broadcast %cst_204 : f32 to vector<8x64xf32>
    %588 = arith.mulf %587, %586 : vector<8x64xf32>
    %589 = math.tanh %588 : vector<8x64xf32>
    %cst_205 = arith.constant 5.000000e-01 : f32
    %590 = vector.broadcast %cst_205 : f32 to vector<8x64xf32>
    %591 = arith.mulf %590, %589 : vector<8x64xf32>
    %cst_206 = arith.constant 5.000000e-01 : f32
    %592 = vector.broadcast %cst_206 : f32 to vector<8x64xf32>
    %593 = arith.addf %591, %592 : vector<8x64xf32>
    %594 = vector.extract_strided_slice %576 {offsets = [0, 128], sizes = [8, 64], strides = [1, 1]} : vector<8x256xf32> to vector<8x64xf32>
    %595 = math.tanh %594 : vector<8x64xf32>
    %596 = vector.extract_strided_slice %576 {offsets = [0, 192], sizes = [8, 64], strides = [1, 1]} : vector<8x256xf32> to vector<8x64xf32>
    %cst_207 = arith.constant 5.000000e-01 : f32
    %597 = vector.broadcast %cst_207 : f32 to vector<8x64xf32>
    %598 = arith.mulf %597, %596 : vector<8x64xf32>
    %599 = math.tanh %598 : vector<8x64xf32>
    %cst_208 = arith.constant 5.000000e-01 : f32
    %600 = vector.broadcast %cst_208 : f32 to vector<8x64xf32>
    %601 = arith.mulf %600, %599 : vector<8x64xf32>
    %cst_209 = arith.constant 5.000000e-01 : f32
    %602 = vector.broadcast %cst_209 : f32 to vector<8x64xf32>
    %603 = arith.addf %601, %602 : vector<8x64xf32>
    %604 = arith.mulf %593, %577 : vector<8x64xf32>
    %605 = arith.mulf %585, %595 : vector<8x64xf32>
    %606 = arith.addf %604, %605 : vector<8x64xf32>
    %607 = math.tanh %606 : vector<8x64xf32>
    %608 = arith.mulf %603, %607 : vector<8x64xf32>
    %609 = tpu.concatenate %608, %577 in 1 : vector<8x64xf32>, vector<8x64xf32> -> vector<8x128xf32>
    %cst_210 = arith.constant dense<0.000000e+00> : vector<8x256xf32>
    %610 = tpu.matmul %609, %570, %cst_210 {dimension_numbers = #tpu.dot_dimension_numbers<[1], [0], [0], [1], [0, 0, 1, 1], [], []>} : vector<8x128xf32>, vector<128x256xf32>, vector<8x256xf32> -> vector<8x256xf32>
    %611 = vector.broadcast %571 : vector<1x256xf32> to vector<8x256xf32>
    %612 = arith.addf %610, %611 : vector<8x256xf32>
    %613 = vector.extract_strided_slice %612 {offsets = [0, 0], sizes = [8, 64], strides = [1, 1]} : vector<8x256xf32> to vector<8x64xf32>
    %cst_211 = arith.constant 5.000000e-01 : f32
    %614 = vector.broadcast %cst_211 : f32 to vector<8x64xf32>
    %615 = arith.mulf %614, %613 : vector<8x64xf32>
    %616 = math.tanh %615 : vector<8x64xf32>
    %cst_212 = arith.constant 5.000000e-01 : f32
    %617 = vector.broadcast %cst_212 : f32 to vector<8x64xf32>
    %618 = arith.mulf %617, %616 : vector<8x64xf32>
    %cst_213 = arith.constant 5.000000e-01 : f32
    %619 = vector.broadcast %cst_213 : f32 to vector<8x64xf32>
    %620 = arith.addf %618, %619 : vector<8x64xf32>
    %621 = vector.extract_strided_slice %612 {offsets = [0, 64], sizes = [8, 64], strides = [1, 1]} : vector<8x256xf32> to vector<8x64xf32>
    %cst_214 = arith.constant 5.000000e-01 : f32
    %622 = vector.broadcast %cst_214 : f32 to vector<8x64xf32>
    %623 = arith.mulf %622, %621 : vector<8x64xf32>
    %624 = math.tanh %623 : vector<8x64xf32>
    %cst_215 = arith.constant 5.000000e-01 : f32
    %625 = vector.broadcast %cst_215 : f32 to vector<8x64xf32>
    %626 = arith.mulf %625, %624 : vector<8x64xf32>
    %cst_216 = arith.constant 5.000000e-01 : f32
    %627 = vector.broadcast %cst_216 : f32 to vector<8x64xf32>
    %628 = arith.addf %626, %627 : vector<8x64xf32>
    %629 = vector.extract_strided_slice %612 {offsets = [0, 128], sizes = [8, 64], strides = [1, 1]} : vector<8x256xf32> to vector<8x64xf32>
    %630 = math.tanh %629 : vector<8x64xf32>
    %631 = vector.extract_strided_slice %612 {offsets = [0, 192], sizes = [8, 64], strides = [1, 1]} : vector<8x256xf32> to vector<8x64xf32>
    %cst_217 = arith.constant 5.000000e-01 : f32
    %632 = vector.broadcast %cst_217 : f32 to vector<8x64xf32>
    %633 = arith.mulf %632, %631 : vector<8x64xf32>
    %634 = math.tanh %633 : vector<8x64xf32>
    %cst_218 = arith.constant 5.000000e-01 : f32
    %635 = vector.broadcast %cst_218 : f32 to vector<8x64xf32>
    %636 = arith.mulf %635, %634 : vector<8x64xf32>
    %cst_219 = arith.constant 5.000000e-01 : f32
    %637 = vector.broadcast %cst_219 : f32 to vector<8x64xf32>
    %638 = arith.addf %636, %637 : vector<8x64xf32>
    %639 = arith.mulf %628, %577 : vector<8x64xf32>
    %640 = arith.mulf %620, %630 : vector<8x64xf32>
    %641 = arith.addf %639, %640 : vector<8x64xf32>
    %642 = math.tanh %641 : vector<8x64xf32>
    %643 = arith.mulf %638, %642 : vector<8x64xf32>
    %c0_220 = arith.constant 0 : index
    %c0_221 = arith.constant 0 : index
    %644 = vector.load %arg18[%c0_220, %c0_221] : memref<64x64xf32, #tpu.memory_space<vmem>>, vector<8x64xf32>
    tpu.vector_store %arg18[%c0_220, %c0_221], %643 {strides = array<i32>} : memref<64x64xf32, #tpu.memory_space<vmem>>, vector<8x64xf32>,
    %cst_222 = arith.constant dense<0.000000e+00> : vector<8x256xf32>
    %645 = tpu.matmul %608, %569, %cst_222 {dimension_numbers = #tpu.dot_dimension_numbers<[1], [0], [0], [1], [0, 0, 1, 1], [], []>} : vector<8x64xf32>, vector<64x256xf32>, vector<8x256xf32> -> vector<8x256xf32>
    %646 = arith.addf %576, %645 : vector<8x256xf32>
    %647 = vector.extract_strided_slice %646 {offsets = [0, 0], sizes = [8, 64], strides = [1, 1]} : vector<8x256xf32> to vector<8x64xf32>
    %cst_223 = arith.constant 5.000000e-01 : f32
    %648 = vector.broadcast %cst_223 : f32 to vector<8x64xf32>
    %649 = arith.mulf %648, %647 : vector<8x64xf32>
    %650 = math.tanh %649 : vector<8x64xf32>
    %cst_224 = arith.constant 5.000000e-01 : f32
    %651 = vector.broadcast %cst_224 : f32 to vector<8x64xf32>
    %652 = arith.mulf %651, %650 : vector<8x64xf32>
    %cst_225 = arith.constant 5.000000e-01 : f32
    %653 = vector.broadcast %cst_225 : f32 to vector<8x64xf32>
    %654 = arith.addf %652, %653 : vector<8x64xf32>
    %655 = vector.extract_strided_slice %646 {offsets = [0, 64], sizes = [8, 64], strides = [1, 1]} : vector<8x256xf32> to vector<8x64xf32>
    %cst_226 = arith.constant 5.000000e-01 : f32
    %656 = vector.broadcast %cst_226 : f32 to vector<8x64xf32>
    %657 = arith.mulf %656, %655 : vector<8x64xf32>
    %658 = math.tanh %657 : vector<8x64xf32>
    %cst_227 = arith.constant 5.000000e-01 : f32
    %659 = vector.broadcast %cst_227 : f32 to vector<8x64xf32>
    %660 = arith.mulf %659, %658 : vector<8x64xf32>
    %cst_228 = arith.constant 5.000000e-01 : f32
    %661 = vector.broadcast %cst_228 : f32 to vector<8x64xf32>
    %662 = arith.addf %660, %661 : vector<8x64xf32>
    %663 = vector.extract_strided_slice %646 {offsets = [0, 128], sizes = [8, 64], strides = [1, 1]} : vector<8x256xf32> to vector<8x64xf32>
    %664 = math.tanh %663 : vector<8x64xf32>
    %665 = vector.extract_strided_slice %646 {offsets = [0, 192], sizes = [8, 64], strides = [1, 1]} : vector<8x256xf32> to vector<8x64xf32>
    %cst_229 = arith.constant 5.000000e-01 : f32
    %666 = vector.broadcast %cst_229 : f32 to vector<8x64xf32>
    %667 = arith.mulf %666, %665 : vector<8x64xf32>
    %668 = math.tanh %667 : vector<8x64xf32>
    %cst_230 = arith.constant 5.000000e-01 : f32
    %669 = vector.broadcast %cst_230 : f32 to vector<8x64xf32>
    %670 = arith.mulf %669, %668 : vector<8x64xf32>
    %cst_231 = arith.constant 5.000000e-01 : f32
    %671 = vector.broadcast %cst_231 : f32 to vector<8x64xf32>
    %672 = arith.addf %670, %671 : vector<8x64xf32>
    %673 = arith.mulf %662, %606 : vector<8x64xf32>
    %674 = arith.mulf %654, %664 : vector<8x64xf32>
    %675 = arith.addf %673, %674 : vector<8x64xf32>
    %676 = math.tanh %675 : vector<8x64xf32>
    %677 = arith.mulf %672, %676 : vector<8x64xf32>
    %678 = tpu.concatenate %677, %643 in 1 : vector<8x64xf32>, vector<8x64xf32> -> vector<8x128xf32>
    %cst_232 = arith.constant dense<0.000000e+00> : vector<8x256xf32>
    %679 = tpu.matmul %678, %570, %cst_232 {dimension_numbers = #tpu.dot_dimension_numbers<[1], [0], [0], [1], [0, 0, 1, 1], [], []>} : vector<8x128xf32>, vector<128x256xf32>, vector<8x256xf32> -> vector<8x256xf32>
    %680 = vector.broadcast %571 : vector<1x256xf32> to vector<8x256xf32>
    %681 = arith.addf %679, %680 : vector<8x256xf32>
    %682 = vector.extract_strided_slice %681 {offsets = [0, 0], sizes = [8, 64], strides = [1, 1]} : vector<8x256xf32> to vector<8x64xf32>
    %cst_233 = arith.constant 5.000000e-01 : f32
    %683 = vector.broadcast %cst_233 : f32 to vector<8x64xf32>
    %684 = arith.mulf %683, %682 : vector<8x64xf32>
    %685 = math.tanh %684 : vector<8x64xf32>
    %cst_234 = arith.constant 5.000000e-01 : f32
    %686 = vector.broadcast %cst_234 : f32 to vector<8x64xf32>
    %687 = arith.mulf %686, %685 : vector<8x64xf32>
    %cst_235 = arith.constant 5.000000e-01 : f32
    %688 = vector.broadcast %cst_235 : f32 to vector<8x64xf32>
    %689 = arith.addf %687, %688 : vector<8x64xf32>
    %690 = vector.extract_strided_slice %681 {offsets = [0, 64], sizes = [8, 64], strides = [1, 1]} : vector<8x256xf32> to vector<8x64xf32>
    %cst_236 = arith.constant 5.000000e-01 : f32
    %691 = vector.broadcast %cst_236 : f32 to vector<8x64xf32>
    %692 = arith.mulf %691, %690 : vector<8x64xf32>
    %693 = math.tanh %692 : vector<8x64xf32>
    %cst_237 = arith.constant 5.000000e-01 : f32
    %694 = vector.broadcast %cst_237 : f32 to vector<8x64xf32>
    %695 = arith.mulf %694, %693 : vector<8x64xf32>
    %cst_238 = arith.constant 5.000000e-01 : f32
    %696 = vector.broadcast %cst_238 : f32 to vector<8x64xf32>
    %697 = arith.addf %695, %696 : vector<8x64xf32>
    %698 = vector.extract_strided_slice %681 {offsets = [0, 128], sizes = [8, 64], strides = [1, 1]} : vector<8x256xf32> to vector<8x64xf32>
    %699 = math.tanh %698 : vector<8x64xf32>
    %700 = vector.extract_strided_slice %681 {offsets = [0, 192], sizes = [8, 64], strides = [1, 1]} : vector<8x256xf32> to vector<8x64xf32>
    %cst_239 = arith.constant 5.000000e-01 : f32
    %701 = vector.broadcast %cst_239 : f32 to vector<8x64xf32>
    %702 = arith.mulf %701, %700 : vector<8x64xf32>
    %703 = math.tanh %702 : vector<8x64xf32>
    %cst_240 = arith.constant 5.000000e-01 : f32
    %704 = vector.broadcast %cst_240 : f32 to vector<8x64xf32>
    %705 = arith.mulf %704, %703 : vector<8x64xf32>
    %cst_241 = arith.constant 5.000000e-01 : f32
    %706 = vector.broadcast %cst_241 : f32 to vector<8x64xf32>
    %707 = arith.addf %705, %706 : vector<8x64xf32>
    %708 = arith.mulf %697, %641 : vector<8x64xf32>
    %709 = arith.mulf %689, %699 : vector<8x64xf32>
    %710 = arith.addf %708, %709 : vector<8x64xf32>
    %711 = math.tanh %710 : vector<8x64xf32>
    %712 = arith.mulf %707, %711 : vector<8x64xf32>
    %c8_242 = arith.constant 8 : index
    %c0_243 = arith.constant 0 : index
    %713 = vector.load %arg18[%c8_242, %c0_243] : memref<64x64xf32, #tpu.memory_space<vmem>>, vector<8x64xf32>
    tpu.vector_store %arg18[%c8_242, %c0_243], %712 {strides = array<i32>} : memref<64x64xf32, #tpu.memory_space<vmem>>, vector<8x64xf32>,
    %cst_244 = arith.constant dense<0.000000e+00> : vector<8x256xf32>
    %714 = tpu.matmul %677, %569, %cst_244 {dimension_numbers = #tpu.dot_dimension_numbers<[1], [0], [0], [1], [0, 0, 1, 1], [], []>} : vector<8x64xf32>, vector<64x256xf32>, vector<8x256xf32> -> vector<8x256xf32>
    %715 = arith.addf %576, %714 : vector<8x256xf32>
    %716 = vector.extract_strided_slice %715 {offsets = [0, 0], sizes = [8, 64], strides = [1, 1]} : vector<8x256xf32> to vector<8x64xf32>
    %cst_245 = arith.constant 5.000000e-01 : f32
    %717 = vector.broadcast %cst_245 : f32 to vector<8x64xf32>
    %718 = arith.mulf %717, %716 : vector<8x64xf32>
    %719 = math.tanh %718 : vector<8x64xf32>
    %cst_246 = arith.constant 5.000000e-01 : f32
    %720 = vector.broadcast %cst_246 : f32 to vector<8x64xf32>
    %721 = arith.mulf %720, %719 : vector<8x64xf32>
    %cst_247 = arith.constant 5.000000e-01 : f32
    %722 = vector.broadcast %cst_247 : f32 to vector<8x64xf32>
    %723 = arith.addf %721, %722 : vector<8x64xf32>
    %724 = vector.extract_strided_slice %715 {offsets = [0, 64], sizes = [8, 64], strides = [1, 1]} : vector<8x256xf32> to vector<8x64xf32>
    %cst_248 = arith.constant 5.000000e-01 : f32
    %725 = vector.broadcast %cst_248 : f32 to vector<8x64xf32>
    %726 = arith.mulf %725, %724 : vector<8x64xf32>
    %727 = math.tanh %726 : vector<8x64xf32>
    %cst_249 = arith.constant 5.000000e-01 : f32
    %728 = vector.broadcast %cst_249 : f32 to vector<8x64xf32>
    %729 = arith.mulf %728, %727 : vector<8x64xf32>
    %cst_250 = arith.constant 5.000000e-01 : f32
    %730 = vector.broadcast %cst_250 : f32 to vector<8x64xf32>
    %731 = arith.addf %729, %730 : vector<8x64xf32>
    %732 = vector.extract_strided_slice %715 {offsets = [0, 128], sizes = [8, 64], strides = [1, 1]} : vector<8x256xf32> to vector<8x64xf32>
    %733 = math.tanh %732 : vector<8x64xf32>
    %734 = vector.extract_strided_slice %715 {offsets = [0, 192], sizes = [8, 64], strides = [1, 1]} : vector<8x256xf32> to vector<8x64xf32>
    %cst_251 = arith.constant 5.000000e-01 : f32
    %735 = vector.broadcast %cst_251 : f32 to vector<8x64xf32>
    %736 = arith.mulf %735, %734 : vector<8x64xf32>
    %737 = math.tanh %736 : vector<8x64xf32>
    %cst_252 = arith.constant 5.000000e-01 : f32
    %738 = vector.broadcast %cst_252 : f32 to vector<8x64xf32>
    %739 = arith.mulf %738, %737 : vector<8x64xf32>
    %cst_253 = arith.constant 5.000000e-01 : f32
    %740 = vector.broadcast %cst_253 : f32 to vector<8x64xf32>
    %741 = arith.addf %739, %740 : vector<8x64xf32>
    %742 = arith.mulf %731, %675 : vector<8x64xf32>
    %743 = arith.mulf %723, %733 : vector<8x64xf32>
    %744 = arith.addf %742, %743 : vector<8x64xf32>
    %745 = math.tanh %744 : vector<8x64xf32>
    %746 = arith.mulf %741, %745 : vector<8x64xf32>
    %747 = tpu.concatenate %746, %712 in 1 : vector<8x64xf32>, vector<8x64xf32> -> vector<8x128xf32>
    %cst_254 = arith.constant dense<0.000000e+00> : vector<8x256xf32>
    %748 = tpu.matmul %747, %570, %cst_254 {dimension_numbers = #tpu.dot_dimension_numbers<[1], [0], [0], [1], [0, 0, 1, 1], [], []>} : vector<8x128xf32>, vector<128x256xf32>, vector<8x256xf32> -> vector<8x256xf32>
    %749 = vector.broadcast %571 : vector<1x256xf32> to vector<8x256xf32>
    %750 = arith.addf %748, %749 : vector<8x256xf32>
    %751 = vector.extract_strided_slice %750 {offsets = [0, 0], sizes = [8, 64], strides = [1, 1]} : vector<8x256xf32> to vector<8x64xf32>
    %cst_255 = arith.constant 5.000000e-01 : f32
    %752 = vector.broadcast %cst_255 : f32 to vector<8x64xf32>
    %753 = arith.mulf %752, %751 : vector<8x64xf32>
    %754 = math.tanh %753 : vector<8x64xf32>
    %cst_256 = arith.constant 5.000000e-01 : f32
    %755 = vector.broadcast %cst_256 : f32 to vector<8x64xf32>
    %756 = arith.mulf %755, %754 : vector<8x64xf32>
    %cst_257 = arith.constant 5.000000e-01 : f32
    %757 = vector.broadcast %cst_257 : f32 to vector<8x64xf32>
    %758 = arith.addf %756, %757 : vector<8x64xf32>
    %759 = vector.extract_strided_slice %750 {offsets = [0, 64], sizes = [8, 64], strides = [1, 1]} : vector<8x256xf32> to vector<8x64xf32>
    %cst_258 = arith.constant 5.000000e-01 : f32
    %760 = vector.broadcast %cst_258 : f32 to vector<8x64xf32>
    %761 = arith.mulf %760, %759 : vector<8x64xf32>
    %762 = math.tanh %761 : vector<8x64xf32>
    %cst_259 = arith.constant 5.000000e-01 : f32
    %763 = vector.broadcast %cst_259 : f32 to vector<8x64xf32>
    %764 = arith.mulf %763, %762 : vector<8x64xf32>
    %cst_260 = arith.constant 5.000000e-01 : f32
    %765 = vector.broadcast %cst_260 : f32 to vector<8x64xf32>
    %766 = arith.addf %764, %765 : vector<8x64xf32>
    %767 = vector.extract_strided_slice %750 {offsets = [0, 128], sizes = [8, 64], strides = [1, 1]} : vector<8x256xf32> to vector<8x64xf32>
    %768 = math.tanh %767 : vector<8x64xf32>
    %769 = vector.extract_strided_slice %750 {offsets = [0, 192], sizes = [8, 64], strides = [1, 1]} : vector<8x256xf32> to vector<8x64xf32>
    %cst_261 = arith.constant 5.000000e-01 : f32
    %770 = vector.broadcast %cst_261 : f32 to vector<8x64xf32>
    %771 = arith.mulf %770, %769 : vector<8x64xf32>
    %772 = math.tanh %771 : vector<8x64xf32>
    %cst_262 = arith.constant 5.000000e-01 : f32
    %773 = vector.broadcast %cst_262 : f32 to vector<8x64xf32>
    %774 = arith.mulf %773, %772 : vector<8x64xf32>
    %cst_263 = arith.constant 5.000000e-01 : f32
    %775 = vector.broadcast %cst_263 : f32 to vector<8x64xf32>
    %776 = arith.addf %774, %775 : vector<8x64xf32>
    %777 = arith.mulf %766, %710 : vector<8x64xf32>
    %778 = arith.mulf %758, %768 : vector<8x64xf32>
    %779 = arith.addf %777, %778 : vector<8x64xf32>
    %780 = math.tanh %779 : vector<8x64xf32>
    %781 = arith.mulf %776, %780 : vector<8x64xf32>
    %c16_264 = arith.constant 16 : index
    %c0_265 = arith.constant 0 : index
    %782 = vector.load %arg18[%c16_264, %c0_265] : memref<64x64xf32, #tpu.memory_space<vmem>>, vector<8x64xf32>
    tpu.vector_store %arg18[%c16_264, %c0_265], %781 {strides = array<i32>} : memref<64x64xf32, #tpu.memory_space<vmem>>, vector<8x64xf32>,
    %cst_266 = arith.constant dense<0.000000e+00> : vector<8x256xf32>
    %783 = tpu.matmul %746, %569, %cst_266 {dimension_numbers = #tpu.dot_dimension_numbers<[1], [0], [0], [1], [0, 0, 1, 1], [], []>} : vector<8x64xf32>, vector<64x256xf32>, vector<8x256xf32> -> vector<8x256xf32>
    %784 = arith.addf %576, %783 : vector<8x256xf32>
    %785 = vector.extract_strided_slice %784 {offsets = [0, 0], sizes = [8, 64], strides = [1, 1]} : vector<8x256xf32> to vector<8x64xf32>
    %cst_267 = arith.constant 5.000000e-01 : f32
    %786 = vector.broadcast %cst_267 : f32 to vector<8x64xf32>
    %787 = arith.mulf %786, %785 : vector<8x64xf32>
    %788 = math.tanh %787 : vector<8x64xf32>
    %cst_268 = arith.constant 5.000000e-01 : f32
    %789 = vector.broadcast %cst_268 : f32 to vector<8x64xf32>
    %790 = arith.mulf %789, %788 : vector<8x64xf32>
    %cst_269 = arith.constant 5.000000e-01 : f32
    %791 = vector.broadcast %cst_269 : f32 to vector<8x64xf32>
    %792 = arith.addf %790, %791 : vector<8x64xf32>
    %793 = vector.extract_strided_slice %784 {offsets = [0, 64], sizes = [8, 64], strides = [1, 1]} : vector<8x256xf32> to vector<8x64xf32>
    %cst_270 = arith.constant 5.000000e-01 : f32
    %794 = vector.broadcast %cst_270 : f32 to vector<8x64xf32>
    %795 = arith.mulf %794, %793 : vector<8x64xf32>
    %796 = math.tanh %795 : vector<8x64xf32>
    %cst_271 = arith.constant 5.000000e-01 : f32
    %797 = vector.broadcast %cst_271 : f32 to vector<8x64xf32>
    %798 = arith.mulf %797, %796 : vector<8x64xf32>
    %cst_272 = arith.constant 5.000000e-01 : f32
    %799 = vector.broadcast %cst_272 : f32 to vector<8x64xf32>
    %800 = arith.addf %798, %799 : vector<8x64xf32>
    %801 = vector.extract_strided_slice %784 {offsets = [0, 128], sizes = [8, 64], strides = [1, 1]} : vector<8x256xf32> to vector<8x64xf32>
    %802 = math.tanh %801 : vector<8x64xf32>
    %803 = vector.extract_strided_slice %784 {offsets = [0, 192], sizes = [8, 64], strides = [1, 1]} : vector<8x256xf32> to vector<8x64xf32>
    %cst_273 = arith.constant 5.000000e-01 : f32
    %804 = vector.broadcast %cst_273 : f32 to vector<8x64xf32>
    %805 = arith.mulf %804, %803 : vector<8x64xf32>
    %806 = math.tanh %805 : vector<8x64xf32>
    %cst_274 = arith.constant 5.000000e-01 : f32
    %807 = vector.broadcast %cst_274 : f32 to vector<8x64xf32>
    %808 = arith.mulf %807, %806 : vector<8x64xf32>
    %cst_275 = arith.constant 5.000000e-01 : f32
    %809 = vector.broadcast %cst_275 : f32 to vector<8x64xf32>
    %810 = arith.addf %808, %809 : vector<8x64xf32>
    %811 = arith.mulf %800, %744 : vector<8x64xf32>
    %812 = arith.mulf %792, %802 : vector<8x64xf32>
    %813 = arith.addf %811, %812 : vector<8x64xf32>
    %814 = math.tanh %813 : vector<8x64xf32>
    %815 = arith.mulf %810, %814 : vector<8x64xf32>
    %816 = tpu.concatenate %815, %781 in 1 : vector<8x64xf32>, vector<8x64xf32> -> vector<8x128xf32>
    %cst_276 = arith.constant dense<0.000000e+00> : vector<8x256xf32>
    %817 = tpu.matmul %816, %570, %cst_276 {dimension_numbers = #tpu.dot_dimension_numbers<[1], [0], [0], [1], [0, 0, 1, 1], [], []>} : vector<8x128xf32>, vector<128x256xf32>, vector<8x256xf32> -> vector<8x256xf32>
    %818 = vector.broadcast %571 : vector<1x256xf32> to vector<8x256xf32>
    %819 = arith.addf %817, %818 : vector<8x256xf32>
    %820 = vector.extract_strided_slice %819 {offsets = [0, 0], sizes = [8, 64], strides = [1, 1]} : vector<8x256xf32> to vector<8x64xf32>
    %cst_277 = arith.constant 5.000000e-01 : f32
    %821 = vector.broadcast %cst_277 : f32 to vector<8x64xf32>
    %822 = arith.mulf %821, %820 : vector<8x64xf32>
    %823 = math.tanh %822 : vector<8x64xf32>
    %cst_278 = arith.constant 5.000000e-01 : f32
    %824 = vector.broadcast %cst_278 : f32 to vector<8x64xf32>
    %825 = arith.mulf %824, %823 : vector<8x64xf32>
    %cst_279 = arith.constant 5.000000e-01 : f32
    %826 = vector.broadcast %cst_279 : f32 to vector<8x64xf32>
    %827 = arith.addf %825, %826 : vector<8x64xf32>
    %828 = vector.extract_strided_slice %819 {offsets = [0, 64], sizes = [8, 64], strides = [1, 1]} : vector<8x256xf32> to vector<8x64xf32>
    %cst_280 = arith.constant 5.000000e-01 : f32
    %829 = vector.broadcast %cst_280 : f32 to vector<8x64xf32>
    %830 = arith.mulf %829, %828 : vector<8x64xf32>
    %831 = math.tanh %830 : vector<8x64xf32>
    %cst_281 = arith.constant 5.000000e-01 : f32
    %832 = vector.broadcast %cst_281 : f32 to vector<8x64xf32>
    %833 = arith.mulf %832, %831 : vector<8x64xf32>
    %cst_282 = arith.constant 5.000000e-01 : f32
    %834 = vector.broadcast %cst_282 : f32 to vector<8x64xf32>
    %835 = arith.addf %833, %834 : vector<8x64xf32>
    %836 = vector.extract_strided_slice %819 {offsets = [0, 128], sizes = [8, 64], strides = [1, 1]} : vector<8x256xf32> to vector<8x64xf32>
    %837 = math.tanh %836 : vector<8x64xf32>
    %838 = vector.extract_strided_slice %819 {offsets = [0, 192], sizes = [8, 64], strides = [1, 1]} : vector<8x256xf32> to vector<8x64xf32>
    %cst_283 = arith.constant 5.000000e-01 : f32
    %839 = vector.broadcast %cst_283 : f32 to vector<8x64xf32>
    %840 = arith.mulf %839, %838 : vector<8x64xf32>
    %841 = math.tanh %840 : vector<8x64xf32>
    %cst_284 = arith.constant 5.000000e-01 : f32
    %842 = vector.broadcast %cst_284 : f32 to vector<8x64xf32>
    %843 = arith.mulf %842, %841 : vector<8x64xf32>
    %cst_285 = arith.constant 5.000000e-01 : f32
    %844 = vector.broadcast %cst_285 : f32 to vector<8x64xf32>
    %845 = arith.addf %843, %844 : vector<8x64xf32>
    %846 = arith.mulf %835, %779 : vector<8x64xf32>
    %847 = arith.mulf %827, %837 : vector<8x64xf32>
    %848 = arith.addf %846, %847 : vector<8x64xf32>
    %849 = math.tanh %848 : vector<8x64xf32>
    %850 = arith.mulf %845, %849 : vector<8x64xf32>
    %c24_286 = arith.constant 24 : index
    %c0_287 = arith.constant 0 : index
    %851 = vector.load %arg18[%c24_286, %c0_287] : memref<64x64xf32, #tpu.memory_space<vmem>>, vector<8x64xf32>
    tpu.vector_store %arg18[%c24_286, %c0_287], %850 {strides = array<i32>} : memref<64x64xf32, #tpu.memory_space<vmem>>, vector<8x64xf32>,
    %cst_288 = arith.constant dense<0.000000e+00> : vector<8x256xf32>
    %852 = tpu.matmul %815, %569, %cst_288 {dimension_numbers = #tpu.dot_dimension_numbers<[1], [0], [0], [1], [0, 0, 1, 1], [], []>} : vector<8x64xf32>, vector<64x256xf32>, vector<8x256xf32> -> vector<8x256xf32>
    %853 = arith.addf %576, %852 : vector<8x256xf32>
    %854 = vector.extract_strided_slice %853 {offsets = [0, 0], sizes = [8, 64], strides = [1, 1]} : vector<8x256xf32> to vector<8x64xf32>
    %cst_289 = arith.constant 5.000000e-01 : f32
    %855 = vector.broadcast %cst_289 : f32 to vector<8x64xf32>
    %856 = arith.mulf %855, %854 : vector<8x64xf32>
    %857 = math.tanh %856 : vector<8x64xf32>
    %cst_290 = arith.constant 5.000000e-01 : f32
    %858 = vector.broadcast %cst_290 : f32 to vector<8x64xf32>
    %859 = arith.mulf %858, %857 : vector<8x64xf32>
    %cst_291 = arith.constant 5.000000e-01 : f32
    %860 = vector.broadcast %cst_291 : f32 to vector<8x64xf32>
    %861 = arith.addf %859, %860 : vector<8x64xf32>
    %862 = vector.extract_strided_slice %853 {offsets = [0, 64], sizes = [8, 64], strides = [1, 1]} : vector<8x256xf32> to vector<8x64xf32>
    %cst_292 = arith.constant 5.000000e-01 : f32
    %863 = vector.broadcast %cst_292 : f32 to vector<8x64xf32>
    %864 = arith.mulf %863, %862 : vector<8x64xf32>
    %865 = math.tanh %864 : vector<8x64xf32>
    %cst_293 = arith.constant 5.000000e-01 : f32
    %866 = vector.broadcast %cst_293 : f32 to vector<8x64xf32>
    %867 = arith.mulf %866, %865 : vector<8x64xf32>
    %cst_294 = arith.constant 5.000000e-01 : f32
    %868 = vector.broadcast %cst_294 : f32 to vector<8x64xf32>
    %869 = arith.addf %867, %868 : vector<8x64xf32>
    %870 = vector.extract_strided_slice %853 {offsets = [0, 128], sizes = [8, 64], strides = [1, 1]} : vector<8x256xf32> to vector<8x64xf32>
    %871 = math.tanh %870 : vector<8x64xf32>
    %872 = vector.extract_strided_slice %853 {offsets = [0, 192], sizes = [8, 64], strides = [1, 1]} : vector<8x256xf32> to vector<8x64xf32>
    %cst_295 = arith.constant 5.000000e-01 : f32
    %873 = vector.broadcast %cst_295 : f32 to vector<8x64xf32>
    %874 = arith.mulf %873, %872 : vector<8x64xf32>
    %875 = math.tanh %874 : vector<8x64xf32>
    %cst_296 = arith.constant 5.000000e-01 : f32
    %876 = vector.broadcast %cst_296 : f32 to vector<8x64xf32>
    %877 = arith.mulf %876, %875 : vector<8x64xf32>
    %cst_297 = arith.constant 5.000000e-01 : f32
    %878 = vector.broadcast %cst_297 : f32 to vector<8x64xf32>
    %879 = arith.addf %877, %878 : vector<8x64xf32>
    %880 = arith.mulf %869, %813 : vector<8x64xf32>
    %881 = arith.mulf %861, %871 : vector<8x64xf32>
    %882 = arith.addf %880, %881 : vector<8x64xf32>
    %883 = math.tanh %882 : vector<8x64xf32>
    %884 = arith.mulf %879, %883 : vector<8x64xf32>
    %885 = tpu.concatenate %884, %850 in 1 : vector<8x64xf32>, vector<8x64xf32> -> vector<8x128xf32>
    %cst_298 = arith.constant dense<0.000000e+00> : vector<8x256xf32>
    %886 = tpu.matmul %885, %570, %cst_298 {dimension_numbers = #tpu.dot_dimension_numbers<[1], [0], [0], [1], [0, 0, 1, 1], [], []>} : vector<8x128xf32>, vector<128x256xf32>, vector<8x256xf32> -> vector<8x256xf32>
    %887 = vector.broadcast %571 : vector<1x256xf32> to vector<8x256xf32>
    %888 = arith.addf %886, %887 : vector<8x256xf32>
    %889 = vector.extract_strided_slice %888 {offsets = [0, 0], sizes = [8, 64], strides = [1, 1]} : vector<8x256xf32> to vector<8x64xf32>
    %cst_299 = arith.constant 5.000000e-01 : f32
    %890 = vector.broadcast %cst_299 : f32 to vector<8x64xf32>
    %891 = arith.mulf %890, %889 : vector<8x64xf32>
    %892 = math.tanh %891 : vector<8x64xf32>
    %cst_300 = arith.constant 5.000000e-01 : f32
    %893 = vector.broadcast %cst_300 : f32 to vector<8x64xf32>
    %894 = arith.mulf %893, %892 : vector<8x64xf32>
    %cst_301 = arith.constant 5.000000e-01 : f32
    %895 = vector.broadcast %cst_301 : f32 to vector<8x64xf32>
    %896 = arith.addf %894, %895 : vector<8x64xf32>
    %897 = vector.extract_strided_slice %888 {offsets = [0, 64], sizes = [8, 64], strides = [1, 1]} : vector<8x256xf32> to vector<8x64xf32>
    %cst_302 = arith.constant 5.000000e-01 : f32
    %898 = vector.broadcast %cst_302 : f32 to vector<8x64xf32>
    %899 = arith.mulf %898, %897 : vector<8x64xf32>
    %900 = math.tanh %899 : vector<8x64xf32>
    %cst_303 = arith.constant 5.000000e-01 : f32
    %901 = vector.broadcast %cst_303 : f32 to vector<8x64xf32>
    %902 = arith.mulf %901, %900 : vector<8x64xf32>
    %cst_304 = arith.constant 5.000000e-01 : f32
    %903 = vector.broadcast %cst_304 : f32 to vector<8x64xf32>
    %904 = arith.addf %902, %903 : vector<8x64xf32>
    %905 = vector.extract_strided_slice %888 {offsets = [0, 128], sizes = [8, 64], strides = [1, 1]} : vector<8x256xf32> to vector<8x64xf32>
    %906 = math.tanh %905 : vector<8x64xf32>
    %907 = vector.extract_strided_slice %888 {offsets = [0, 192], sizes = [8, 64], strides = [1, 1]} : vector<8x256xf32> to vector<8x64xf32>
    %cst_305 = arith.constant 5.000000e-01 : f32
    %908 = vector.broadcast %cst_305 : f32 to vector<8x64xf32>
    %909 = arith.mulf %908, %907 : vector<8x64xf32>
    %910 = math.tanh %909 : vector<8x64xf32>
    %cst_306 = arith.constant 5.000000e-01 : f32
    %911 = vector.broadcast %cst_306 : f32 to vector<8x64xf32>
    %912 = arith.mulf %911, %910 : vector<8x64xf32>
    %cst_307 = arith.constant 5.000000e-01 : f32
    %913 = vector.broadcast %cst_307 : f32 to vector<8x64xf32>
    %914 = arith.addf %912, %913 : vector<8x64xf32>
    %915 = arith.mulf %904, %848 : vector<8x64xf32>
    %916 = arith.mulf %896, %906 : vector<8x64xf32>
    %917 = arith.addf %915, %916 : vector<8x64xf32>
    %918 = math.tanh %917 : vector<8x64xf32>
    %919 = arith.mulf %914, %918 : vector<8x64xf32>
    %c32_308 = arith.constant 32 : index
    %c0_309 = arith.constant 0 : index
    %920 = vector.load %arg18[%c32_308, %c0_309] : memref<64x64xf32, #tpu.memory_space<vmem>>, vector<8x64xf32>
    tpu.vector_store %arg18[%c32_308, %c0_309], %919 {strides = array<i32>} : memref<64x64xf32, #tpu.memory_space<vmem>>, vector<8x64xf32>,
    %cst_310 = arith.constant dense<0.000000e+00> : vector<8x256xf32>
    %921 = tpu.matmul %884, %569, %cst_310 {dimension_numbers = #tpu.dot_dimension_numbers<[1], [0], [0], [1], [0, 0, 1, 1], [], []>} : vector<8x64xf32>, vector<64x256xf32>, vector<8x256xf32> -> vector<8x256xf32>
    %922 = arith.addf %576, %921 : vector<8x256xf32>
    %923 = vector.extract_strided_slice %922 {offsets = [0, 0], sizes = [8, 64], strides = [1, 1]} : vector<8x256xf32> to vector<8x64xf32>
    %cst_311 = arith.constant 5.000000e-01 : f32
    %924 = vector.broadcast %cst_311 : f32 to vector<8x64xf32>
    %925 = arith.mulf %924, %923 : vector<8x64xf32>
    %926 = math.tanh %925 : vector<8x64xf32>
    %cst_312 = arith.constant 5.000000e-01 : f32
    %927 = vector.broadcast %cst_312 : f32 to vector<8x64xf32>
    %928 = arith.mulf %927, %926 : vector<8x64xf32>
    %cst_313 = arith.constant 5.000000e-01 : f32
    %929 = vector.broadcast %cst_313 : f32 to vector<8x64xf32>
    %930 = arith.addf %928, %929 : vector<8x64xf32>
    %931 = vector.extract_strided_slice %922 {offsets = [0, 64], sizes = [8, 64], strides = [1, 1]} : vector<8x256xf32> to vector<8x64xf32>
    %cst_314 = arith.constant 5.000000e-01 : f32
    %932 = vector.broadcast %cst_314 : f32 to vector<8x64xf32>
    %933 = arith.mulf %932, %931 : vector<8x64xf32>
    %934 = math.tanh %933 : vector<8x64xf32>
    %cst_315 = arith.constant 5.000000e-01 : f32
    %935 = vector.broadcast %cst_315 : f32 to vector<8x64xf32>
    %936 = arith.mulf %935, %934 : vector<8x64xf32>
    %cst_316 = arith.constant 5.000000e-01 : f32
    %937 = vector.broadcast %cst_316 : f32 to vector<8x64xf32>
    %938 = arith.addf %936, %937 : vector<8x64xf32>
    %939 = vector.extract_strided_slice %922 {offsets = [0, 128], sizes = [8, 64], strides = [1, 1]} : vector<8x256xf32> to vector<8x64xf32>
    %940 = math.tanh %939 : vector<8x64xf32>
    %941 = vector.extract_strided_slice %922 {offsets = [0, 192], sizes = [8, 64], strides = [1, 1]} : vector<8x256xf32> to vector<8x64xf32>
    %cst_317 = arith.constant 5.000000e-01 : f32
    %942 = vector.broadcast %cst_317 : f32 to vector<8x64xf32>
    %943 = arith.mulf %942, %941 : vector<8x64xf32>
    %944 = math.tanh %943 : vector<8x64xf32>
    %cst_318 = arith.constant 5.000000e-01 : f32
    %945 = vector.broadcast %cst_318 : f32 to vector<8x64xf32>
    %946 = arith.mulf %945, %944 : vector<8x64xf32>
    %cst_319 = arith.constant 5.000000e-01 : f32
    %947 = vector.broadcast %cst_319 : f32 to vector<8x64xf32>
    %948 = arith.addf %946, %947 : vector<8x64xf32>
    %949 = arith.mulf %938, %882 : vector<8x64xf32>
    %950 = arith.mulf %930, %940 : vector<8x64xf32>
    %951 = arith.addf %949, %950 : vector<8x64xf32>
    %952 = math.tanh %951 : vector<8x64xf32>
    %953 = arith.mulf %948, %952 : vector<8x64xf32>
    %954 = tpu.concatenate %953, %919 in 1 : vector<8x64xf32>, vector<8x64xf32> -> vector<8x128xf32>
    %cst_320 = arith.constant dense<0.000000e+00> : vector<8x256xf32>
    %955 = tpu.matmul %954, %570, %cst_320 {dimension_numbers = #tpu.dot_dimension_numbers<[1], [0], [0], [1], [0, 0, 1, 1], [], []>} : vector<8x128xf32>, vector<128x256xf32>, vector<8x256xf32> -> vector<8x256xf32>
    %956 = vector.broadcast %571 : vector<1x256xf32> to vector<8x256xf32>
    %957 = arith.addf %955, %956 : vector<8x256xf32>
    %958 = vector.extract_strided_slice %957 {offsets = [0, 0], sizes = [8, 64], strides = [1, 1]} : vector<8x256xf32> to vector<8x64xf32>
    %cst_321 = arith.constant 5.000000e-01 : f32
    %959 = vector.broadcast %cst_321 : f32 to vector<8x64xf32>
    %960 = arith.mulf %959, %958 : vector<8x64xf32>
    %961 = math.tanh %960 : vector<8x64xf32>
    %cst_322 = arith.constant 5.000000e-01 : f32
    %962 = vector.broadcast %cst_322 : f32 to vector<8x64xf32>
    %963 = arith.mulf %962, %961 : vector<8x64xf32>
    %cst_323 = arith.constant 5.000000e-01 : f32
    %964 = vector.broadcast %cst_323 : f32 to vector<8x64xf32>
    %965 = arith.addf %963, %964 : vector<8x64xf32>
    %966 = vector.extract_strided_slice %957 {offsets = [0, 64], sizes = [8, 64], strides = [1, 1]} : vector<8x256xf32> to vector<8x64xf32>
    %cst_324 = arith.constant 5.000000e-01 : f32
    %967 = vector.broadcast %cst_324 : f32 to vector<8x64xf32>
    %968 = arith.mulf %967, %966 : vector<8x64xf32>
    %969 = math.tanh %968 : vector<8x64xf32>
    %cst_325 = arith.constant 5.000000e-01 : f32
    %970 = vector.broadcast %cst_325 : f32 to vector<8x64xf32>
    %971 = arith.mulf %970, %969 : vector<8x64xf32>
    %cst_326 = arith.constant 5.000000e-01 : f32
    %972 = vector.broadcast %cst_326 : f32 to vector<8x64xf32>
    %973 = arith.addf %971, %972 : vector<8x64xf32>
    %974 = vector.extract_strided_slice %957 {offsets = [0, 128], sizes = [8, 64], strides = [1, 1]} : vector<8x256xf32> to vector<8x64xf32>
    %975 = math.tanh %974 : vector<8x64xf32>
    %976 = vector.extract_strided_slice %957 {offsets = [0, 192], sizes = [8, 64], strides = [1, 1]} : vector<8x256xf32> to vector<8x64xf32>
    %cst_327 = arith.constant 5.000000e-01 : f32
    %977 = vector.broadcast %cst_327 : f32 to vector<8x64xf32>
    %978 = arith.mulf %977, %976 : vector<8x64xf32>
    %979 = math.tanh %978 : vector<8x64xf32>
    %cst_328 = arith.constant 5.000000e-01 : f32
    %980 = vector.broadcast %cst_328 : f32 to vector<8x64xf32>
    %981 = arith.mulf %980, %979 : vector<8x64xf32>
    %cst_329 = arith.constant 5.000000e-01 : f32
    %982 = vector.broadcast %cst_329 : f32 to vector<8x64xf32>
    %983 = arith.addf %981, %982 : vector<8x64xf32>
    %984 = arith.mulf %973, %917 : vector<8x64xf32>
    %985 = arith.mulf %965, %975 : vector<8x64xf32>
    %986 = arith.addf %984, %985 : vector<8x64xf32>
    %987 = math.tanh %986 : vector<8x64xf32>
    %988 = arith.mulf %983, %987 : vector<8x64xf32>
    %c40_330 = arith.constant 40 : index
    %c0_331 = arith.constant 0 : index
    %989 = vector.load %arg18[%c40_330, %c0_331] : memref<64x64xf32, #tpu.memory_space<vmem>>, vector<8x64xf32>
    tpu.vector_store %arg18[%c40_330, %c0_331], %988 {strides = array<i32>} : memref<64x64xf32, #tpu.memory_space<vmem>>, vector<8x64xf32>,
    %cst_332 = arith.constant dense<0.000000e+00> : vector<8x256xf32>
    %990 = tpu.matmul %953, %569, %cst_332 {dimension_numbers = #tpu.dot_dimension_numbers<[1], [0], [0], [1], [0, 0, 1, 1], [], []>} : vector<8x64xf32>, vector<64x256xf32>, vector<8x256xf32> -> vector<8x256xf32>
    %991 = arith.addf %576, %990 : vector<8x256xf32>
    %992 = vector.extract_strided_slice %991 {offsets = [0, 0], sizes = [8, 64], strides = [1, 1]} : vector<8x256xf32> to vector<8x64xf32>
    %cst_333 = arith.constant 5.000000e-01 : f32
    %993 = vector.broadcast %cst_333 : f32 to vector<8x64xf32>
    %994 = arith.mulf %993, %992 : vector<8x64xf32>
    %995 = math.tanh %994 : vector<8x64xf32>
    %cst_334 = arith.constant 5.000000e-01 : f32
    %996 = vector.broadcast %cst_334 : f32 to vector<8x64xf32>
    %997 = arith.mulf %996, %995 : vector<8x64xf32>
    %cst_335 = arith.constant 5.000000e-01 : f32
    %998 = vector.broadcast %cst_335 : f32 to vector<8x64xf32>
    %999 = arith.addf %997, %998 : vector<8x64xf32>
    %1000 = vector.extract_strided_slice %991 {offsets = [0, 64], sizes = [8, 64], strides = [1, 1]} : vector<8x256xf32> to vector<8x64xf32>
    %cst_336 = arith.constant 5.000000e-01 : f32
    %1001 = vector.broadcast %cst_336 : f32 to vector<8x64xf32>
    %1002 = arith.mulf %1001, %1000 : vector<8x64xf32>
    %1003 = math.tanh %1002 : vector<8x64xf32>
    %cst_337 = arith.constant 5.000000e-01 : f32
    %1004 = vector.broadcast %cst_337 : f32 to vector<8x64xf32>
    %1005 = arith.mulf %1004, %1003 : vector<8x64xf32>
    %cst_338 = arith.constant 5.000000e-01 : f32
    %1006 = vector.broadcast %cst_338 : f32 to vector<8x64xf32>
    %1007 = arith.addf %1005, %1006 : vector<8x64xf32>
    %1008 = vector.extract_strided_slice %991 {offsets = [0, 128], sizes = [8, 64], strides = [1, 1]} : vector<8x256xf32> to vector<8x64xf32>
    %1009 = math.tanh %1008 : vector<8x64xf32>
    %1010 = vector.extract_strided_slice %991 {offsets = [0, 192], sizes = [8, 64], strides = [1, 1]} : vector<8x256xf32> to vector<8x64xf32>
    %cst_339 = arith.constant 5.000000e-01 : f32
    %1011 = vector.broadcast %cst_339 : f32 to vector<8x64xf32>
    %1012 = arith.mulf %1011, %1010 : vector<8x64xf32>
    %1013 = math.tanh %1012 : vector<8x64xf32>
    %cst_340 = arith.constant 5.000000e-01 : f32
    %1014 = vector.broadcast %cst_340 : f32 to vector<8x64xf32>
    %1015 = arith.mulf %1014, %1013 : vector<8x64xf32>
    %cst_341 = arith.constant 5.000000e-01 : f32
    %1016 = vector.broadcast %cst_341 : f32 to vector<8x64xf32>
    %1017 = arith.addf %1015, %1016 : vector<8x64xf32>
    %1018 = arith.mulf %1007, %951 : vector<8x64xf32>
    %1019 = arith.mulf %999, %1009 : vector<8x64xf32>
    %1020 = arith.addf %1018, %1019 : vector<8x64xf32>
    %1021 = math.tanh %1020 : vector<8x64xf32>
    %1022 = arith.mulf %1017, %1021 : vector<8x64xf32>
    %1023 = tpu.concatenate %1022, %988 in 1 : vector<8x64xf32>, vector<8x64xf32> -> vector<8x128xf32>
    %cst_342 = arith.constant dense<0.000000e+00> : vector<8x256xf32>
    %1024 = tpu.matmul %1023, %570, %cst_342 {dimension_numbers = #tpu.dot_dimension_numbers<[1], [0], [0], [1], [0, 0, 1, 1], [], []>} : vector<8x128xf32>, vector<128x256xf32>, vector<8x256xf32> -> vector<8x256xf32>
    %1025 = vector.broadcast %571 : vector<1x256xf32> to vector<8x256xf32>
    %1026 = arith.addf %1024, %1025 : vector<8x256xf32>
    %1027 = vector.extract_strided_slice %1026 {offsets = [0, 0], sizes = [8, 64], strides = [1, 1]} : vector<8x256xf32> to vector<8x64xf32>
    %cst_343 = arith.constant 5.000000e-01 : f32
    %1028 = vector.broadcast %cst_343 : f32 to vector<8x64xf32>
    %1029 = arith.mulf %1028, %1027 : vector<8x64xf32>
    %1030 = math.tanh %1029 : vector<8x64xf32>
    %cst_344 = arith.constant 5.000000e-01 : f32
    %1031 = vector.broadcast %cst_344 : f32 to vector<8x64xf32>
    %1032 = arith.mulf %1031, %1030 : vector<8x64xf32>
    %cst_345 = arith.constant 5.000000e-01 : f32
    %1033 = vector.broadcast %cst_345 : f32 to vector<8x64xf32>
    %1034 = arith.addf %1032, %1033 : vector<8x64xf32>
    %1035 = vector.extract_strided_slice %1026 {offsets = [0, 64], sizes = [8, 64], strides = [1, 1]} : vector<8x256xf32> to vector<8x64xf32>
    %cst_346 = arith.constant 5.000000e-01 : f32
    %1036 = vector.broadcast %cst_346 : f32 to vector<8x64xf32>
    %1037 = arith.mulf %1036, %1035 : vector<8x64xf32>
    %1038 = math.tanh %1037 : vector<8x64xf32>
    %cst_347 = arith.constant 5.000000e-01 : f32
    %1039 = vector.broadcast %cst_347 : f32 to vector<8x64xf32>
    %1040 = arith.mulf %1039, %1038 : vector<8x64xf32>
    %cst_348 = arith.constant 5.000000e-01 : f32
    %1041 = vector.broadcast %cst_348 : f32 to vector<8x64xf32>
    %1042 = arith.addf %1040, %1041 : vector<8x64xf32>
    %1043 = vector.extract_strided_slice %1026 {offsets = [0, 128], sizes = [8, 64], strides = [1, 1]} : vector<8x256xf32> to vector<8x64xf32>
    %1044 = math.tanh %1043 : vector<8x64xf32>
    %1045 = vector.extract_strided_slice %1026 {offsets = [0, 192], sizes = [8, 64], strides = [1, 1]} : vector<8x256xf32> to vector<8x64xf32>
    %cst_349 = arith.constant 5.000000e-01 : f32
    %1046 = vector.broadcast %cst_349 : f32 to vector<8x64xf32>
    %1047 = arith.mulf %1046, %1045 : vector<8x64xf32>
    %1048 = math.tanh %1047 : vector<8x64xf32>
    %cst_350 = arith.constant 5.000000e-01 : f32
    %1049 = vector.broadcast %cst_350 : f32 to vector<8x64xf32>
    %1050 = arith.mulf %1049, %1048 : vector<8x64xf32>
    %cst_351 = arith.constant 5.000000e-01 : f32
    %1051 = vector.broadcast %cst_351 : f32 to vector<8x64xf32>
    %1052 = arith.addf %1050, %1051 : vector<8x64xf32>
    %1053 = arith.mulf %1042, %986 : vector<8x64xf32>
    %1054 = arith.mulf %1034, %1044 : vector<8x64xf32>
    %1055 = arith.addf %1053, %1054 : vector<8x64xf32>
    %1056 = math.tanh %1055 : vector<8x64xf32>
    %1057 = arith.mulf %1052, %1056 : vector<8x64xf32>
    %c48_352 = arith.constant 48 : index
    %c0_353 = arith.constant 0 : index
    %1058 = vector.load %arg18[%c48_352, %c0_353] : memref<64x64xf32, #tpu.memory_space<vmem>>, vector<8x64xf32>
    tpu.vector_store %arg18[%c48_352, %c0_353], %1057 {strides = array<i32>} : memref<64x64xf32, #tpu.memory_space<vmem>>, vector<8x64xf32>,
    %cst_354 = arith.constant dense<0.000000e+00> : vector<8x256xf32>
    %1059 = tpu.matmul %1022, %569, %cst_354 {dimension_numbers = #tpu.dot_dimension_numbers<[1], [0], [0], [1], [0, 0, 1, 1], [], []>} : vector<8x64xf32>, vector<64x256xf32>, vector<8x256xf32> -> vector<8x256xf32>
    %1060 = arith.addf %576, %1059 : vector<8x256xf32>
    %1061 = vector.extract_strided_slice %1060 {offsets = [0, 0], sizes = [8, 64], strides = [1, 1]} : vector<8x256xf32> to vector<8x64xf32>
    %cst_355 = arith.constant 5.000000e-01 : f32
    %1062 = vector.broadcast %cst_355 : f32 to vector<8x64xf32>
    %1063 = arith.mulf %1062, %1061 : vector<8x64xf32>
    %1064 = math.tanh %1063 : vector<8x64xf32>
    %cst_356 = arith.constant 5.000000e-01 : f32
    %1065 = vector.broadcast %cst_356 : f32 to vector<8x64xf32>
    %1066 = arith.mulf %1065, %1064 : vector<8x64xf32>
    %cst_357 = arith.constant 5.000000e-01 : f32
    %1067 = vector.broadcast %cst_357 : f32 to vector<8x64xf32>
    %1068 = arith.addf %1066, %1067 : vector<8x64xf32>
    %1069 = vector.extract_strided_slice %1060 {offsets = [0, 64], sizes = [8, 64], strides = [1, 1]} : vector<8x256xf32> to vector<8x64xf32>
    %cst_358 = arith.constant 5.000000e-01 : f32
    %1070 = vector.broadcast %cst_358 : f32 to vector<8x64xf32>
    %1071 = arith.mulf %1070, %1069 : vector<8x64xf32>
    %1072 = math.tanh %1071 : vector<8x64xf32>
    %cst_359 = arith.constant 5.000000e-01 : f32
    %1073 = vector.broadcast %cst_359 : f32 to vector<8x64xf32>
    %1074 = arith.mulf %1073, %1072 : vector<8x64xf32>
    %cst_360 = arith.constant 5.000000e-01 : f32
    %1075 = vector.broadcast %cst_360 : f32 to vector<8x64xf32>
    %1076 = arith.addf %1074, %1075 : vector<8x64xf32>
    %1077 = vector.extract_strided_slice %1060 {offsets = [0, 128], sizes = [8, 64], strides = [1, 1]} : vector<8x256xf32> to vector<8x64xf32>
    %1078 = math.tanh %1077 : vector<8x64xf32>
    %1079 = vector.extract_strided_slice %1060 {offsets = [0, 192], sizes = [8, 64], strides = [1, 1]} : vector<8x256xf32> to vector<8x64xf32>
    %cst_361 = arith.constant 5.000000e-01 : f32
    %1080 = vector.broadcast %cst_361 : f32 to vector<8x64xf32>
    %1081 = arith.mulf %1080, %1079 : vector<8x64xf32>
    %1082 = math.tanh %1081 : vector<8x64xf32>
    %cst_362 = arith.constant 5.000000e-01 : f32
    %1083 = vector.broadcast %cst_362 : f32 to vector<8x64xf32>
    %1084 = arith.mulf %1083, %1082 : vector<8x64xf32>
    %cst_363 = arith.constant 5.000000e-01 : f32
    %1085 = vector.broadcast %cst_363 : f32 to vector<8x64xf32>
    %1086 = arith.addf %1084, %1085 : vector<8x64xf32>
    %1087 = arith.mulf %1076, %1020 : vector<8x64xf32>
    %1088 = arith.mulf %1068, %1078 : vector<8x64xf32>
    %1089 = arith.addf %1087, %1088 : vector<8x64xf32>
    %1090 = math.tanh %1089 : vector<8x64xf32>
    %1091 = arith.mulf %1086, %1090 : vector<8x64xf32>
    %1092 = tpu.concatenate %1091, %1057 in 1 : vector<8x64xf32>, vector<8x64xf32> -> vector<8x128xf32>
    %cst_364 = arith.constant dense<0.000000e+00> : vector<8x256xf32>
    %1093 = tpu.matmul %1092, %570, %cst_364 {dimension_numbers = #tpu.dot_dimension_numbers<[1], [0], [0], [1], [0, 0, 1, 1], [], []>} : vector<8x128xf32>, vector<128x256xf32>, vector<8x256xf32> -> vector<8x256xf32>
    %1094 = vector.broadcast %571 : vector<1x256xf32> to vector<8x256xf32>
    %1095 = arith.addf %1093, %1094 : vector<8x256xf32>
    %1096 = vector.extract_strided_slice %1095 {offsets = [0, 0], sizes = [8, 64], strides = [1, 1]} : vector<8x256xf32> to vector<8x64xf32>
    %cst_365 = arith.constant 5.000000e-01 : f32
    %1097 = vector.broadcast %cst_365 : f32 to vector<8x64xf32>
    %1098 = arith.mulf %1097, %1096 : vector<8x64xf32>
    %1099 = math.tanh %1098 : vector<8x64xf32>
    %cst_366 = arith.constant 5.000000e-01 : f32
    %1100 = vector.broadcast %cst_366 : f32 to vector<8x64xf32>
    %1101 = arith.mulf %1100, %1099 : vector<8x64xf32>
    %cst_367 = arith.constant 5.000000e-01 : f32
    %1102 = vector.broadcast %cst_367 : f32 to vector<8x64xf32>
    %1103 = arith.addf %1101, %1102 : vector<8x64xf32>
    %1104 = vector.extract_strided_slice %1095 {offsets = [0, 64], sizes = [8, 64], strides = [1, 1]} : vector<8x256xf32> to vector<8x64xf32>
    %cst_368 = arith.constant 5.000000e-01 : f32
    %1105 = vector.broadcast %cst_368 : f32 to vector<8x64xf32>
    %1106 = arith.mulf %1105, %1104 : vector<8x64xf32>
    %1107 = math.tanh %1106 : vector<8x64xf32>
    %cst_369 = arith.constant 5.000000e-01 : f32
    %1108 = vector.broadcast %cst_369 : f32 to vector<8x64xf32>
    %1109 = arith.mulf %1108, %1107 : vector<8x64xf32>
    %cst_370 = arith.constant 5.000000e-01 : f32
    %1110 = vector.broadcast %cst_370 : f32 to vector<8x64xf32>
    %1111 = arith.addf %1109, %1110 : vector<8x64xf32>
    %1112 = vector.extract_strided_slice %1095 {offsets = [0, 128], sizes = [8, 64], strides = [1, 1]} : vector<8x256xf32> to vector<8x64xf32>
    %1113 = math.tanh %1112 : vector<8x64xf32>
    %1114 = vector.extract_strided_slice %1095 {offsets = [0, 192], sizes = [8, 64], strides = [1, 1]} : vector<8x256xf32> to vector<8x64xf32>
    %cst_371 = arith.constant 5.000000e-01 : f32
    %1115 = vector.broadcast %cst_371 : f32 to vector<8x64xf32>
    %1116 = arith.mulf %1115, %1114 : vector<8x64xf32>
    %1117 = math.tanh %1116 : vector<8x64xf32>
    %cst_372 = arith.constant 5.000000e-01 : f32
    %1118 = vector.broadcast %cst_372 : f32 to vector<8x64xf32>
    %1119 = arith.mulf %1118, %1117 : vector<8x64xf32>
    %cst_373 = arith.constant 5.000000e-01 : f32
    %1120 = vector.broadcast %cst_373 : f32 to vector<8x64xf32>
    %1121 = arith.addf %1119, %1120 : vector<8x64xf32>
    %1122 = arith.mulf %1111, %1055 : vector<8x64xf32>
    %1123 = arith.mulf %1103, %1113 : vector<8x64xf32>
    %1124 = arith.addf %1122, %1123 : vector<8x64xf32>
    %1125 = math.tanh %1124 : vector<8x64xf32>
    %1126 = arith.mulf %1121, %1125 : vector<8x64xf32>
    %c56_374 = arith.constant 56 : index
    %c0_375 = arith.constant 0 : index
    %1127 = vector.load %arg18[%c56_374, %c0_375] : memref<64x64xf32, #tpu.memory_space<vmem>>, vector<8x64xf32>
    tpu.vector_store %arg18[%c56_374, %c0_375], %1126 {strides = array<i32>} : memref<64x64xf32, #tpu.memory_space<vmem>>, vector<8x64xf32>,
    %c0_376 = arith.constant 0 : index
    %c0_377 = arith.constant 0 : index
    %1128 = vector.load %arg18[%c0_376, %c0_377] : memref<64x64xf32, #tpu.memory_space<vmem>>, vector<64x64xf32>
    %c0_378 = arith.constant 0 : index
    %c0_379 = arith.constant 0 : index
    %1129 = vector.load %arg14[%c0_378, %c0_379] : memref<64x16xf32, #tpu.memory_space<vmem>>, vector<64x16xf32>
    %cst_380 = arith.constant dense<0.000000e+00> : vector<64x16xf32>
    %1130 = tpu.matmul %1128, %1129, %cst_380 {dimension_numbers = #tpu.dot_dimension_numbers<[1], [0], [0], [1], [0, 0, 1, 1], [], []>} : vector<64x64xf32>, vector<64x16xf32>, vector<64x16xf32> -> vector<64x16xf32>
    %c0_381 = arith.constant 0 : index
    %c0_382 = arith.constant 0 : index
    %1131 = vector.load %arg15[%c0_381, %c0_382] : memref<1x16xf32, #tpu.memory_space<vmem>>, vector<1x16xf32>
    %1132 = vector.broadcast %1131 : vector<1x16xf32> to vector<64x16xf32>
    %1133 = arith.addf %1130, %1132 : vector<64x16xf32>
    %1134 = vector.shape_cast %1133 : vector<64x16xf32> to vector<8x8x16xf32>
    %c0_383 = arith.constant 0 : index
    %c0_384 = arith.constant 0 : index
    %c0_385 = arith.constant 0 : index
    %1135 = vector.load %arg16[%c0_383, %c0_384, %c0_385] : memref<8x8x16xf32, #tpu.memory_space<vmem>>, vector<8x8x16xf32>
    tpu.vector_store %arg16[%c0_383, %c0_384, %c0_385], %1134 {strides = array<i32>} : memref<8x8x16xf32, #tpu.memory_space<vmem>>, vector<8x8x16xf32>,
    return
  }
  func.func @transform_0(%arg0: i32) -> (i32, i32, i32) {
    %c0_i32 = arith.constant 0 : i32
    %c0_i32_0 = arith.constant 0 : i32
    %c0_i32_1 = arith.constant 0 : i32
    return %c0_i32, %arg0, %c0_i32_0 : i32, i32, i32
  }
  func.func @transform_1(%arg0: i32) -> (i32, i32) {
    %c0_i32 = arith.constant 0 : i32
    %c0_i32_0 = arith.constant 0 : i32
    %c0_i32_1 = arith.constant 0 : i32
    return %c0_i32, %c0_i32_0 : i32, i32
  }
  func.func @transform_2(%arg0: i32) -> (i32, i32) {
    %c0_i32 = arith.constant 0 : i32
    %c0_i32_0 = arith.constant 0 : i32
    %c0_i32_1 = arith.constant 0 : i32
    return %c0_i32, %c0_i32_0 : i32, i32
  }
  func.func @transform_3(%arg0: i32) -> (i32, i32) {
    %c0_i32 = arith.constant 0 : i32
    %c0_i32_0 = arith.constant 0 : i32
    %c0_i32_1 = arith.constant 0 : i32
    return %c0_i32, %c0_i32_0 : i32, i32
  }
  func.func @transform_4(%arg0: i32) -> (i32, i32) {
    %c0_i32 = arith.constant 0 : i32
    %c0_i32_0 = arith.constant 0 : i32
    %c0_i32_1 = arith.constant 0 : i32
    return %c0_i32, %c0_i32_0 : i32, i32
  }
  func.func @transform_5(%arg0: i32) -> (i32, i32) {
    %c0_i32 = arith.constant 0 : i32
    %c0_i32_0 = arith.constant 0 : i32
    %c0_i32_1 = arith.constant 0 : i32
    return %c0_i32, %c0_i32_0 : i32, i32
  }
  func.func @transform_6(%arg0: i32) -> (i32, i32) {
    %c0_i32 = arith.constant 0 : i32
    %c0_i32_0 = arith.constant 0 : i32
    %c0_i32_1 = arith.constant 0 : i32
    return %c0_i32, %c0_i32_0 : i32, i32
  }
  func.func @transform_7(%arg0: i32) -> (i32, i32) {
    %c0_i32 = arith.constant 0 : i32
    %c0_i32_0 = arith.constant 0 : i32
    %c0_i32_1 = arith.constant 0 : i32
    return %c0_i32, %c0_i32_0 : i32, i32
  }
  func.func @transform_8(%arg0: i32) -> (i32, i32) {
    %c0_i32 = arith.constant 0 : i32
    %c0_i32_0 = arith.constant 0 : i32
    %c0_i32_1 = arith.constant 0 : i32
    return %c0_i32, %c0_i32_0 : i32, i32
  }
  func.func @transform_9(%arg0: i32) -> (i32, i32) {
    %c0_i32 = arith.constant 0 : i32
    %c0_i32_0 = arith.constant 0 : i32
    %c0_i32_1 = arith.constant 0 : i32
    return %c0_i32, %c0_i32_0 : i32, i32
  }
  func.func @transform_10(%arg0: i32) -> (i32, i32) {
    %c0_i32 = arith.constant 0 : i32
    %c0_i32_0 = arith.constant 0 : i32
    %c0_i32_1 = arith.constant 0 : i32
    return %c0_i32, %c0_i32_0 : i32, i32
  }
  func.func @transform_11(%arg0: i32) -> (i32, i32) {
    %c0_i32 = arith.constant 0 : i32
    %c0_i32_0 = arith.constant 0 : i32
    %c0_i32_1 = arith.constant 0 : i32
    return %c0_i32, %c0_i32_0 : i32, i32
  }
  func.func @transform_12(%arg0: i32) -> (i32, i32) {
    %c0_i32 = arith.constant 0 : i32
    %c0_i32_0 = arith.constant 0 : i32
    %c0_i32_1 = arith.constant 0 : i32
    return %c0_i32, %c0_i32_0 : i32, i32
  }
  func.func @transform_13(%arg0: i32) -> (i32, i32) {
    %c0_i32 = arith.constant 0 : i32
    %c0_i32_0 = arith.constant 0 : i32
    %c0_i32_1 = arith.constant 0 : i32
    return %c0_i32, %c0_i32_0 : i32, i32
  }
  func.func @transform_14(%arg0: i32) -> (i32, i32) {
    %c0_i32 = arith.constant 0 : i32
    %c0_i32_0 = arith.constant 0 : i32
    %c0_i32_1 = arith.constant 0 : i32
    return %c0_i32, %c0_i32_0 : i32, i32
  }
  func.func @transform_15(%arg0: i32) -> (i32, i32, i32) {
    %c0_i32 = arith.constant 0 : i32
    %c0_i32_0 = arith.constant 0 : i32
    %c0_i32_1 = arith.constant 0 : i32
    return %c0_i32, %arg0, %c0_i32_0 : i32, i32, i32
  }
}

</mosaic_0001>

<llo_original>
// kernel: item_autoencoder_forward.1
$region0: #{item_autoencoder_forward.1}
  #allocation0 [shape = 'u32[]', space=smem, size = 0x4, offset = 0x4, fixed_abs, tag = 'smem constant byte address 0x4 - core index']
  #allocation1 [shape = 'u32[144,128]{1,0:T(1,128)}', space=vmem, size = 0x12000, scoped, tag = 'internal scratch']
  #allocation2 [shape = 'f32[64,128]{1,0:T(8,128)}', space=vmem, size = 0x8000, scoped, tag = 'scratch operand']
  #allocation3 [shape = 'f32[64,64]{1,0:T(8,128)}', space=vmem, size = 0x8000, scoped, tag = 'scratch operand']
  %s0 = inlined_call_operand.vmem [shape: f32[8,8,16], index: 0, kind: input, shape index: {}]
  %s1 = inlined_call_operand.vmem [shape: f32[16,64], index: 1, kind: input, shape index: {}]
  %s2 = inlined_call_operand.vmem [shape: f32[1,64], index: 2, kind: input, shape index: {}]
  %s3 = inlined_call_operand.vmem [shape: f32[64,128], index: 3, kind: input, shape index: {}]
  %s4 = inlined_call_operand.vmem [shape: f32[32,128], index: 4, kind: input, shape index: {}]
  %s5 = inlined_call_operand.vmem [shape: f32[1,128], index: 5, kind: input, shape index: {}]
  %s6 = inlined_call_operand.vmem [shape: f32[64,128], index: 6, kind: input, shape index: {}]
  %s7 = inlined_call_operand.vmem [shape: f32[1,128], index: 7, kind: input, shape index: {}]
  %s8 = inlined_call_operand.vmem [shape: f32[32,256], index: 8, kind: input, shape index: {}]
  %s9 = inlined_call_operand.vmem [shape: f32[64,256], index: 9, kind: input, shape index: {}]
  %s10 = inlined_call_operand.vmem [shape: f32[1,256], index: 10, kind: input, shape index: {}]
  %s11 = inlined_call_operand.vmem [shape: f32[128,256], index: 11, kind: input, shape index: {}]
  %s12 = inlined_call_operand.vmem [shape: f32[1,256], index: 12, kind: input, shape index: {}]
  %s13 = inlined_call_operand.vmem [shape: f32[64,16], index: 13, kind: input, shape index: {}]
  %s14 = inlined_call_operand.vmem [shape: f32[1,16], index: 14, kind: input, shape index: {}]
  %s15 = inlined_call_operand.vmem [shape: f32[8,8,16], index: 15, kind: output, shape index: {}]
  %s16 = sld [smem:[#allocation0]]
  $region70: #{item_autoencoder_forward.1} parent=0
    _
  %s18 = ssub.s32 1, %s16
  %s19 = scalar_select 0, %s18, %s16
  // Predicated region
  $region2: #{item_autoencoder_forward.1} parent=0 // pred_check
    _
  $region3: #{item_autoencoder_forward.1} parent=0 // pred_check_branch
    %21 = sbr.rel (0) target = $region5
  $region4: #{item_autoencoder_forward.1} parent=0 // pred_region
    _
  $region5: #{item_autoencoder_forward.1} parent=0 // pred_fallthru
    _
  // Predicated region
  $region6: #{item_autoencoder_forward.1} parent=0 // pred_check
    _
  $region7: #{item_autoencoder_forward.1} parent=0 // pred_check_branch
    %23 = sbr.rel (0) target = $region9
  $region8: #{item_autoencoder_forward.1} parent=0 // pred_region
    _
  $region9: #{item_autoencoder_forward.1} parent=0 // pred_fallthru
    _
  // Predicated region
  $region10: #{item_autoencoder_forward.1} parent=0 // pred_check
    _
  $region11: #{item_autoencoder_forward.1} parent=0 // pred_check_branch
    %25 = sbr.rel (0) target = $region13
  $region12: #{item_autoencoder_forward.1} parent=0 // pred_region
    _
  $region13: #{item_autoencoder_forward.1} parent=0 // pred_fallthru
    _
  // Predicated region
  $region14: #{item_autoencoder_forward.1} parent=0 // pred_check
    _
  $region15: #{item_autoencoder_forward.1} parent=0 // pred_check_branch
    %27 = sbr.rel (0) target = $region17
  $region16: #{item_autoencoder_forward.1} parent=0 // pred_region
    _
  $region17: #{item_autoencoder_forward.1} parent=0 // pred_fallthru
    _
  // Predicated region
  $region18: #{item_autoencoder_forward.1} parent=0 // pred_check
    _
  $region19: #{item_autoencoder_forward.1} parent=0 // pred_check_branch
    %29 = sbr.rel (0) target = $region21
  $region20: #{item_autoencoder_forward.1} parent=0 // pred_region
    _
  $region21: #{item_autoencoder_forward.1} parent=0 // pred_fallthru
    _
  // Predicated region
  $region22: #{item_autoencoder_forward.1} parent=0 // pred_check
    _
  $region23: #{item_autoencoder_forward.1} parent=0 // pred_check_branch
    %31 = sbr.rel (0) target = $region25
  $region24: #{item_autoencoder_forward.1} parent=0 // pred_region
    _
  $region25: #{item_autoencoder_forward.1} parent=0 // pred_fallthru
    _
  // Predicated region
  $region26: #{item_autoencoder_forward.1} parent=0 // pred_check
    _
  $region27: #{item_autoencoder_forward.1} parent=0 // pred_check_branch
    %33 = sbr.rel (0) target = $region29
  $region28: #{item_autoencoder_forward.1} parent=0 // pred_region
    _
  $region29: #{item_autoencoder_forward.1} parent=0 // pred_fallthru
    _
  // Predicated region
  $region30: #{item_autoencoder_forward.1} parent=0 // pred_check
    _
  $region31: #{item_autoencoder_forward.1} parent=0 // pred_check_branch
    %35 = sbr.rel (0) target = $region33
  $region32: #{item_autoencoder_forward.1} parent=0 // pred_region
    _
  $region33: #{item_autoencoder_forward.1} parent=0 // pred_fallthru
    _
  // Predicated region
  $region34: #{item_autoencoder_forward.1} parent=0 // pred_check
    _
  $region35: #{item_autoencoder_forward.1} parent=0 // pred_check_branch
    %37 = sbr.rel (0) target = $region37
  $region36: #{item_autoencoder_forward.1} parent=0 // pred_region
    _
  $region37: #{item_autoencoder_forward.1} parent=0 // pred_fallthru
    _
  // Predicated region
  $region38: #{item_autoencoder_forward.1} parent=0 // pred_check
    _
  $region39: #{item_autoencoder_forward.1} parent=0 // pred_check_branch
    %39 = sbr.rel (0) target = $region41
  $region40: #{item_autoencoder_forward.1} parent=0 // pred_region
    _
  $region41: #{item_autoencoder_forward.1} parent=0 // pred_fallthru
    _
  // Predicated region
  $region42: #{item_autoencoder_forward.1} parent=0 // pred_check
    _
  $region43: #{item_autoencoder_forward.1} parent=0 // pred_check_branch
    %41 = sbr.rel (0) target = $region45
  $region44: #{item_autoencoder_forward.1} parent=0 // pred_region
    _
  $region45: #{item_autoencoder_forward.1} parent=0 // pred_fallthru
    _
  // Predicated region
  $region46: #{item_autoencoder_forward.1} parent=0 // pred_check
    _
  $region47: #{item_autoencoder_forward.1} parent=0 // pred_check_branch
    %43 = sbr.rel (0) target = $region49
  $region48: #{item_autoencoder_forward.1} parent=0 // pred_region
    _
  $region49: #{item_autoencoder_forward.1} parent=0 // pred_fallthru
    _
  // Predicated region
  $region50: #{item_autoencoder_forward.1} parent=0 // pred_check
    _
  $region51: #{item_autoencoder_forward.1} parent=0 // pred_check_branch
    %45 = sbr.rel (0) target = $region53
  $region52: #{item_autoencoder_forward.1} parent=0 // pred_region
    _
  $region53: #{item_autoencoder_forward.1} parent=0 // pred_fallthru
    _
  // Predicated region
  $region54: #{item_autoencoder_forward.1} parent=0 // pred_check
    _
  $region55: #{item_autoencoder_forward.1} parent=0 // pred_check_branch
    %47 = sbr.rel (0) target = $region57
  $region56: #{item_autoencoder_forward.1} parent=0 // pred_region
    _
  $region57: #{item_autoencoder_forward.1} parent=0 // pred_fallthru
    _
  // Predicated region
  $region58: #{item_autoencoder_forward.1} parent=0 // pred_check
    _
  $region59: #{item_autoencoder_forward.1} parent=0 // pred_check_branch
    %49 = sbr.rel (0) target = $region61
  $region60: #{item_autoencoder_forward.1} parent=0 // pred_region
    _
  $region61: #{item_autoencoder_forward.1} parent=0 // pred_fallthru
    _
  %v50 = vld [vmem:[%s0] sm:$0xff]
  %v51 = vld [vmem:[%s0 + $0x8] sm:$0xff]
  %v52 = vld [vmem:[%s0 + $0x10] sm:$0xff]
  %v53 = vld [vmem:[%s0 + $0x18] sm:$0xff]
  %v54 = vld [vmem:[%s0 + $0x20] sm:$0xff]
  %v55 = vld [vmem:[%s0 + $0x28] sm:$0xff]
  %v56 = vld [vmem:[%s0 + $0x30] sm:$0xff]
  %v57 = vld [vmem:[%s0 + $0x38] sm:$0xff]
  %v58 = vld [vmem:[%s1] sm:$0xff]
  %v59 = vld [vmem:[%s1 + $0x8] sm:$0xff]
  %v60 = vld [vmem:[%s2] sm:$0x1]
  %v62 = vlaneseq
  %v63 = vshrl.u32 %v62, 7
  %v64 = vsub.s32 0, %v63
  %v65 = vrot.slane %v60, %v64
  %vm67 = vcmask 130048
  %v69 = vsel %vm67, %v50, 0
  %v72 = vsel %vm67, %v51, 0
  %v75 = vsel %vm67, %v52, 0
  %v78 = vsel %vm67, %v53, 0
  %v81 = vsel %vm67, %v54, 0
  %v84 = vsel %vm67, %v55, 0
  %v87 = vsel %vm67, %v56, 0
  %v90 = vsel %vm67, %v57, 0
  %92 = vmatprep.subr.mxu0 0.0
  %93 = vmatpush1.msra.mxu0 %v58
  %94 = vmatprep.subr.mxu0 0.0
  %95 = vmatpush1.msra.mxu0 %v59
  %96 = vmatprep.subr.mxu0 0.0
  %97 = vmatpush1.msra.mxu0 0.0
  %98 = vmatprep.subr.mxu0 0.0
  %99 = vmatpush1.msra.mxu0 0.0
  %100 = vmatprep.subr.mxu0 0.0
  %101 = vmatpush1.msra.mxu0 0.0
  %102 = vmatprep.subr.mxu0 0.0
  %103 = vmatpush1.msra.mxu0 0.0
  %104 = vmatprep.subr.mxu0 0.0
  %105 = vmatpush1.msra.mxu0 0.0
  %106 = vmatprep.subr.mxu0 0.0
  %107 = vmatpush1.msra.mxu0 0.0
  %108 = vmatprep.subr.mxu0 0.0
  %109 = vmatpush1.msra.mxu0 0.0
  %110 = vmatprep.subr.mxu0 0.0
  %111 = vmatpush1.msra.mxu0 0.0
  %112 = vmatprep.subr.mxu0 0.0
  %113 = vmatpush1.msra.mxu0 0.0
  %114 = vmatprep.subr.mxu0 0.0
  %115 = vmatpush1.msra.mxu0 0.0
  %116 = vmatprep.subr.mxu0 0.0
  %117 = vmatpush1.msra.mxu0 0.0
  %118 = vmatprep.subr.mxu0 0.0
  %119 = vmatpush1.msra.mxu0 0.0
  %120 = vmatprep.subr.mxu0 0.0
  %121 = vmatpush1.msra.mxu0 0.0
  %122 = vmatprep.subr.mxu0 0.0
  %123 = vmatpush1.msra.mxu0 0.0
  %124 = vmatprep.subr.mxu0 0.0
  %125 = vmatpush1.msra.mxu0 0.0
  %126 = vmatprep.subr.mxu0 0.0
  %127 = vmatpush1.msra.mxu0 0.0
  %128 = vmatprep.subr.mxu0 0.0
  %129 = vmatpush1.msra.mxu0 0.0
  %130 = vmatprep.subr.mxu0 0.0
  %131 = vmatpush1.msra.mxu0 0.0
  %132 = vmatprep.subr.mxu0 0.0
  %133 = vmatpush1.msra.mxu0 0.0
  %134 = vmatprep.subr.mxu0 0.0
  %135 = vmatpush1.msra.mxu0 0.0
  %136 = vmatprep.subr.mxu0 0.0
  %137 = vmatpush1.msra.mxu0 0.0
  %138 = vmatprep.subr.mxu0 0.0
  %139 = vmatpush1.msra.mxu0 0.0
  %140 = vmatprep.subr.mxu0 0.0
  %141 = vmatpush1.msra.mxu0 0.0
  %142 = vmatprep.subr.mxu0 0.0
  %143 = vmatpush1.msra.mxu0 0.0
  %144 = vmatprep.subr.mxu0 0.0
  %145 = vmatpush1.msra.mxu0 0.0
  %146 = vmatprep.subr.mxu0 0.0
  %147 = vmatpush1.msra.mxu0 0.0
  %148 = vmatprep.subr.mxu0 0.0
  %149 = vmatpush1.msra.mxu0 0.0
  %150 = vmatprep.subr.mxu0 0.0
  %151 = vmatpush1.msra.mxu0 0.0
  %152 = vmatprep.subr.mxu0 0.0
  %153 = vmatpush1.msra.mxu0 0.0
  %154 = vmatprep.subr.mxu0 0.0
  %155 = vmatpush1.msra.mxu0 0.0
  %156 = vmatprep.mubr.f32.mxu0 0.0
  %157 = vmatmul.mubr.f32.gmra.mrb[0].mxu0 %v69
  %v158 = vpop.f32.mrb[0].mxu0
  %v159 = vadd.f32 %v65, %v158
  %v160 = vpop.f32.mrb[0].mxu0
  %161 = vmatprep.mubr.f32.mxu0 0.0
  %162 = vmatmul.mubr.f32.gmra.mrb[0].mxu0 %v72
  %v163 = vpop.f32.mrb[0].mxu0
  %v164 = vadd.f32 %v65, %v163
  %v165 = vpop.f32.mrb[0].mxu0
  %166 = vmatprep.mubr.f32.mxu0 0.0
  %167 = vmatmul.mubr.f32.gmra.mrb[0].mxu0 %v75
  %v168 = vpop.f32.mrb[0].mxu0
  %v169 = vadd.f32 %v65, %v168
  %v170 = vpop.f32.mrb[0].mxu0
  %171 = vmatprep.mubr.f32.mxu0 0.0
  %172 = vmatmul.mubr.f32.gmra.mrb[0].mxu0 %v78
  %v173 = vpop.f32.mrb[0].mxu0
  %v174 = vadd.f32 %v65, %v173
  %v175 = vpop.f32.mrb[0].mxu0
  %176 = vmatprep.mubr.f32.mxu0 0.0
  %177 = vmatmul.mubr.f32.gmra.mrb[0].mxu0 %v81
  %v178 = vpop.f32.mrb[0].mxu0
  %v179 = vadd.f32 %v65, %v178
  %v180 = vpop.f32.mrb[0].mxu0
  %181 = vmatprep.mubr.f32.mxu0 0.0
  %182 = vmatmul.mubr.f32.gmra.mrb[0].mxu0 %v84
  %v183 = vpop.f32.mrb[0].mxu0
  %v184 = vadd.f32 %v65, %v183
  %v185 = vpop.f32.mrb[0].mxu0
  %186 = vmatprep.mubr.f32.mxu0 0.0
  %187 = vmatmul.mubr.f32.gmra.mrb[0].mxu0 %v87
  %v188 = vpop.f32.mrb[0].mxu0
  %v189 = vadd.f32 %v65, %v188
  %v190 = vpop.f32.mrb[0].mxu0
  %191 = vmatprep.mubr.f32.mxu0 0.0
  %192 = vmatmul.mubr.f32.gmra.mrb[0].mxu0 %v90
  %v193 = vpop.f32.mrb[0].mxu0
  %v194 = vadd.f32 %v65, %v193
  %v195 = vpop.f32.mrb[0].mxu0
  %196 = vdwg.mxu0
  %v197 = vmax.f32 %v159, 0.0
  %v198 = vmax.f32 %v164, 0.0
  %v199 = vmax.f32 %v169, 0.0
  %v200 = vmax.f32 %v174, 0.0
  %v201 = vmax.f32 %v179, 0.0
  %v202 = vmax.f32 %v184, 0.0
  %v203 = vmax.f32 %v189, 0.0
  %v204 = vmax.f32 %v194, 0.0
  %v205 = vld [vmem:[%s3] sm:$0xff]
  %v206 = vld [vmem:[%s3 + $0x8] sm:$0xff]
  %v207 = vld [vmem:[%s3 + $0x10] sm:$0xff]
  %v208 = vld [vmem:[%s3 + $0x18] sm:$0xff]
  %v209 = vld [vmem:[%s3 + $0x20] sm:$0xff]
  %v210 = vld [vmem:[%s3 + $0x28] sm:$0xff]
  %v211 = vld [vmem:[%s3 + $0x30] sm:$0xff]
  %v212 = vld [vmem:[%s3 + $0x38] sm:$0xff]
  %v213 = vld [vmem:[%s5] sm:$0x1]
  %v215 = vlaneseq
  %v216 = vshrl.u32 %v215, 7
  %v217 = vsub.s32 0, %v216
  %v218 = vrot.slane %v213, %v217
  %vm220 = vcmask 523264
  %v222 = vsel %vm220, %v197, 0
  %v225 = vsel %vm220, %v198, 0
  %v228 = vsel %vm220, %v199, 0
  %v231 = vsel %vm220, %v200, 0
  %v234 = vsel %vm220, %v201, 0
  %v237 = vsel %vm220, %v202, 0
  %v240 = vsel %vm220, %v203, 0
  %v243 = vsel %vm220, %v204, 0
  %245 = vmatprep.subr.mxu0 0.0
  %246 = vmatpush1.msra.mxu0 %v205
  %247 = vmatprep.subr.mxu0 0.0
  %248 = vmatpush1.msra.mxu0 %v206
  %249 = vmatprep.subr.mxu0 0.0
  %250 = vmatpush1.msra.mxu0 %v207
  %251 = vmatprep.subr.mxu0 0.0
  %252 = vmatpush1.msra.mxu0 %v208
  %253 = vmatprep.subr.mxu0 0.0
  %254 = vmatpush1.msra.mxu0 %v209
  %255 = vmatprep.subr.mxu0 0.0
  %256 = vmatpush1.msra.mxu0 %v210
  %257 = vmatprep.subr.mxu0 0.0
  %258 = vmatpush1.msra.mxu0 %v211
  %259 = vmatprep.subr.mxu0 0.0
  %260 = vmatpush1.msra.mxu0 %v212
  %261 = vmatprep.subr.mxu0 0.0
  %262 = vmatpush1.msra.mxu0 0.0
  %263 = vmatprep.subr.mxu0 0.0
  %264 = vmatpush1.msra.mxu0 0.0
  %265 = vmatprep.subr.mxu0 0.0
  %266 = vmatpush1.msra.mxu0 0.0
  %267 = vmatprep.subr.mxu0 0.0
  %268 = vmatpush1.msra.mxu0 0.0
  %269 = vmatprep.subr.mxu0 0.0
  %270 = vmatpush1.msra.mxu0 0.0
  %271 = vmatprep.subr.mxu0 0.0
  %272 = vmatpush1.msra.mxu0 0.0
  %273 = vmatprep.subr.mxu0 0.0
  %274 = vmatpush1.msra.mxu0 0.0
  %275 = vmatprep.subr.mxu0 0.0
  %276 = vmatpush1.msra.mxu0 0.0
  %277 = vmatprep.subr.mxu0 0.0
  %278 = vmatpush1.msra.mxu0 0.0
  %279 = vmatprep.subr.mxu0 0.0
  %280 = vmatpush1.msra.mxu0 0.0
  %281 = vmatprep.subr.mxu0 0.0
  %282 = vmatpush1.msra.mxu0 0.0
  %283 = vmatprep.subr.mxu0 0.0
  %284 = vmatpush1.msra.mxu0 0.0
  %285 = vmatprep.subr.mxu0 0.0
  %286 = vmatpush1.msra.mxu0 0.0
  %287 = vmatprep.subr.mxu0 0.0
  %288 = vmatpush1.msra.mxu0 0.0
  %289 = vmatprep.subr.mxu0 0.0
  %290 = vmatpush1.msra.mxu0 0.0
  %291 = vmatprep.subr.mxu0 0.0
  %292 = vmatpush1.msra.mxu0 0.0
  %293 = vmatprep.subr.mxu0 0.0
  %294 = vmatpush1.msra.mxu0 0.0
  %295 = vmatprep.subr.mxu0 0.0
  %296 = vmatpush1.msra.mxu0 0.0
  %297 = vmatprep.subr.mxu0 0.0
  %298 = vmatpush1.msra.mxu0 0.0
  %299 = vmatprep.subr.mxu0 0.0
  %300 = vmatpush1.msra.mxu0 0.0
  %301 = vmatprep.subr.mxu0 0.0
  %302 = vmatpush1.msra.mxu0 0.0
  %303 = vmatprep.subr.mxu0 0.0
  %304 = vmatpush1.msra.mxu0 0.0
  %305 = vmatprep.subr.mxu0 0.0
  %306 = vmatpush1.msra.mxu0 0.0
  %307 = vmatprep.subr.mxu0 0.0
  %308 = vmatpush1.msra.mxu0 0.0
  %309 = vmatprep.mubr.f32.mxu0 0.0
  %310 = vmatmul.mubr.f32.gmra.mrb[0].mxu0 %v222
  %v311 = vpop.f32.mrb[0].mxu0
  %v312 = vadd.f32 %v218, %v311
  %v313 = vpop.f32.mrb[0].mxu0
  %314 = vmatprep.mubr.f32.mxu0 0.0
  %315 = vmatmul.mubr.f32.gmra.mrb[0].mxu0 %v225
  %v316 = vpop.f32.mrb[0].mxu0
  %v317 = vadd.f32 %v218, %v316
  %v318 = vpop.f32.mrb[0].mxu0
  %319 = vmatprep.mubr.f32.mxu0 0.0
  %320 = vmatmul.mubr.f32.gmra.mrb[0].mxu0 %v228
  %v321 = vpop.f32.mrb[0].mxu0
  %v322 = vadd.f32 %v218, %v321
  %v323 = vpop.f32.mrb[0].mxu0
  %324 = vmatprep.mubr.f32.mxu0 0.0
  %325 = vmatmul.mubr.f32.gmra.mrb[0].mxu0 %v231
  %v326 = vpop.f32.mrb[0].mxu0
  %v327 = vadd.f32 %v218, %v326
  %v328 = vpop.f32.mrb[0].mxu0
  %329 = vmatprep.mubr.f32.mxu0 0.0
  %330 = vmatmul.mubr.f32.gmra.mrb[0].mxu0 %v234
  %v331 = vpop.f32.mrb[0].mxu0
  %v332 = vadd.f32 %v218, %v331
  %v333 = vpop.f32.mrb[0].mxu0
  %334 = vmatprep.mubr.f32.mxu0 0.0
  %335 = vmatmul.mubr.f32.gmra.mrb[0].mxu0 %v237
  %v336 = vpop.f32.mrb[0].mxu0
  %v337 = vadd.f32 %v218, %v336
  %v338 = vpop.f32.mrb[0].mxu0
  %339 = vmatprep.mubr.f32.mxu0 0.0
  %340 = vmatmul.mubr.f32.gmra.mrb[0].mxu0 %v240
  %v341 = vpop.f32.mrb[0].mxu0
  %v342 = vadd.f32 %v218, %v341
  %v343 = vpop.f32.mrb[0].mxu0
  %344 = vmatprep.mubr.f32.mxu0 0.0
  %345 = vmatmul.mubr.f32.gmra.mrb[0].mxu0 %v243
  %v346 = vpop.f32.mrb[0].mxu0
  %v347 = vadd.f32 %v218, %v346
  %v348 = vpop.f32.mrb[0].mxu0
  %349 = vdwg.mxu0
  %350 = vst [vmem:[#allocation2] sm:$0xff] %v312
  %351 = vst [vmem:[#allocation2 + $0x8] sm:$0xff] %v317
  %352 = vst [vmem:[#allocation2 + $0x10] sm:$0xff] %v322
  %353 = vst [vmem:[#allocation2 + $0x18] sm:$0xff] %v327
  %354 = vst [vmem:[#allocation2 + $0x20] sm:$0xff] %v332
  %355 = vst [vmem:[#allocation2 + $0x28] sm:$0xff] %v337
  %356 = vst [vmem:[#allocation2 + $0x30] sm:$0xff] %v342
  %357 = vst [vmem:[#allocation2 + $0x38] sm:$0xff] %v347
  %v358 = vld [vmem:[%s4] sm:$0xff]
  %v359 = vld [vmem:[%s4 + $0x8] sm:$0xff]
  %v360 = vld [vmem:[%s4 + $0x10] sm:$0xff]
  %v361 = vld [vmem:[%s4 + $0x18] sm:$0xff]
  %v362 = vld [vmem:[%s6] sm:$0xff]
  %v363 = vld [vmem:[%s6 + $0x8] sm:$0xff]
  %v364 = vld [vmem:[%s6 + $0x10] sm:$0xff]
  %v365 = vld [vmem:[%s6 + $0x18] sm:$0xff]
  %v366 = vld [vmem:[%s6 + $0x20] sm:$0xff]
  %v367 = vld [vmem:[%s6 + $0x28] sm:$0xff]
  %v368 = vld [vmem:[%s6 + $0x30] sm:$0xff]
  %v369 = vld [vmem:[%s6 + $0x38] sm:$0xff]
  %v370 = vld [vmem:[%s7] sm:$0x1]
  %v371 = vld [vmem:[#allocation2] sm:$0xff]
  %v372 = vmul.f32 %v371, 0.5
  %v373 = vtanh.pop %v372
  %v374 = vmul.f32 %v373, 0.5
  %v375 = vadd.f32 %v374, 0.5
  %v376 = vtanh.pop %v371
  %v377 = vmul.f32 %v375, 0.0
  %379 = vrot.lane.b32.xlu0 %v376, 64
  %v380 = vpop.permute.xlu0 %379
  %v382 = vmul.f32 %v375, %v380
  %384 = vrot.lane.b32.xlu0 %v382, 32
  %v385 = vpop.permute.xlu0 %384
  %v387 = vadd.f32 %v377, %v385
  %v388 = vtanh.pop %v387
  %390 = vrot.lane.b32.xlu0 %v388, 64
  %v391 = vpop.permute.xlu0 %390
  %v393 = vmul.f32 %v375, %v391
  %395 = vrot.lane.b32.xlu0 %v393, 32
  %v396 = vpop.permute.xlu0 %395
  %vm398 = vcmask 261120
  %v399 = vsel %vm398, %v396, 0.0
  %v401 = vlaneseq
  %v402 = vshrl.u32 %v401, 7
  %v403 = vsub.s32 0, %v402
  %v404 = vrot.slane %v370, %v403
  %v407 = vsel %vm220, %v399, 0
  %409 = vmatprep.subr.mxu0 0.0
  %410 = vmatpush1.msra.mxu0 %v362
  %411 = vmatprep.subr.mxu0 0.0
  %412 = vmatpush1.msra.mxu0 %v363
  %413 = vmatprep.subr.mxu0 0.0
  %414 = vmatpush1.msra.mxu0 %v364
  %415 = vmatprep.subr.mxu0 0.0
  %416 = vmatpush1.msra.mxu0 %v365
  %417 = vmatprep.subr.mxu0 0.0
  %418 = vmatpush1.msra.mxu0 %v366
  %419 = vmatprep.subr.mxu0 0.0
  %420 = vmatpush1.msra.mxu0 %v367
  %421 = vmatprep.subr.mxu0 0.0
  %422 = vmatpush1.msra.mxu0 %v368
  %423 = vmatprep.subr.mxu0 0.0
  %424 = vmatpush1.msra.mxu0 %v369
  %425 = vmatprep.subr.mxu0 0.0
  %426 = vmatpush1.msra.mxu0 0.0
  %427 = vmatprep.subr.mxu0 0.0
  %428 = vmatpush1.msra.mxu0 0.0
  %429 = vmatprep.subr.mxu0 0.0
  %430 = vmatpush1.msra.mxu0 0.0
  %431 = vmatprep.subr.mxu0 0.0
  %432 = vmatpush1.msra.mxu0 0.0
  %433 = vmatprep.subr.mxu0 0.0
  %434 = vmatpush1.msra.mxu0 0.0
  %435 = vmatprep.subr.mxu0 0.0
  %436 = vmatpush1.msra.mxu0 0.0
  %437 = vmatprep.subr.mxu0 0.0
  %438 = vmatpush1.msra.mxu0 0.0
  %439 = vmatprep.subr.mxu0 0.0
  %440 = vmatpush1.msra.mxu0 0.0
  %441 = vmatprep.subr.mxu0 0.0
  %442 = vmatpush1.msra.mxu0 0.0
  %443 = vmatprep.subr.mxu0 0.0
  %444 = vmatpush1.msra.mxu0 0.0
  %445 = vmatprep.subr.mxu0 0.0
  %446 = vmatpush1.msra.mxu0 0.0
  %447 = vmatprep.subr.mxu0 0.0
  %448 = vmatpush1.msra.mxu0 0.0
  %449 = vmatprep.subr.mxu0 0.0
  %450 = vmatpush1.msra.mxu0 0.0
  %451 = vmatprep.subr.mxu0 0.0
  %452 = vmatpush1.msra.mxu0 0.0
  %453 = vmatprep.subr.mxu0 0.0
  %454 = vmatpush1.msra.mxu0 0.0
  %455 = vmatprep.subr.mxu0 0.0
  %456 = vmatpush1.msra.mxu0 0.0
  %457 = vmatprep.subr.mxu0 0.0
  %458 = vmatpush1.msra.mxu0 0.0
  %459 = vmatprep.subr.mxu0 0.0
  %460 = vmatpush1.msra.mxu0 0.0
  %461 = vmatprep.subr.mxu0 0.0
  %462 = vmatpush1.msra.mxu0 0.0
  %463 = vmatprep.subr.mxu0 0.0
  %464 = vmatpush1.msra.mxu0 0.0
  %465 = vmatprep.subr.mxu0 0.0
  %466 = vmatpush1.msra.mxu0 0.0
  %467 = vmatprep.subr.mxu0 0.0
  %468 = vmatpush1.msra.mxu0 0.0
  %469 = vmatprep.subr.mxu0 0.0
  %470 = vmatpush1.msra.mxu0 0.0
  %471 = vmatprep.subr.mxu0 0.0
  %472 = vmatpush1.msra.mxu0 0.0
  %473 = vmatprep.mubr.f32.mxu0 0.0
  %474 = vmatmul.mubr.f32.gmra.mrb[0].mxu0 %v407
  %v475 = vpop.f32.mrb[0].mxu0
  %v476 = vadd.f32 %v404, %v475
  %v477 = vpop.f32.mrb[0].mxu0
  %478 = vdwg.mxu0
  %v479 = vmul.f32 %v476, 0.5
  %v480 = vtanh.pop %v479
  %v481 = vmul.f32 %v480, 0.5
  %v482 = vadd.f32 %v481, 0.5
  %v483 = vtanh.pop %v476
  %v484 = vmul.f32 %v482, 0.0
  %486 = vrot.lane.b32.xlu0 %v483, 64
  %v487 = vpop.permute.xlu0 %486
  %v489 = vmul.f32 %v482, %v487
  %491 = vrot.lane.b32.xlu0 %v489, 32
  %v492 = vpop.permute.xlu0 %491
  %v494 = vadd.f32 %v484, %v492
  %v495 = vtanh.pop %v494
  %497 = vrot.lane.b32.xlu0 %v495, 64
  %v498 = vpop.permute.xlu0 %497
  %v500 = vmul.f32 %v482, %v498
  %v501 = vld [vmem:[#allocation2 + $0x8] sm:$0xff]
  %v502 = vsel %vm398, %v396, 0
  %504 = vmatprep.subr.mxu0 0.0
  %505 = vmatpush1.msra.mxu0 %v358
  %506 = vmatprep.subr.mxu0 0.0
  %507 = vmatpush1.msra.mxu0 %v359
  %508 = vmatprep.subr.mxu0 0.0
  %509 = vmatpush1.msra.mxu0 %v360
  %510 = vmatprep.subr.mxu0 0.0
  %511 = vmatpush1.msra.mxu0 %v361
  %512 = vmatprep.subr.mxu0 0.0
  %513 = vmatpush1.msra.mxu0 0.0
  %514 = vmatprep.subr.mxu0 0.0
  %515 = vmatpush1.msra.mxu0 0.0
  %516 = vmatprep.subr.mxu0 0.0
  %517 = vmatpush1.msra.mxu0 0.0
  %518 = vmatprep.subr.mxu0 0.0
  %519 = vmatpush1.msra.mxu0 0.0
  %520 = vmatprep.subr.mxu0 0.0
  %521 = vmatpush1.msra.mxu0 0.0
  %522 = vmatprep.subr.mxu0 0.0
  %523 = vmatpush1.msra.mxu0 0.0
  %524 = vmatprep.subr.mxu0 0.0
  %525 = vmatpush1.msra.mxu0 0.0
  %526 = vmatprep.subr.mxu0 0.0
  %527 = vmatpush1.msra.mxu0 0.0
  %528 = vmatprep.subr.mxu0 0.0
  %529 = vmatpush1.msra.mxu0 0.0
  %530 = vmatprep.subr.mxu0 0.0
  %531 = vmatpush1.msra.mxu0 0.0
  %532 = vmatprep.subr.mxu0 0.0
  %533 = vmatpush1.msra.mxu0 0.0
  %534 = vmatprep.subr.mxu0 0.0
  %535 = vmatpush1.msra.mxu0 0.0
  %536 = vmatprep.subr.mxu0 0.0
  %537 = vmatpush1.msra.mxu0 0.0
  %538 = vmatprep.subr.mxu0 0.0
  %539 = vmatpush1.msra.mxu0 0.0
  %540 = vmatprep.subr.mxu0 0.0
  %541 = vmatpush1.msra.mxu0 0.0
  %542 = vmatprep.subr.mxu0 0.0
  %543 = vmatpush1.msra.mxu0 0.0
  %544 = vmatprep.subr.mxu0 0.0
  %545 = vmatpush1.msra.mxu0 0.0
  %546 = vmatprep.subr.mxu0 0.0
  %547 = vmatpush1.msra.mxu0 0.0
  %548 = vmatprep.subr.mxu0 0.0
  %549 = vmatpush1.msra.mxu0 0.0
  %550 = vmatprep.subr.mxu0 0.0
  %551 = vmatpush1.msra.mxu0 0.0
  %552 = vmatprep.subr.mxu0 0.0
  %553 = vmatpush1.msra.mxu0 0.0
  %554 = vmatprep.subr.mxu0 0.0
  %555 = vmatpush1.msra.mxu0 0.0
  %556 = vmatprep.subr.mxu0 0.0
  %557 = vmatpush1.msra.mxu0 0.0
  %558 = vmatprep.subr.mxu0 0.0
  %559 = vmatpush1.msra.mxu0 0.0
  %560 = vmatprep.subr.mxu0 0.0
  %561 = vmatpush1.msra.mxu0 0.0
  %562 = vmatprep.subr.mxu0 0.0
  %563 = vmatpush1.msra.mxu0 0.0
  %564 = vmatprep.subr.mxu0 0.0
  %565 = vmatpush1.msra.mxu0 0.0
  %566 = vmatprep.subr.mxu0 0.0
  %567 = vmatpush1.msra.mxu0 0.0
  %568 = vmatprep.mubr.f32.mxu0 0.0
  %569 = vmatmul.mubr.f32.gmra.mrb[0].mxu0 %v502
  %v570 = vpop.f32.mrb[0].mxu0
  %v571 = vadd.f32 0.0, %v570
  %v572 = vpop.f32.mrb[0].mxu0
  %573 = vdwg.mxu0
  %v574 = vadd.f32 %v501, %v571
  %v575 = vmul.f32 %v574, 0.5
  %v576 = vtanh.pop %v575
  %v577 = vmul.f32 %v576, 0.5
  %v578 = vadd.f32 %v577, 0.5
  %v579 = vtanh.pop %v574
  %v580 = vmul.f32 %v578, %v387
  %582 = vrot.lane.b32.xlu0 %v579, 64
  %v583 = vpop.permute.xlu0 %582
  %v585 = vmul.f32 %v578, %v583
  %587 = vrot.lane.b32.xlu0 %v585, 32
  %v588 = vpop.permute.xlu0 %587
  %v590 = vadd.f32 %v580, %v588
  %v591 = vtanh.pop %v590
  %593 = vrot.lane.b32.xlu0 %v591, 64
  %v594 = vpop.permute.xlu0 %593
  %v596 = vmul.f32 %v578, %v594
  %598 = vrot.lane.b32.xlu0 %v596, 32
  %v599 = vpop.permute.xlu0 %598
  %602 = vrot.lane.b32.xlu0 %v500, 64
  %v603 = vpop.permute.xlu0 %602
  %v605 = vsel %vm398, %v599, %v603
  %v607 = vsel %vm220, %v605, 0
  %609 = vmatprep.subr.mxu0 0.0
  %610 = vmatpush1.msra.mxu0 %v362
  %611 = vmatprep.subr.mxu0 0.0
  %612 = vmatpush1.msra.mxu0 %v363
  %613 = vmatprep.subr.mxu0 0.0
  %614 = vmatpush1.msra.mxu0 %v364
  %615 = vmatprep.subr.mxu0 0.0
  %616 = vmatpush1.msra.mxu0 %v365
  %617 = vmatprep.subr.mxu0 0.0
  %618 = vmatpush1.msra.mxu0 %v366
  %619 = vmatprep.subr.mxu0 0.0
  %620 = vmatpush1.msra.mxu0 %v367
  %621 = vmatprep.subr.mxu0 0.0
  %622 = vmatpush1.msra.mxu0 %v368
  %623 = vmatprep.subr.mxu0 0.0
  %624 = vmatpush1.msra.mxu0 %v369
  %625 = vmatprep.subr.mxu0 0.0
  %626 = vmatpush1.msra.mxu0 0.0
  %627 = vmatprep.subr.mxu0 0.0
  %628 = vmatpush1.msra.mxu0 0.0
  %629 = vmatprep.subr.mxu0 0.0
  %630 = vmatpush1.msra.mxu0 0.0
  %631 = vmatprep.subr.mxu0 0.0
  %632 = vmatpush1.msra.mxu0 0.0
  %633 = vmatprep.subr.mxu0 0.0
  %634 = vmatpush1.msra.mxu0 0.0
  %635 = vmatprep.subr.mxu0 0.0
  %636 = vmatpush1.msra.mxu0 0.0
  %637 = vmatprep.subr.mxu0 0.0
  %638 = vmatpush1.msra.mxu0 0.0
  %639 = vmatprep.subr.mxu0 0.0
  %640 = vmatpush1.msra.mxu0 0.0
  %641 = vmatprep.subr.mxu0 0.0
  %642 = vmatpush1.msra.mxu0 0.0
  %643 = vmatprep.subr.mxu0 0.0
  %644 = vmatpush1.msra.mxu0 0.0
  %645 = vmatprep.subr.mxu0 0.0
  %646 = vmatpush1.msra.mxu0 0.0
  %647 = vmatprep.subr.mxu0 0.0
  %648 = vmatpush1.msra.mxu0 0.0
  %649 = vmatprep.subr.mxu0 0.0
  %650 = vmatpush1.msra.mxu0 0.0
  %651 = vmatprep.subr.mxu0 0.0
  %652 = vmatpush1.msra.mxu0 0.0
  %653 = vmatprep.subr.mxu0 0.0
  %654 = vmatpush1.msra.mxu0 0.0
  %655 = vmatprep.subr.mxu0 0.0
  %656 = vmatpush1.msra.mxu0 0.0
  %657 = vmatprep.subr.mxu0 0.0
  %658 = vmatpush1.msra.mxu0 0.0
  %659 = vmatprep.subr.mxu0 0.0
  %660 = vmatpush1.msra.mxu0 0.0
  %661 = vmatprep.subr.mxu0 0.0
  %662 = vmatpush1.msra.mxu0 0.0
  %663 = vmatprep.subr.mxu0 0.0
  %664 = vmatpush1.msra.mxu0 0.0
  %665 = vmatprep.subr.mxu0 0.0
  %666 = vmatpush1.msra.mxu0 0.0
  %667 = vmatprep.subr.mxu0 0.0
  %668 = vmatpush1.msra.mxu0 0.0
  %669 = vmatprep.subr.mxu0 0.0
  %670 = vmatpush1.msra.mxu0 0.0
  %671 = vmatprep.subr.mxu0 0.0
  %672 = vmatpush1.msra.mxu0 0.0
  %673 = vmatprep.mubr.f32.mxu0 0.0
  %674 = vmatmul.mubr.f32.gmra.mrb[0].mxu0 %v607
  %v675 = vpop.f32.mrb[0].mxu0
  %v676 = vadd.f32 %v404, %v675
  %v677 = vpop.f32.mrb[0].mxu0
  %678 = vdwg.mxu0
  %v679 = vmul.f32 %v676, 0.5
  %v680 = vtanh.pop %v679
  %v681 = vmul.f32 %v680, 0.5
  %v682 = vadd.f32 %v681, 0.5
  %v683 = vtanh.pop %v676
  %v684 = vmul.f32 %v682, %v494
  %686 = vrot.lane.b32.xlu0 %v683, 64
  %v687 = vpop.permute.xlu0 %686
  %v689 = vmul.f32 %v682, %v687
  %691 = vrot.lane.b32.xlu0 %v689, 32
  %v692 = vpop.permute.xlu0 %691
  %v694 = vadd.f32 %v684, %v692
  %v695 = vtanh.pop %v694
  %697 = vrot.lane.b32.xlu0 %v695, 64
  %v698 = vpop.permute.xlu0 %697
  %v700 = vmul.f32 %v682, %v698
  %v701 = vld [vmem:[#allocation2 + $0x10] sm:$0xff]
  %v702 = vsel %vm398, %v599, 0
  %704 = vmatprep.subr.mxu0 0.0
  %705 = vmatpush1.msra.mxu0 %v358
  %706 = vmatprep.subr.mxu0 0.0
  %707 = vmatpush1.msra.mxu0 %v359
  %708 = vmatprep.subr.mxu0 0.0
  %709 = vmatpush1.msra.mxu0 %v360
  %710 = vmatprep.subr.mxu0 0.0
  %711 = vmatpush1.msra.mxu0 %v361
  %712 = vmatprep.subr.mxu0 0.0
  %713 = vmatpush1.msra.mxu0 0.0
  %714 = vmatprep.subr.mxu0 0.0
  %715 = vmatpush1.msra.mxu0 0.0
  %716 = vmatprep.subr.mxu0 0.0
  %717 = vmatpush1.msra.mxu0 0.0
  %718 = vmatprep.subr.mxu0 0.0
  %719 = vmatpush1.msra.mxu0 0.0
  %720 = vmatprep.subr.mxu0 0.0
  %721 = vmatpush1.msra.mxu0 0.0
  %722 = vmatprep.subr.mxu0 0.0
  %723 = vmatpush1.msra.mxu0 0.0
  %724 = vmatprep.subr.mxu0 0.0
  %725 = vmatpush1.msra.mxu0 0.0
  %726 = vmatprep.subr.mxu0 0.0
  %727 = vmatpush1.msra.mxu0 0.0
  %728 = vmatprep.subr.mxu0 0.0
  %729 = vmatpush1.msra.mxu0 0.0
  %730 = vmatprep.subr.mxu0 0.0
  %731 = vmatpush1.msra.mxu0 0.0
  %732 = vmatprep.subr.mxu0 0.0
  %733 = vmatpush1.msra.mxu0 0.0
  %734 = vmatprep.subr.mxu0 0.0
  %735 = vmatpush1.msra.mxu0 0.0
  %736 = vmatprep.subr.mxu0 0.0
  %737 = vmatpush1.msra.mxu0 0.0
  %738 = vmatprep.subr.mxu0 0.0
  %739 = vmatpush1.msra.mxu0 0.0
  %740 = vmatprep.subr.mxu0 0.0
  %741 = vmatpush1.msra.mxu0 0.0
  %742 = vmatprep.subr.mxu0 0.0
  %743 = vmatpush1.msra.mxu0 0.0
  %744 = vmatprep.subr.mxu0 0.0
  %745 = vmatpush1.msra.mxu0 0.0
  %746 = vmatprep.subr.mxu0 0.0
  %747 = vmatpush1.msra.mxu0 0.0
  %748 = vmatprep.subr.mxu0 0.0
  %749 = vmatpush1.msra.mxu0 0.0
  %750 = vmatprep.subr.mxu0 0.0
  %751 = vmatpush1.msra.mxu0 0.0
  %752 = vmatprep.subr.mxu0 0.0
  %753 = vmatpush1.msra.mxu0 0.0
  %754 = vmatprep.subr.mxu0 0.0
  %755 = vmatpush1.msra.mxu0 0.0
  %756 = vmatprep.subr.mxu0 0.0
  %757 = vmatpush1.msra.mxu0 0.0
  %758 = vmatprep.subr.mxu0 0.0
  %759 = vmatpush1.msra.mxu0 0.0
  %760 = vmatprep.subr.mxu0 0.0
  %761 = vmatpush1.msra.mxu0 0.0
  %762 = vmatprep.subr.mxu0 0.0
  %763 = vmatpush1.msra.mxu0 0.0
  %764 = vmatprep.subr.mxu0 0.0
  %765 = vmatpush1.msra.mxu0 0.0
  %766 = vmatprep.subr.mxu0 0.0
  %767 = vmatpush1.msra.mxu0 0.0
  %768 = vmatprep.mubr.f32.mxu0 0.0
  %769 = vmatmul.mubr.f32.gmra.mrb[0].mxu0 %v702
  %v770 = vpop.f32.mrb[0].mxu0
  %v771 = vadd.f32 0.0, %v770
  %v772 = vpop.f32.mrb[0].mxu0
  %773 = vdwg.mxu0
  %v774 = vadd.f32 %v701, %v771
  %v775 = vmul.f32 %v774, 0.5
  %v776 = vtanh.pop %v775
  %v777 = vmul.f32 %v776, 0.5
  %v778 = vadd.f32 %v777, 0.5
  %v779 = vtanh.pop %v774
  %v780 = vmul.f32 %v778, %v590
  %782 = vrot.lane.b32.xlu0 %v779, 64
  %v783 = vpop.permute.xlu0 %782
  %v785 = vmul.f32 %v778, %v783
  %787 = vrot.lane.b32.xlu0 %v785, 32
  %v788 = vpop.permute.xlu0 %787
  %v790 = vadd.f32 %v780, %v788
  %v791 = vtanh.pop %v790
  %793 = vrot.lane.b32.xlu0 %v791, 64
  %v794 = vpop.permute.xlu0 %793
  %v796 = vmul.f32 %v778, %v794
  %798 = vrot.lane.b32.xlu0 %v796, 32
  %v799 = vpop.permute.xlu0 %798
  %802 = vrot.lane.b32.xlu0 %v700, 64
  %v803 = vpop.permute.xlu0 %802
  %v805 = vsel %vm398, %v799, %v803
  %v807 = vsel %vm220, %v805, 0
  %809 = vmatprep.subr.mxu0 0.0
  %810 = vmatpush1.msra.mxu0 %v362
  %811 = vmatprep.subr.mxu0 0.0
  %812 = vmatpush1.msra.mxu0 %v363
  %813 = vmatprep.subr.mxu0 0.0
  %814 = vmatpush1.msra.mxu0 %v364
  %815 = vmatprep.subr.mxu0 0.0
  %816 = vmatpush1.msra.mxu0 %v365
  %817 = vmatprep.subr.mxu0 0.0
  %818 = vmatpush1.msra.mxu0 %v366
  %819 = vmatprep.subr.mxu0 0.0
  %820 = vmatpush1.msra.mxu0 %v367
  %821 = vmatprep.subr.mxu0 0.0
  %822 = vmatpush1.msra.mxu0 %v368
  %823 = vmatprep.subr.mxu0 0.0
  %824 = vmatpush1.msra.mxu0 %v369
  %825 = vmatprep.subr.mxu0 0.0
  %826 = vmatpush1.msra.mxu0 0.0
  %827 = vmatprep.subr.mxu0 0.0
  %828 = vmatpush1.msra.mxu0 0.0
  %829 = vmatprep.subr.mxu0 0.0
  %830 = vmatpush1.msra.mxu0 0.0
  %831 = vmatprep.subr.mxu0 0.0
  %832 = vmatpush1.msra.mxu0 0.0
  %833 = vmatprep.subr.mxu0 0.0
  %834 = vmatpush1.msra.mxu0 0.0
  %835 = vmatprep.subr.mxu0 0.0
  %836 = vmatpush1.msra.mxu0 0.0
  %837 = vmatprep.subr.mxu0 0.0
  %838 = vmatpush1.msra.mxu0 0.0
  %839 = vmatprep.subr.mxu0 0.0
  %840 = vmatpush1.msra.mxu0 0.0
  %841 = vmatprep.subr.mxu0 0.0
  %842 = vmatpush1.msra.mxu0 0.0
  %843 = vmatprep.subr.mxu0 0.0
  %844 = vmatpush1.msra.mxu0 0.0
  %845 = vmatprep.subr.mxu0 0.0
  %846 = vmatpush1.msra.mxu0 0.0
  %847 = vmatprep.subr.mxu0 0.0
  %848 = vmatpush1.msra.mxu0 0.0
  %849 = vmatprep.subr.mxu0 0.0
  %850 = vmatpush1.msra.mxu0 0.0
  %851 = vmatprep.subr.mxu0 0.0
  %852 = vmatpush1.msra.mxu0 0.0
  %853 = vmatprep.subr.mxu0 0.0
  %854 = vmatpush1.msra.mxu0 0.0
  %855 = vmatprep.subr.mxu0 0.0
  %856 = vmatpush1.msra.mxu0 0.0
  %857 = vmatprep.subr.mxu0 0.0
  %858 = vmatpush1.msra.mxu0 0.0
  %859 = vmatprep.subr.mxu0 0.0
  %860 = vmatpush1.msra.mxu0 0.0
  %861 = vmatprep.subr.mxu0 0.0
  %862 = vmatpush1.msra.mxu0 0.0
  %863 = vmatprep.subr.mxu0 0.0
  %864 = vmatpush1.msra.mxu0 0.0
  %865 = vmatprep.subr.mxu0 0.0
  %866 = vmatpush1.msra.mxu0 0.0
  %867 = vmatprep.subr.mxu0 0.0
  %868 = vmatpush1.msra.mxu0 0.0
  %869 = vmatprep.subr.mxu0 0.0
  %870 = vmatpush1.msra.mxu0 0.0
  %871 = vmatprep.subr.mxu0 0.0
  %872 = vmatpush1.msra.mxu0 0.0
  %873 = vmatprep.mubr.f32.mxu0 0.0
  %874 = vmatmul.mubr.f32.gmra.mrb[0].mxu0 %v807
  %v875 = vpop.f32.mrb[0].mxu0
  %v876 = vadd.f32 %v404, %v875
  %v877 = vpop.f32.mrb[0].mxu0
  %878 = vdwg.mxu0
  %v879 = vmul.f32 %v876, 0.5
  %v880 = vtanh.pop %v879
  %v881 = vmul.f32 %v880, 0.5
  %v882 = vadd.f32 %v881, 0.5
  %v883 = vtanh.pop %v876
  %v884 = vmul.f32 %v882, %v694
  %886 = vrot.lane.b32.xlu0 %v883, 64
  %v887 = vpop.permute.xlu0 %886
  %v889 = vmul.f32 %v882, %v887
  %891 = vrot.lane.b32.xlu0 %v889, 32
  %v892 = vpop.permute.xlu0 %891
  %v894 = vadd.f32 %v884, %v892
  %v895 = vtanh.pop %v894
  %897 = vrot.lane.b32.xlu0 %v895, 64
  %v898 = vpop.permute.xlu0 %897
  %v900 = vmul.f32 %v882, %v898
  %v901 = vld [vmem:[#allocation2 + $0x18] sm:$0xff]
  %v902 = vsel %vm398, %v799, 0
  %904 = vmatprep.subr.mxu0 0.0
  %905 = vmatpush1.msra.mxu0 %v358
  %906 = vmatprep.subr.mxu0 0.0
  %907 = vmatpush1.msra.mxu0 %v359
  %908 = vmatprep.subr.mxu0 0.0
  %909 = vmatpush1.msra.mxu0 %v360
  %910 = vmatprep.subr.mxu0 0.0
  %911 = vmatpush1.msra.mxu0 %v361
  %912 = vmatprep.subr.mxu0 0.0
  %913 = vmatpush1.msra.mxu0 0.0
  %914 = vmatprep.subr.mxu0 0.0
  %915 = vmatpush1.msra.mxu0 0.0
  %916 = vmatprep.subr.mxu0 0.0
  %917 = vmatpush1.msra.mxu0 0.0
  %918 = vmatprep.subr.mxu0 0.0
  %919 = vmatpush1.msra.mxu0 0.0
  %920 = vmatprep.subr.mxu0 0.0
  %921 = vmatpush1.msra.mxu0 0.0
  %922 = vmatprep.subr.mxu0 0.0
  %923 = vmatpush1.msra.mxu0 0.0
  %924 = vmatprep.subr.mxu0 0.0
  %925 = vmatpush1.msra.mxu0 0.0
  %926 = vmatprep.subr.mxu0 0.0
  %927 = vmatpush1.msra.mxu0 0.0
  %928 = vmatprep.subr.mxu0 0.0
  %929 = vmatpush1.msra.mxu0 0.0
  %930 = vmatprep.subr.mxu0 0.0
  %931 = vmatpush1.msra.mxu0 0.0
  %932 = vmatprep.subr.mxu0 0.0
  %933 = vmatpush1.msra.mxu0 0.0
  %934 = vmatprep.subr.mxu0 0.0
  %935 = vmatpush1.msra.mxu0 0.0
  %936 = vmatprep.subr.mxu0 0.0
  %937 = vmatpush1.msra.mxu0 0.0
  %938 = vmatprep.subr.mxu0 0.0
  %939 = vmatpush1.msra.mxu0 0.0
  %940 = vmatprep.subr.mxu0 0.0
  %941 = vmatpush1.msra.mxu0 0.0
  %942 = vmatprep.subr.mxu0 0.0
  %943 = vmatpush1.msra.mxu0 0.0
  %944 = vmatprep.subr.mxu0 0.0
  %945 = vmatpush1.msra.mxu0 0.0
  %946 = vmatprep.subr.mxu0 0.0
  %947 = vmatpush1.msra.mxu0 0.0
  %948 = vmatprep.subr.mxu0 0.0
  %949 = vmatpush1.msra.mxu0 0.0
  %950 = vmatprep.subr.mxu0 0.0
  %951 = vmatpush1.msra.mxu0 0.0
  %952 = vmatprep.subr.mxu0 0.0
  %953 = vmatpush1.msra.mxu0 0.0
  %954 = vmatprep.subr.mxu0 0.0
  %955 = vmatpush1.msra.mxu0 0.0
  %956 = vmatprep.subr.mxu0 0.0
  %957 = vmatpush1.msra.mxu0 0.0
  %958 = vmatprep.subr.mxu0 0.0
  %959 = vmatpush1.msra.mxu0 0.0
  %960 = vmatprep.subr.mxu0 0.0
  %961 = vmatpush1.msra.mxu0 0.0
  %962 = vmatprep.subr.mxu0 0.0
  %963 = vmatpush1.msra.mxu0 0.0
  %964 = vmatprep.subr.mxu0 0.0
  %965 = vmatpush1.msra.mxu0 0.0
  %966 = vmatprep.subr.mxu0 0.0
  %967 = vmatpush1.msra.mxu0 0.0
  %968 = vmatprep.mubr.f32.mxu0 0.0
  %969 = vmatmul.mubr.f32.gmra.mrb[0].mxu0 %v902
  %v970 = vpop.f32.mrb[0].mxu0
  %v971 = vadd.f32 0.0, %v970
  %v972 = vpop.f32.mrb[0].mxu0
  %973 = vdwg.mxu0
  %v974 = vadd.f32 %v901, %v971
  %v975 = vmul.f32 %v974, 0.5
  %v976 = vtanh.pop %v975
  %v977 = vmul.f32 %v976, 0.5
  %v978 = vadd.f32 %v977, 0.5
  %v979 = vtanh.pop %v974
  %v980 = vmul.f32 %v978, %v790
  %982 = vrot.lane.b32.xlu0 %v979, 64
  %v983 = vpop.permute.xlu0 %982
  %v985 = vmul.f32 %v978, %v983
  %987 = vrot.lane.b32.xlu0 %v985, 32
  %v988 = vpop.permute.xlu0 %987
  %v990 = vadd.f32 %v980, %v988
  %v991 = vtanh.pop %v990
  %993 = vrot.lane.b32.xlu0 %v991, 64
  %v994 = vpop.permute.xlu0 %993
  %v996 = vmul.f32 %v978, %v994
  %998 = vrot.lane.b32.xlu0 %v996, 32
  %v999 = vpop.permute.xlu0 %998
  %1002 = vrot.lane.b32.xlu0 %v900, 64
  %v1003 = vpop.permute.xlu0 %1002
  %v1005 = vsel %vm398, %v999, %v1003
  %v1007 = vsel %vm220, %v1005, 0
  %1009 = vmatprep.subr.mxu0 0.0
  %1010 = vmatpush1.msra.mxu0 %v362
  %1011 = vmatprep.subr.mxu0 0.0
  %1012 = vmatpush1.msra.mxu0 %v363
  %1013 = vmatprep.subr.mxu0 0.0
  %1014 = vmatpush1.msra.mxu0 %v364
  %1015 = vmatprep.subr.mxu0 0.0
  %1016 = vmatpush1.msra.mxu0 %v365
  %1017 = vmatprep.subr.mxu0 0.0
  %1018 = vmatpush1.msra.mxu0 %v366
  %1019 = vmatprep.subr.mxu0 0.0
  %1020 = vmatpush1.msra.mxu0 %v367
  %1021 = vmatprep.subr.mxu0 0.0
  %1022 = vmatpush1.msra.mxu0 %v368
  %1023 = vmatprep.subr.mxu0 0.0
  %1024 = vmatpush1.msra.mxu0 %v369
  %1025 = vmatprep.subr.mxu0 0.0
  %1026 = vmatpush1.msra.mxu0 0.0
  %1027 = vmatprep.subr.mxu0 0.0
  %1028 = vmatpush1.msra.mxu0 0.0
  %1029 = vmatprep.subr.mxu0 0.0
  %1030 = vmatpush1.msra.mxu0 0.0
  %1031 = vmatprep.subr.mxu0 0.0
  %1032 = vmatpush1.msra.mxu0 0.0
  %1033 = vmatprep.subr.mxu0 0.0
  %1034 = vmatpush1.msra.mxu0 0.0
  %1035 = vmatprep.subr.mxu0 0.0
  %1036 = vmatpush1.msra.mxu0 0.0
  %1037 = vmatprep.subr.mxu0 0.0
  %1038 = vmatpush1.msra.mxu0 0.0
  %1039 = vmatprep.subr.mxu0 0.0
  %1040 = vmatpush1.msra.mxu0 0.0
  %1041 = vmatprep.subr.mxu0 0.0
  %1042 = vmatpush1.msra.mxu0 0.0
  %1043 = vmatprep.subr.mxu0 0.0
  %1044 = vmatpush1.msra.mxu0 0.0
  %1045 = vmatprep.subr.mxu0 0.0
  %1046 = vmatpush1.msra.mxu0 0.0
  %1047 = vmatprep.subr.mxu0 0.0
  %1048 = vmatpush1.msra.mxu0 0.0
  %1049 = vmatprep.subr.mxu0 0.0
  %1050 = vmatpush1.msra.mxu0 0.0
  %1051 = vmatprep.subr.mxu0 0.0
  %1052 = vmatpush1.msra.mxu0 0.0
  %1053 = vmatprep.subr.mxu0 0.0
  %1054 = vmatpush1.msra.mxu0 0.0
  %1055 = vmatprep.subr.mxu0 0.0
  %1056 = vmatpush1.msra.mxu0 0.0
  %1057 = vmatprep.subr.mxu0 0.0
  %1058 = vmatpush1.msra.mxu0 0.0
  %1059 = vmatprep.subr.mxu0 0.0
  %1060 = vmatpush1.msra.mxu0 0.0
  %1061 = vmatprep.subr.mxu0 0.0
  %1062 = vmatpush1.msra.mxu0 0.0
  %1063 = vmatprep.subr.mxu0 0.0
  %1064 = vmatpush1.msra.mxu0 0.0
  %1065 = vmatprep.subr.mxu0 0.0
  %1066 = vmatpush1.msra.mxu0 0.0
  %1067 = vmatprep.subr.mxu0 0.0
  %1068 = vmatpush1.msra.mxu0 0.0
  %1069 = vmatprep.subr.mxu0 0.0
  %1070 = vmatpush1.msra.mxu0 0.0
  %1071 = vmatprep.subr.mxu0 0.0
  %1072 = vmatpush1.msra.mxu0 0.0
  %1073 = vmatprep.mubr.f32.mxu0 0.0
  %1074 = vmatmul.mubr.f32.gmra.mrb[0].mxu0 %v1007
  %v1075 = vpop.f32.mrb[0].mxu0
  %v1076 = vadd.f32 %v404, %v1075
  %v1077 = vpop.f32.mrb[0].mxu0
  %1078 = vdwg.mxu0
  %v1079 = vmul.f32 %v1076, 0.5
  %v1080 = vtanh.pop %v1079
  %v1081 = vmul.f32 %v1080, 0.5
  %v1082 = vadd.f32 %v1081, 0.5
  %v1083 = vtanh.pop %v1076
  %v1084 = vmul.f32 %v1082, %v894
  %1086 = vrot.lane.b32.xlu0 %v1083, 64
  %v1087 = vpop.permute.xlu0 %1086
  %v1089 = vmul.f32 %v1082, %v1087
  %1091 = vrot.lane.b32.xlu0 %v1089, 32
  %v1092 = vpop.permute.xlu0 %1091
  %v1094 = vadd.f32 %v1084, %v1092
  %v1095 = vtanh.pop %v1094
  %1097 = vrot.lane.b32.xlu0 %v1095, 64
  %v1098 = vpop.permute.xlu0 %1097
  %v1100 = vmul.f32 %v1082, %v1098
  %v1101 = vld [vmem:[#allocation2 + $0x20] sm:$0xff]
  %v1102 = vsel %vm398, %v999, 0
  %1104 = vmatprep.subr.mxu0 0.0
  %1105 = vmatpush1.msra.mxu0 %v358
  %1106 = vmatprep.subr.mxu0 0.0
  %1107 = vmatpush1.msra.mxu0 %v359
  %1108 = vmatprep.subr.mxu0 0.0
  %1109 = vmatpush1.msra.mxu0 %v360
  %1110 = vmatprep.subr.mxu0 0.0
  %1111 = vmatpush1.msra.mxu0 %v361
  %1112 = vmatprep.subr.mxu0 0.0
  %1113 = vmatpush1.msra.mxu0 0.0
  %1114 = vmatprep.subr.mxu0 0.0
  %1115 = vmatpush1.msra.mxu0 0.0
  %1116 = vmatprep.subr.mxu0 0.0
  %1117 = vmatpush1.msra.mxu0 0.0
  %1118 = vmatprep.subr.mxu0 0.0
  %1119 = vmatpush1.msra.mxu0 0.0
  %1120 = vmatprep.subr.mxu0 0.0
  %1121 = vmatpush1.msra.mxu0 0.0
  %1122 = vmatprep.subr.mxu0 0.0
  %1123 = vmatpush1.msra.mxu0 0.0
  %1124 = vmatprep.subr.mxu0 0.0
  %1125 = vmatpush1.msra.mxu0 0.0
  %1126 = vmatprep.subr.mxu0 0.0
  %1127 = vmatpush1.msra.mxu0 0.0
  %1128 = vmatprep.subr.mxu0 0.0
  %1129 = vmatpush1.msra.mxu0 0.0
  %1130 = vmatprep.subr.mxu0 0.0
  %1131 = vmatpush1.msra.mxu0 0.0
  %1132 = vmatprep.subr.mxu0 0.0
  %1133 = vmatpush1.msra.mxu0 0.0
  %1134 = vmatprep.subr.mxu0 0.0
  %1135 = vmatpush1.msra.mxu0 0.0
  %1136 = vmatprep.subr.mxu0 0.0
  %1137 = vmatpush1.msra.mxu0 0.0
  %1138 = vmatprep.subr.mxu0 0.0
  %1139 = vmatpush1.msra.mxu0 0.0
  %1140 = vmatprep.subr.mxu0 0.0
  %1141 = vmatpush1.msra.mxu0 0.0
  %1142 = vmatprep.subr.mxu0 0.0
  %1143 = vmatpush1.msra.mxu0 0.0
  %1144 = vmatprep.subr.mxu0 0.0
  %1145 = vmatpush1.msra.mxu0 0.0
  %1146 = vmatprep.subr.mxu0 0.0
  %1147 = vmatpush1.msra.mxu0 0.0
  %1148 = vmatprep.subr.mxu0 0.0
  %1149 = vmatpush1.msra.mxu0 0.0
  %1150 = vmatprep.subr.mxu0 0.0
  %1151 = vmatpush1.msra.mxu0 0.0
  %1152 = vmatprep.subr.mxu0 0.0
  %1153 = vmatpush1.msra.mxu0 0.0
  %1154 = vmatprep.subr.mxu0 0.0
  %1155 = vmatpush1.msra.mxu0 0.0
  %1156 = vmatprep.subr.mxu0 0.0
  %1157 = vmatpush1.msra.mxu0 0.0
  %1158 = vmatprep.subr.mxu0 0.0
  %1159 = vmatpush1.msra.mxu0 0.0
  %1160 = vmatprep.subr.mxu0 0.0
  %1161 = vmatpush1.msra.mxu0 0.0
  %1162 = vmatprep.subr.mxu0 0.0
  %1163 = vmatpush1.msra.mxu0 0.0
  %1164 = vmatprep.subr.mxu0 0.0
  %1165 = vmatpush1.msra.mxu0 0.0
  %1166 = vmatprep.subr.mxu0 0.0
  %1167 = vmatpush1.msra.mxu0 0.0
  %1168 = vmatprep.mubr.f32.mxu0 0.0
  %1169 = vmatmul.mubr.f32.gmra.mrb[0].mxu0 %v1102
  %v1170 = vpop.f32.mrb[0].mxu0
  %v1171 = vadd.f32 0.0, %v1170
  %v1172 = vpop.f32.mrb[0].mxu0
  %1173 = vdwg.mxu0
  %v1174 = vadd.f32 %v1101, %v1171
  %v1175 = vmul.f32 %v1174, 0.5
  %v1176 = vtanh.pop %v1175
  %v1177 = vmul.f32 %v1176, 0.5
  %v1178 = vadd.f32 %v1177, 0.5
  %v1179 = vtanh.pop %v1174
  %v1180 = vmul.f32 %v1178, %v990
  %1182 = vrot.lane.b32.xlu0 %v1179, 64
  %v1183 = vpop.permute.xlu0 %1182
  %v1185 = vmul.f32 %v1178, %v1183
  %1187 = vrot.lane.b32.xlu0 %v1185, 32
  %v1188 = vpop.permute.xlu0 %1187
  %v1190 = vadd.f32 %v1180, %v1188
  %v1191 = vtanh.pop %v1190
  %1193 = vrot.lane.b32.xlu0 %v1191, 64
  %v1194 = vpop.permute.xlu0 %1193
  %v1196 = vmul.f32 %v1178, %v1194
  %1198 = vrot.lane.b32.xlu0 %v1196, 32
  %v1199 = vpop.permute.xlu0 %1198
  %1202 = vrot.lane.b32.xlu0 %v1100, 64
  %v1203 = vpop.permute.xlu0 %1202
  %v1205 = vsel %vm398, %v1199, %v1203
  %v1207 = vsel %vm220, %v1205, 0
  %1209 = vmatprep.subr.mxu0 0.0
  %1210 = vmatpush1.msra.mxu0 %v362
  %1211 = vmatprep.subr.mxu0 0.0
  %1212 = vmatpush1.msra.mxu0 %v363
  %1213 = vmatprep.subr.mxu0 0.0
  %1214 = vmatpush1.msra.mxu0 %v364
  %1215 = vmatprep.subr.mxu0 0.0
  %1216 = vmatpush1.msra.mxu0 %v365
  %1217 = vmatprep.subr.mxu0 0.0
  %1218 = vmatpush1.msra.mxu0 %v366
  %1219 = vmatprep.subr.mxu0 0.0
  %1220 = vmatpush1.msra.mxu0 %v367
  %1221 = vmatprep.subr.mxu0 0.0
  %1222 = vmatpush1.msra.mxu0 %v368
  %1223 = vmatprep.subr.mxu0 0.0
  %1224 = vmatpush1.msra.mxu0 %v369
  %1225 = vmatprep.subr.mxu0 0.0
  %1226 = vmatpush1.msra.mxu0 0.0
  %1227 = vmatprep.subr.mxu0 0.0
  %1228 = vmatpush1.msra.mxu0 0.0
  %1229 = vmatprep.subr.mxu0 0.0
  %1230 = vmatpush1.msra.mxu0 0.0
  %1231 = vmatprep.subr.mxu0 0.0
  %1232 = vmatpush1.msra.mxu0 0.0
  %1233 = vmatprep.subr.mxu0 0.0
  %1234 = vmatpush1.msra.mxu0 0.0
  %1235 = vmatprep.subr.mxu0 0.0
  %1236 = vmatpush1.msra.mxu0 0.0
  %1237 = vmatprep.subr.mxu0 0.0
  %1238 = vmatpush1.msra.mxu0 0.0
  %1239 = vmatprep.subr.mxu0 0.0
  %1240 = vmatpush1.msra.mxu0 0.0
  %1241 = vmatprep.subr.mxu0 0.0
  %1242 = vmatpush1.msra.mxu0 0.0
  %1243 = vmatprep.subr.mxu0 0.0
  %1244 = vmatpush1.msra.mxu0 0.0
  %1245 = vmatprep.subr.mxu0 0.0
  %1246 = vmatpush1.msra.mxu0 0.0
  %1247 = vmatprep.subr.mxu0 0.0
  %1248 = vmatpush1.msra.mxu0 0.0
  %1249 = vmatprep.subr.mxu0 0.0
  %1250 = vmatpush1.msra.mxu0 0.0
  %1251 = vmatprep.subr.mxu0 0.0
  %1252 = vmatpush1.msra.mxu0 0.0
  %1253 = vmatprep.subr.mxu0 0.0
  %1254 = vmatpush1.msra.mxu0 0.0
  %1255 = vmatprep.subr.mxu0 0.0
  %1256 = vmatpush1.msra.mxu0 0.0
  %1257 = vmatprep.subr.mxu0 0.0
  %1258 = vmatpush1.msra.mxu0 0.0
  %1259 = vmatprep.subr.mxu0 0.0
  %1260 = vmatpush1.msra.mxu0 0.0
  %1261 = vmatprep.subr.mxu0 0.0
  %1262 = vmatpush1.msra.mxu0 0.0
  %1263 = vmatprep.subr.mxu0 0.0
  %1264 = vmatpush1.msra.mxu0 0.0
  %1265 = vmatprep.subr.mxu0 0.0
  %1266 = vmatpush1.msra.mxu0 0.0
  %1267 = vmatprep.subr.mxu0 0.0
  %1268 = vmatpush1.msra.mxu0 0.0
  %1269 = vmatprep.subr.mxu0 0.0
  %1270 = vmatpush1.msra.mxu0 0.0
  %1271 = vmatprep.subr.mxu0 0.0
  %1272 = vmatpush1.msra.mxu0 0.0
  %1273 = vmatprep.mubr.f32.mxu0 0.0
  %1274 = vmatmul.mubr.f32.gmra.mrb[0].mxu0 %v1207
  %v1275 = vpop.f32.mrb[0].mxu0
  %v1276 = vadd.f32 %v404, %v1275
  %v1277 = vpop.f32.mrb[0].mxu0
  %1278 = vdwg.mxu0
  %v1279 = vmul.f32 %v1276, 0.5
  %v1280 = vtanh.pop %v1279
  %v1281 = vmul.f32 %v1280, 0.5
  %v1282 = vadd.f32 %v1281, 0.5
  %v1283 = vtanh.pop %v1276
  %v1284 = vmul.f32 %v1282, %v1094
  %1286 = vrot.lane.b32.xlu0 %v1283, 64
  %v1287 = vpop.permute.xlu0 %1286
  %v1289 = vmul.f32 %v1282, %v1287
  %1291 = vrot.lane.b32.xlu0 %v1289, 32
  %v1292 = vpop.permute.xlu0 %1291
  %v1294 = vadd.f32 %v1284, %v1292
  %v1295 = vtanh.pop %v1294
  %1297 = vrot.lane.b32.xlu0 %v1295, 64
  %v1298 = vpop.permute.xlu0 %1297
  %v1300 = vmul.f32 %v1282, %v1298
  %v1301 = vld [vmem:[#allocation2 + $0x28] sm:$0xff]
  %v1302 = vsel %vm398, %v1199, 0
  %1304 = vmatprep.subr.mxu0 0.0
  %1305 = vmatpush1.msra.mxu0 %v358
  %1306 = vmatprep.subr.mxu0 0.0
  %1307 = vmatpush1.msra.mxu0 %v359
  %1308 = vmatprep.subr.mxu0 0.0
  %1309 = vmatpush1.msra.mxu0 %v360
  %1310 = vmatprep.subr.mxu0 0.0
  %1311 = vmatpush1.msra.mxu0 %v361
  %1312 = vmatprep.subr.mxu0 0.0
  %1313 = vmatpush1.msra.mxu0 0.0
  %1314 = vmatprep.subr.mxu0 0.0
  %1315 = vmatpush1.msra.mxu0 0.0
  %1316 = vmatprep.subr.mxu0 0.0
  %1317 = vmatpush1.msra.mxu0 0.0
  %1318 = vmatprep.subr.mxu0 0.0
  %1319 = vmatpush1.msra.mxu0 0.0
  %1320 = vmatprep.subr.mxu0 0.0
  %1321 = vmatpush1.msra.mxu0 0.0
  %1322 = vmatprep.subr.mxu0 0.0
  %1323 = vmatpush1.msra.mxu0 0.0
  %1324 = vmatprep.subr.mxu0 0.0
  %1325 = vmatpush1.msra.mxu0 0.0
  %1326 = vmatprep.subr.mxu0 0.0
  %1327 = vmatpush1.msra.mxu0 0.0
  %1328 = vmatprep.subr.mxu0 0.0
  %1329 = vmatpush1.msra.mxu0 0.0
  %1330 = vmatprep.subr.mxu0 0.0
  %1331 = vmatpush1.msra.mxu0 0.0
  %1332 = vmatprep.subr.mxu0 0.0
  %1333 = vmatpush1.msra.mxu0 0.0
  %1334 = vmatprep.subr.mxu0 0.0
  %1335 = vmatpush1.msra.mxu0 0.0
  %1336 = vmatprep.subr.mxu0 0.0
  %1337 = vmatpush1.msra.mxu0 0.0
  %1338 = vmatprep.subr.mxu0 0.0
  %1339 = vmatpush1.msra.mxu0 0.0
  %1340 = vmatprep.subr.mxu0 0.0
  %1341 = vmatpush1.msra.mxu0 0.0
  %1342 = vmatprep.subr.mxu0 0.0
  %1343 = vmatpush1.msra.mxu0 0.0
  %1344 = vmatprep.subr.mxu0 0.0
  %1345 = vmatpush1.msra.mxu0 0.0
  %1346 = vmatprep.subr.mxu0 0.0
  %1347 = vmatpush1.msra.mxu0 0.0
  %1348 = vmatprep.subr.mxu0 0.0
  %1349 = vmatpush1.msra.mxu0 0.0
  %1350 = vmatprep.subr.mxu0 0.0
  %1351 = vmatpush1.msra.mxu0 0.0
  %1352 = vmatprep.subr.mxu0 0.0
  %1353 = vmatpush1.msra.mxu0 0.0
  %1354 = vmatprep.subr.mxu0 0.0
  %1355 = vmatpush1.msra.mxu0 0.0
  %1356 = vmatprep.subr.mxu0 0.0
  %1357 = vmatpush1.msra.mxu0 0.0
  %1358 = vmatprep.subr.mxu0 0.0
  %1359 = vmatpush1.msra.mxu0 0.0
  %1360 = vmatprep.subr.mxu0 0.0
  %1361 = vmatpush1.msra.mxu0 0.0
  %1362 = vmatprep.subr.mxu0 0.0
  %1363 = vmatpush1.msra.mxu0 0.0
  %1364 = vmatprep.subr.mxu0 0.0
  %1365 = vmatpush1.msra.mxu0 0.0
  %1366 = vmatprep.subr.mxu0 0.0
  %1367 = vmatpush1.msra.mxu0 0.0
  %1368 = vmatprep.mubr.f32.mxu0 0.0
  %1369 = vmatmul.mubr.f32.gmra.mrb[0].mxu0 %v1302
  %v1370 = vpop.f32.mrb[0].mxu0
  %v1371 = vadd.f32 0.0, %v1370
  %v1372 = vpop.f32.mrb[0].mxu0
  %1373 = vdwg.mxu0
  %v1374 = vadd.f32 %v1301, %v1371
  %v1375 = vmul.f32 %v1374, 0.5
  %v1376 = vtanh.pop %v1375
  %v1377 = vmul.f32 %v1376, 0.5
  %v1378 = vadd.f32 %v1377, 0.5
  %v1379 = vtanh.pop %v1374
  %v1380 = vmul.f32 %v1378, %v1190
  %1382 = vrot.lane.b32.xlu0 %v1379, 64
  %v1383 = vpop.permute.xlu0 %1382
  %v1385 = vmul.f32 %v1378, %v1383
  %1387 = vrot.lane.b32.xlu0 %v1385, 32
  %v1388 = vpop.permute.xlu0 %1387
  %v1390 = vadd.f32 %v1380, %v1388
  %v1391 = vtanh.pop %v1390
  %1393 = vrot.lane.b32.xlu0 %v1391, 64
  %v1394 = vpop.permute.xlu0 %1393
  %v1396 = vmul.f32 %v1378, %v1394
  %1398 = vrot.lane.b32.xlu0 %v1396, 32
  %v1399 = vpop.permute.xlu0 %1398
  %1402 = vrot.lane.b32.xlu0 %v1300, 64
  %v1403 = vpop.permute.xlu0 %1402
  %v1405 = vsel %vm398, %v1399, %v1403
  %v1407 = vsel %vm220, %v1405, 0
  %1409 = vmatprep.subr.mxu0 0.0
  %1410 = vmatpush1.msra.mxu0 %v362
  %1411 = vmatprep.subr.mxu0 0.0
  %1412 = vmatpush1.msra.mxu0 %v363
  %1413 = vmatprep.subr.mxu0 0.0
  %1414 = vmatpush1.msra.mxu0 %v364
  %1415 = vmatprep.subr.mxu0 0.0
  %1416 = vmatpush1.msra.mxu0 %v365
  %1417 = vmatprep.subr.mxu0 0.0
  %1418 = vmatpush1.msra.mxu0 %v366
  %1419 = vmatprep.subr.mxu0 0.0
  %1420 = vmatpush1.msra.mxu0 %v367
  %1421 = vmatprep.subr.mxu0 0.0
  %1422 = vmatpush1.msra.mxu0 %v368
  %1423 = vmatprep.subr.mxu0 0.0
  %1424 = vmatpush1.msra.mxu0 %v369
  %1425 = vmatprep.subr.mxu0 0.0
  %1426 = vmatpush1.msra.mxu0 0.0
  %1427 = vmatprep.subr.mxu0 0.0
  %1428 = vmatpush1.msra.mxu0 0.0
  %1429 = vmatprep.subr.mxu0 0.0
  %1430 = vmatpush1.msra.mxu0 0.0
  %1431 = vmatprep.subr.mxu0 0.0
  %1432 = vmatpush1.msra.mxu0 0.0
  %1433 = vmatprep.subr.mxu0 0.0
  %1434 = vmatpush1.msra.mxu0 0.0
  %1435 = vmatprep.subr.mxu0 0.0
  %1436 = vmatpush1.msra.mxu0 0.0
  %1437 = vmatprep.subr.mxu0 0.0
  %1438 = vmatpush1.msra.mxu0 0.0
  %1439 = vmatprep.subr.mxu0 0.0
  %1440 = vmatpush1.msra.mxu0 0.0
  %1441 = vmatprep.subr.mxu0 0.0
  %1442 = vmatpush1.msra.mxu0 0.0
  %1443 = vmatprep.subr.mxu0 0.0
  %1444 = vmatpush1.msra.mxu0 0.0
  %1445 = vmatprep.subr.mxu0 0.0
  %1446 = vmatpush1.msra.mxu0 0.0
  %1447 = vmatprep.subr.mxu0 0.0
  %1448 = vmatpush1.msra.mxu0 0.0
  %1449 = vmatprep.subr.mxu0 0.0
  %1450 = vmatpush1.msra.mxu0 0.0
  %1451 = vmatprep.subr.mxu0 0.0
  %1452 = vmatpush1.msra.mxu0 0.0
  %1453 = vmatprep.subr.mxu0 0.0
  %1454 = vmatpush1.msra.mxu0 0.0
  %1455 = vmatprep.subr.mxu0 0.0
  %1456 = vmatpush1.msra.mxu0 0.0
  %1457 = vmatprep.subr.mxu0 0.0
  %1458 = vmatpush1.msra.mxu0 0.0
  %1459 = vmatprep.subr.mxu0 0.0
  %1460 = vmatpush1.msra.mxu0 0.0
  %1461 = vmatprep.subr.mxu0 0.0
  %1462 = vmatpush1.msra.mxu0 0.0
  %1463 = vmatprep.subr.mxu0 0.0
  %1464 = vmatpush1.msra.mxu0 0.0
  %1465 = vmatprep.subr.mxu0 0.0
  %1466 = vmatpush1.msra.mxu0 0.0
  %1467 = vmatprep.subr.mxu0 0.0
  %1468 = vmatpush1.msra.mxu0 0.0
  %1469 = vmatprep.subr.mxu0 0.0
  %1470 = vmatpush1.msra.mxu0 0.0
  %1471 = vmatprep.subr.mxu0 0.0
  %1472 = vmatpush1.msra.mxu0 0.0
  %1473 = vmatprep.mubr.f32.mxu0 0.0
  %1474 = vmatmul.mubr.f32.gmra.mrb[0].mxu0 %v1407
  %v1475 = vpop.f32.mrb[0].mxu0
  %v1476 = vadd.f32 %v404, %v1475
  %v1477 = vpop.f32.mrb[0].mxu0
  %1478 = vdwg.mxu0
  %v1479 = vmul.f32 %v1476, 0.5
  %v1480 = vtanh.pop %v1479
  %v1481 = vmul.f32 %v1480, 0.5
  %v1482 = vadd.f32 %v1481, 0.5
  %v1483 = vtanh.pop %v1476
  %v1484 = vmul.f32 %v1482, %v1294
  %1486 = vrot.lane.b32.xlu0 %v1483, 64
  %v1487 = vpop.permute.xlu0 %1486
  %v1489 = vmul.f32 %v1482, %v1487
  %1491 = vrot.lane.b32.xlu0 %v1489, 32
  %v1492 = vpop.permute.xlu0 %1491
  %v1494 = vadd.f32 %v1484, %v1492
  %v1495 = vtanh.pop %v1494
  %1497 = vrot.lane.b32.xlu0 %v1495, 64
  %v1498 = vpop.permute.xlu0 %1497
  %v1500 = vmul.f32 %v1482, %v1498
  %v1501 = vld [vmem:[#allocation2 + $0x30] sm:$0xff]
  %v1502 = vsel %vm398, %v1399, 0
  %1504 = vmatprep.subr.mxu0 0.0
  %1505 = vmatpush1.msra.mxu0 %v358
  %1506 = vmatprep.subr.mxu0 0.0
  %1507 = vmatpush1.msra.mxu0 %v359
  %1508 = vmatprep.subr.mxu0 0.0
  %1509 = vmatpush1.msra.mxu0 %v360
  %1510 = vmatprep.subr.mxu0 0.0
  %1511 = vmatpush1.msra.mxu0 %v361
  %1512 = vmatprep.subr.mxu0 0.0
  %1513 = vmatpush1.msra.mxu0 0.0
  %1514 = vmatprep.subr.mxu0 0.0
  %1515 = vmatpush1.msra.mxu0 0.0
  %1516 = vmatprep.subr.mxu0 0.0
  %1517 = vmatpush1.msra.mxu0 0.0
  %1518 = vmatprep.subr.mxu0 0.0
  %1519 = vmatpush1.msra.mxu0 0.0
  %1520 = vmatprep.subr.mxu0 0.0
  %1521 = vmatpush1.msra.mxu0 0.0
  %1522 = vmatprep.subr.mxu0 0.0
  %1523 = vmatpush1.msra.mxu0 0.0
  %1524 = vmatprep.subr.mxu0 0.0
  %1525 = vmatpush1.msra.mxu0 0.0
  %1526 = vmatprep.subr.mxu0 0.0
  %1527 = vmatpush1.msra.mxu0 0.0
  %1528 = vmatprep.subr.mxu0 0.0
  %1529 = vmatpush1.msra.mxu0 0.0
  %1530 = vmatprep.subr.mxu0 0.0
  %1531 = vmatpush1.msra.mxu0 0.0
  %1532 = vmatprep.subr.mxu0 0.0
  %1533 = vmatpush1.msra.mxu0 0.0
  %1534 = vmatprep.subr.mxu0 0.0
  %1535 = vmatpush1.msra.mxu0 0.0
  %1536 = vmatprep.subr.mxu0 0.0
  %1537 = vmatpush1.msra.mxu0 0.0
  %1538 = vmatprep.subr.mxu0 0.0
  %1539 = vmatpush1.msra.mxu0 0.0
  %1540 = vmatprep.subr.mxu0 0.0
  %1541 = vmatpush1.msra.mxu0 0.0
  %1542 = vmatprep.subr.mxu0 0.0
  %1543 = vmatpush1.msra.mxu0 0.0
  %1544 = vmatprep.subr.mxu0 0.0
  %1545 = vmatpush1.msra.mxu0 0.0
  %1546 = vmatprep.subr.mxu0 0.0
  %1547 = vmatpush1.msra.mxu0 0.0
  %1548 = vmatprep.subr.mxu0 0.0
  %1549 = vmatpush1.msra.mxu0 0.0
  %1550 = vmatprep.subr.mxu0 0.0
  %1551 = vmatpush1.msra.mxu0 0.0
  %1552 = vmatprep.subr.mxu0 0.0
  %1553 = vmatpush1.msra.mxu0 0.0
  %1554 = vmatprep.subr.mxu0 0.0
  %1555 = vmatpush1.msra.mxu0 0.0
  %1556 = vmatprep.subr.mxu0 0.0
  %1557 = vmatpush1.msra.mxu0 0.0
  %1558 = vmatprep.subr.mxu0 0.0
  %1559 = vmatpush1.msra.mxu0 0.0
  %1560 = vmatprep.subr.mxu0 0.0
  %1561 = vmatpush1.msra.mxu0 0.0
  %1562 = vmatprep.subr.mxu0 0.0
  %1563 = vmatpush1.msra.mxu0 0.0
  %1564 = vmatprep.subr.mxu0 0.0
  %1565 = vmatpush1.msra.mxu0 0.0
  %1566 = vmatprep.subr.mxu0 0.0
  %1567 = vmatpush1.msra.mxu0 0.0
  %1568 = vmatprep.mubr.f32.mxu0 0.0
  %1569 = vmatmul.mubr.f32.gmra.mrb[0].mxu0 %v1502
  %v1570 = vpop.f32.mrb[0].mxu0
  %v1571 = vadd.f32 0.0, %v1570
  %v1572 = vpop.f32.mrb[0].mxu0
  %1573 = vdwg.mxu0
  %v1574 = vadd.f32 %v1501, %v1571
  %v1575 = vmul.f32 %v1574, 0.5
  %v1576 = vtanh.pop %v1575
  %v1577 = vmul.f32 %v1576, 0.5
  %v1578 = vadd.f32 %v1577, 0.5
  %v1579 = vtanh.pop %v1574
  %v1580 = vmul.f32 %v1578, %v1390
  %1582 = vrot.lane.b32.xlu0 %v1579, 64
  %v1583 = vpop.permute.xlu0 %1582
  %v1585 = vmul.f32 %v1578, %v1583
  %1587 = vrot.lane.b32.xlu0 %v1585, 32
  %v1588 = vpop.permute.xlu0 %1587
  %v1590 = vadd.f32 %v1580, %v1588
  %v1591 = vtanh.pop %v1590
  %1593 = vrot.lane.b32.xlu0 %v1591, 64
  %v1594 = vpop.permute.xlu0 %1593
  %v1596 = vmul.f32 %v1578, %v1594
  %1598 = vrot.lane.b32.xlu0 %v1596, 32
  %v1599 = vpop.permute.xlu0 %1598
  %1602 = vrot.lane.b32.xlu0 %v1500, 64
  %v1603 = vpop.permute.xlu0 %1602
  %v1605 = vsel %vm398, %v1599, %v1603
  %v1607 = vsel %vm220, %v1605, 0
  %1609 = vmatprep.subr.mxu0 0.0
  %1610 = vmatpush1.msra.mxu0 %v362
  %1611 = vmatprep.subr.mxu0 0.0
  %1612 = vmatpush1.msra.mxu0 %v363
  %1613 = vmatprep.subr.mxu0 0.0
  %1614 = vmatpush1.msra.mxu0 %v364
  %1615 = vmatprep.subr.mxu0 0.0
  %1616 = vmatpush1.msra.mxu0 %v365
  %1617 = vmatprep.subr.mxu0 0.0
  %1618 = vmatpush1.msra.mxu0 %v366
  %1619 = vmatprep.subr.mxu0 0.0
  %1620 = vmatpush1.msra.mxu0 %v367
  %1621 = vmatprep.subr.mxu0 0.0
  %1622 = vmatpush1.msra.mxu0 %v368
  %1623 = vmatprep.subr.mxu0 0.0
  %1624 = vmatpush1.msra.mxu0 %v369
  %1625 = vmatprep.subr.mxu0 0.0
  %1626 = vmatpush1.msra.mxu0 0.0
  %1627 = vmatprep.subr.mxu0 0.0
  %1628 = vmatpush1.msra.mxu0 0.0
  %1629 = vmatprep.subr.mxu0 0.0
  %1630 = vmatpush1.msra.mxu0 0.0
  %1631 = vmatprep.subr.mxu0 0.0
  %1632 = vmatpush1.msra.mxu0 0.0
  %1633 = vmatprep.subr.mxu0 0.0
  %1634 = vmatpush1.msra.mxu0 0.0
  %1635 = vmatprep.subr.mxu0 0.0
  %1636 = vmatpush1.msra.mxu0 0.0
  %1637 = vmatprep.subr.mxu0 0.0
  %1638 = vmatpush1.msra.mxu0 0.0
  %1639 = vmatprep.subr.mxu0 0.0
  %1640 = vmatpush1.msra.mxu0 0.0
  %1641 = vmatprep.subr.mxu0 0.0
  %1642 = vmatpush1.msra.mxu0 0.0
  %1643 = vmatprep.subr.mxu0 0.0
  %1644 = vmatpush1.msra.mxu0 0.0
  %1645 = vmatprep.subr.mxu0 0.0
  %1646 = vmatpush1.msra.mxu0 0.0
  %1647 = vmatprep.subr.mxu0 0.0
  %1648 = vmatpush1.msra.mxu0 0.0
  %1649 = vmatprep.subr.mxu0 0.0
  %1650 = vmatpush1.msra.mxu0 0.0
  %1651 = vmatprep.subr.mxu0 0.0
  %1652 = vmatpush1.msra.mxu0 0.0
  %1653 = vmatprep.subr.mxu0 0.0
  %1654 = vmatpush1.msra.mxu0 0.0
  %1655 = vmatprep.subr.mxu0 0.0
  %1656 = vmatpush1.msra.mxu0 0.0
  %1657 = vmatprep.subr.mxu0 0.0
  %1658 = vmatpush1.msra.mxu0 0.0
  %1659 = vmatprep.subr.mxu0 0.0
  %1660 = vmatpush1.msra.mxu0 0.0
  %1661 = vmatprep.subr.mxu0 0.0
  %1662 = vmatpush1.msra.mxu0 0.0
  %1663 = vmatprep.subr.mxu0 0.0
  %1664 = vmatpush1.msra.mxu0 0.0
  %1665 = vmatprep.subr.mxu0 0.0
  %1666 = vmatpush1.msra.mxu0 0.0
  %1667 = vmatprep.subr.mxu0 0.0
  %1668 = vmatpush1.msra.mxu0 0.0
  %1669 = vmatprep.subr.mxu0 0.0
  %1670 = vmatpush1.msra.mxu0 0.0
  %1671 = vmatprep.subr.mxu0 0.0
  %1672 = vmatpush1.msra.mxu0 0.0
  %1673 = vmatprep.mubr.f32.mxu0 0.0
  %1674 = vmatmul.mubr.f32.gmra.mrb[0].mxu0 %v1607
  %v1675 = vpop.f32.mrb[0].mxu0
  %v1676 = vadd.f32 %v404, %v1675
  %v1677 = vpop.f32.mrb[0].mxu0
  %1678 = vdwg.mxu0
  %v1679 = vmul.f32 %v1676, 0.5
  %v1680 = vtanh.pop %v1679
  %v1681 = vmul.f32 %v1680, 0.5
  %v1682 = vadd.f32 %v1681, 0.5
  %v1683 = vtanh.pop %v1676
  %v1684 = vmul.f32 %v1682, %v1494
  %1686 = vrot.lane.b32.xlu0 %v1683, 64
  %v1687 = vpop.permute.xlu0 %1686
  %v1689 = vmul.f32 %v1682, %v1687
  %1691 = vrot.lane.b32.xlu0 %v1689, 32
  %v1692 = vpop.permute.xlu0 %1691
  %v1694 = vadd.f32 %v1684, %v1692
  %v1695 = vtanh.pop %v1694
  %1697 = vrot.lane.b32.xlu0 %v1695, 64
  %v1698 = vpop.permute.xlu0 %1697
  %v1700 = vmul.f32 %v1682, %v1698
  %v1701 = vld [vmem:[#allocation2 + $0x38] sm:$0xff]
  %v1702 = vsel %vm398, %v1599, 0
  %1704 = vmatprep.subr.mxu0 0.0
  %1705 = vmatpush1.msra.mxu0 %v358
  %1706 = vmatprep.subr.mxu0 0.0
  %1707 = vmatpush1.msra.mxu0 %v359
  %1708 = vmatprep.subr.mxu0 0.0
  %1709 = vmatpush1.msra.mxu0 %v360
  %1710 = vmatprep.subr.mxu0 0.0
  %1711 = vmatpush1.msra.mxu0 %v361
  %1712 = vmatprep.subr.mxu0 0.0
  %1713 = vmatpush1.msra.mxu0 0.0
  %1714 = vmatprep.subr.mxu0 0.0
  %1715 = vmatpush1.msra.mxu0 0.0
  %1716 = vmatprep.subr.mxu0 0.0
  %1717 = vmatpush1.msra.mxu0 0.0
  %1718 = vmatprep.subr.mxu0 0.0
  %1719 = vmatpush1.msra.mxu0 0.0
  %1720 = vmatprep.subr.mxu0 0.0
  %1721 = vmatpush1.msra.mxu0 0.0
  %1722 = vmatprep.subr.mxu0 0.0
  %1723 = vmatpush1.msra.mxu0 0.0
  %1724 = vmatprep.subr.mxu0 0.0
  %1725 = vmatpush1.msra.mxu0 0.0
  %1726 = vmatprep.subr.mxu0 0.0
  %1727 = vmatpush1.msra.mxu0 0.0
  %1728 = vmatprep.subr.mxu0 0.0
  %1729 = vmatpush1.msra.mxu0 0.0
  %1730 = vmatprep.subr.mxu0 0.0
  %1731 = vmatpush1.msra.mxu0 0.0
  %1732 = vmatprep.subr.mxu0 0.0
  %1733 = vmatpush1.msra.mxu0 0.0
  %1734 = vmatprep.subr.mxu0 0.0
  %1735 = vmatpush1.msra.mxu0 0.0
  %1736 = vmatprep.subr.mxu0 0.0
  %1737 = vmatpush1.msra.mxu0 0.0
  %1738 = vmatprep.subr.mxu0 0.0
  %1739 = vmatpush1.msra.mxu0 0.0
  %1740 = vmatprep.subr.mxu0 0.0
  %1741 = vmatpush1.msra.mxu0 0.0
  %1742 = vmatprep.subr.mxu0 0.0
  %1743 = vmatpush1.msra.mxu0 0.0
  %1744 = vmatprep.subr.mxu0 0.0
  %1745 = vmatpush1.msra.mxu0 0.0
  %1746 = vmatprep.subr.mxu0 0.0
  %1747 = vmatpush1.msra.mxu0 0.0
  %1748 = vmatprep.subr.mxu0 0.0
  %1749 = vmatpush1.msra.mxu0 0.0
  %1750 = vmatprep.subr.mxu0 0.0
  %1751 = vmatpush1.msra.mxu0 0.0
  %1752 = vmatprep.subr.mxu0 0.0
  %1753 = vmatpush1.msra.mxu0 0.0
  %1754 = vmatprep.subr.mxu0 0.0
  %1755 = vmatpush1.msra.mxu0 0.0
  %1756 = vmatprep.subr.mxu0 0.0
  %1757 = vmatpush1.msra.mxu0 0.0
  %1758 = vmatprep.subr.mxu0 0.0
  %1759 = vmatpush1.msra.mxu0 0.0
  %1760 = vmatprep.subr.mxu0 0.0
  %1761 = vmatpush1.msra.mxu0 0.0
  %1762 = vmatprep.subr.mxu0 0.0
  %1763 = vmatpush1.msra.mxu0 0.0
  %1764 = vmatprep.subr.mxu0 0.0
  %1765 = vmatpush1.msra.mxu0 0.0
  %1766 = vmatprep.subr.mxu0 0.0
  %1767 = vmatpush1.msra.mxu0 0.0
  %1768 = vmatprep.mubr.f32.mxu0 0.0
  %1769 = vmatmul.mubr.f32.gmra.mrb[0].mxu0 %v1702
  %v1770 = vpop.f32.mrb[0].mxu0
  %v1771 = vadd.f32 0.0, %v1770
  %v1772 = vpop.f32.mrb[0].mxu0
  %1773 = vdwg.mxu0
  %v1774 = vadd.f32 %v1701, %v1771
  %v1775 = vmul.f32 %v1774, 0.5
  %v1776 = vtanh.pop %v1775
  %v1777 = vmul.f32 %v1776, 0.5
  %v1778 = vadd.f32 %v1777, 0.5
  %v1779 = vtanh.pop %v1774
  %v1780 = vmul.f32 %v1778, %v1590
  %1782 = vrot.lane.b32.xlu0 %v1779, 64
  %v1783 = vpop.permute.xlu0 %1782
  %v1785 = vmul.f32 %v1778, %v1783
  %1787 = vrot.lane.b32.xlu0 %v1785, 32
  %v1788 = vpop.permute.xlu0 %1787
  %v1790 = vadd.f32 %v1780, %v1788
  %v1791 = vtanh.pop %v1790
  %1793 = vrot.lane.b32.xlu0 %v1791, 64
  %v1794 = vpop.permute.xlu0 %1793
  %v1796 = vmul.f32 %v1778, %v1794
  %1798 = vrot.lane.b32.xlu0 %v1796, 32
  %v1799 = vpop.permute.xlu0 %1798
  %1802 = vrot.lane.b32.xlu0 %v1700, 64
  %v1803 = vpop.permute.xlu0 %1802
  %v1805 = vsel %vm398, %v1799, %v1803
  %v1807 = vsel %vm220, %v1805, 0
  %1809 = vmatprep.subr.mxu0 0.0
  %1810 = vmatpush1.msra.mxu0 %v362
  %1811 = vmatprep.subr.mxu0 0.0
  %1812 = vmatpush1.msra.mxu0 %v363
  %1813 = vmatprep.subr.mxu0 0.0
  %1814 = vmatpush1.msra.mxu0 %v364
  %1815 = vmatprep.subr.mxu0 0.0
  %1816 = vmatpush1.msra.mxu0 %v365
  %1817 = vmatprep.subr.mxu0 0.0
  %1818 = vmatpush1.msra.mxu0 %v366
  %1819 = vmatprep.subr.mxu0 0.0
  %1820 = vmatpush1.msra.mxu0 %v367
  %1821 = vmatprep.subr.mxu0 0.0
  %1822 = vmatpush1.msra.mxu0 %v368
  %1823 = vmatprep.subr.mxu0 0.0
  %1824 = vmatpush1.msra.mxu0 %v369
  %1825 = vmatprep.subr.mxu0 0.0
  %1826 = vmatpush1.msra.mxu0 0.0
  %1827 = vmatprep.subr.mxu0 0.0
  %1828 = vmatpush1.msra.mxu0 0.0
  %1829 = vmatprep.subr.mxu0 0.0
  %1830 = vmatpush1.msra.mxu0 0.0
  %1831 = vmatprep.subr.mxu0 0.0
  %1832 = vmatpush1.msra.mxu0 0.0
  %1833 = vmatprep.subr.mxu0 0.0
  %1834 = vmatpush1.msra.mxu0 0.0
  %1835 = vmatprep.subr.mxu0 0.0
  %1836 = vmatpush1.msra.mxu0 0.0
  %1837 = vmatprep.subr.mxu0 0.0
  %1838 = vmatpush1.msra.mxu0 0.0
  %1839 = vmatprep.subr.mxu0 0.0
  %1840 = vmatpush1.msra.mxu0 0.0
  %1841 = vmatprep.subr.mxu0 0.0
  %1842 = vmatpush1.msra.mxu0 0.0
  %1843 = vmatprep.subr.mxu0 0.0
  %1844 = vmatpush1.msra.mxu0 0.0
  %1845 = vmatprep.subr.mxu0 0.0
  %1846 = vmatpush1.msra.mxu0 0.0
  %1847 = vmatprep.subr.mxu0 0.0
  %1848 = vmatpush1.msra.mxu0 0.0
  %1849 = vmatprep.subr.mxu0 0.0
  %1850 = vmatpush1.msra.mxu0 0.0
  %1851 = vmatprep.subr.mxu0 0.0
  %1852 = vmatpush1.msra.mxu0 0.0
  %1853 = vmatprep.subr.mxu0 0.0
  %1854 = vmatpush1.msra.mxu0 0.0
  %1855 = vmatprep.subr.mxu0 0.0
  %1856 = vmatpush1.msra.mxu0 0.0
  %1857 = vmatprep.subr.mxu0 0.0
  %1858 = vmatpush1.msra.mxu0 0.0
  %1859 = vmatprep.subr.mxu0 0.0
  %1860 = vmatpush1.msra.mxu0 0.0
  %1861 = vmatprep.subr.mxu0 0.0
  %1862 = vmatpush1.msra.mxu0 0.0
  %1863 = vmatprep.subr.mxu0 0.0
  %1864 = vmatpush1.msra.mxu0 0.0
  %1865 = vmatprep.subr.mxu0 0.0
  %1866 = vmatpush1.msra.mxu0 0.0
  %1867 = vmatprep.subr.mxu0 0.0
  %1868 = vmatpush1.msra.mxu0 0.0
  %1869 = vmatprep.subr.mxu0 0.0
  %1870 = vmatpush1.msra.mxu0 0.0
  %1871 = vmatprep.subr.mxu0 0.0
  %1872 = vmatpush1.msra.mxu0 0.0
  %1873 = vmatprep.mubr.f32.mxu0 0.0
  %1874 = vmatmul.mubr.f32.gmra.mrb[0].mxu0 %v1807
  %v1875 = vpop.f32.mrb[0].mxu0
  %v1876 = vadd.f32 %v404, %v1875
  %v1877 = vpop.f32.mrb[0].mxu0
  %1878 = vdwg.mxu0
  %v1879 = vmul.f32 %v1876, 0.5
  %v1880 = vtanh.pop %v1879
  %v1881 = vmul.f32 %v1880, 0.5
  %v1882 = vadd.f32 %v1881, 0.5
  %v1883 = vtanh.pop %v1876
  %v1884 = vmul.f32 %v1882, %v1694
  %1886 = vrot.lane.b32.xlu0 %v1883, 64
  %v1887 = vpop.permute.xlu0 %1886
  %v1889 = vmul.f32 %v1882, %v1887
  %1891 = vrot.lane.b32.xlu0 %v1889, 32
  %v1892 = vpop.permute.xlu0 %1891
  %v1894 = vadd.f32 %v1884, %v1892
  %v1895 = vtanh.pop %v1894
  %1897 = vrot.lane.b32.xlu0 %v1895, 64
  %v1898 = vpop.permute.xlu0 %1897
  %v1900 = vmul.f32 %v1882, %v1898
  %v1901 = vld [vmem:[%s9] sm:$0xff]
  %v1902 = vld [vmem:[%s9 + $0x8] sm:$0xff]
  %v1903 = vld [vmem:[%s9 + $0x10] sm:$0xff]
  %v1904 = vld [vmem:[%s9 + $0x18] sm:$0xff]
  %v1905 = vld [vmem:[%s9 + $0x20] sm:$0xff]
  %v1906 = vld [vmem:[%s9 + $0x28] sm:$0xff]
  %v1907 = vld [vmem:[%s9 + $0x30] sm:$0xff]
  %v1908 = vld [vmem:[%s9 + $0x38] sm:$0xff]
  %v1909 = vld [vmem:[%s9 + $0x40] sm:$0xff]
  %v1910 = vld [vmem:[%s9 + $0x48] sm:$0xff]
  %v1911 = vld [vmem:[%s9 + $0x50] sm:$0xff]
  %v1912 = vld [vmem:[%s9 + $0x58] sm:$0xff]
  %v1913 = vld [vmem:[%s9 + $0x60] sm:$0xff]
  %v1914 = vld [vmem:[%s9 + $0x68] sm:$0xff]
  %v1915 = vld [vmem:[%s9 + $0x70] sm:$0xff]
  %v1916 = vld [vmem:[%s9 + $0x78] sm:$0xff]
  %v1917 = vld [vmem:[%s11] sm:$0xff]
  %v1918 = vld [vmem:[%s11 + $0x8] sm:$0xff]
  %v1919 = vld [vmem:[%s11 + $0x10] sm:$0xff]
  %v1920 = vld [vmem:[%s11 + $0x18] sm:$0xff]
  %v1921 = vld [vmem:[%s11 + $0x20] sm:$0xff]
  %v1922 = vld [vmem:[%s11 + $0x28] sm:$0xff]
  %v1923 = vld [vmem:[%s11 + $0x30] sm:$0xff]
  %v1924 = vld [vmem:[%s11 + $0x38] sm:$0xff]
  %v1925 = vld [vmem:[%s11 + $0x40] sm:$0xff]
  %v1926 = vld [vmem:[%s11 + $0x48] sm:$0xff]
  %v1927 = vld [vmem:[%s11 + $0x50] sm:$0xff]
  %v1928 = vld [vmem:[%s11 + $0x58] sm:$0xff]
  %v1929 = vld [vmem:[%s11 + $0x60] sm:$0xff]
  %v1930 = vld [vmem:[%s11 + $0x68] sm:$0xff]
  %v1931 = vld [vmem:[%s11 + $0x70] sm:$0xff]
  %v1932 = vld [vmem:[%s11 + $0x78] sm:$0xff]
  %v1933 = vld [vmem:[%s11 + $0x80] sm:$0xff]
  %v1934 = vld [vmem:[%s11 + $0x88] sm:$0xff]
  %v1935 = vld [vmem:[%s11 + $0x90] sm:$0xff]
  %v1936 = vld [vmem:[%s11 + $0x98] sm:$0xff]
  %v1937 = vld [vmem:[%s11 + $0xa0] sm:$0xff]
  %v1938 = vld [vmem:[%s11 + $0xa8] sm:$0xff]
  %v1939 = vld [vmem:[%s11 + $0xb0] sm:$0xff]
  %v1940 = vld [vmem:[%s11 + $0xb8] sm:$0xff]
  %v1941 = vld [vmem:[%s11 + $0xc0] sm:$0xff]
  %v1942 = vld [vmem:[%s11 + $0xc8] sm:$0xff]
  %v1943 = vld [vmem:[%s11 + $0xd0] sm:$0xff]
  %v1944 = vld [vmem:[%s11 + $0xd8] sm:$0xff]
  %v1945 = vld [vmem:[%s11 + $0xe0] sm:$0xff]
  %v1946 = vld [vmem:[%s11 + $0xe8] sm:$0xff]
  %v1947 = vld [vmem:[%s11 + $0xf0] sm:$0xff]
  %v1948 = vld [vmem:[%s11 + $0xf8] sm:$0xff]
  %v1949 = vld [vmem:[%s12] sm:$0x3]
  %v1950 = vld [vmem:[%s8] sm:$0xff]
  %v1951 = vld [vmem:[%s8 + $0x8] sm:$0xff]
  %v1952 = vld [vmem:[%s8 + $0x10] sm:$0xff]
  %v1953 = vld [vmem:[%s8 + $0x18] sm:$0xff]
  %v1954 = vld [vmem:[%s8 + $0x20] sm:$0xff]
  %v1955 = vld [vmem:[%s8 + $0x28] sm:$0xff]
  %v1956 = vld [vmem:[%s8 + $0x30] sm:$0xff]
  %v1957 = vld [vmem:[%s8 + $0x38] sm:$0xff]
  %v1958 = vld [vmem:[%s10] sm:$0x3]
  %v1960 = vlaneseq
  %v1961 = vshrl.u32 %v1960, 7
  %v1962 = vsub.s32 0, %v1961
  %v1963 = vrot.slane %v1958, %v1962
  %v1964 = vlaneseq
  %v1965 = vshrl.u32 %v1964, 7
  %v1966 = vsub.s32 1, %v1965
  %v1967 = vrot.slane %v1958, %v1966
  %1971 = vrot.lane.b32.xlu0 %v1900, 32
  %v1972 = vpop.permute.xlu0 %1971
  %v1973 = vsel %vm398, %v1972, 0
  %1975 = vmatprep.subr.mxu0 %v1951
  %1976 = vmatpush1.msra.mxu0 %v1950
  %1977 = vmatprep.subr.mxu0 %v1953
  %1978 = vmatpush1.msra.mxu0 %v1952
  %1979 = vmatprep.subr.mxu0 %v1955
  %1980 = vmatpush1.msra.mxu0 %v1954
  %1981 = vmatprep.subr.mxu0 %v1957
  %1982 = vmatpush1.msra.mxu0 %v1956
  %1983 = vmatprep.subr.mxu0 0.0
  %1984 = vmatpush1.msra.mxu0 0.0
  %1985 = vmatprep.subr.mxu0 0.0
  %1986 = vmatpush1.msra.mxu0 0.0
  %1987 = vmatprep.subr.mxu0 0.0
  %1988 = vmatpush1.msra.mxu0 0.0
  %1989 = vmatprep.subr.mxu0 0.0
  %1990 = vmatpush1.msra.mxu0 0.0
  %1991 = vmatprep.subr.mxu0 0.0
  %1992 = vmatpush1.msra.mxu0 0.0
  %1993 = vmatprep.subr.mxu0 0.0
  %1994 = vmatpush1.msra.mxu0 0.0
  %1995 = vmatprep.subr.mxu0 0.0
  %1996 = vmatpush1.msra.mxu0 0.0
  %1997 = vmatprep.subr.mxu0 0.0
  %1998 = vmatpush1.msra.mxu0 0.0
  %1999 = vmatprep.subr.mxu0 0.0
  %2000 = vmatpush1.msra.mxu0 0.0
  %2001 = vmatprep.subr.mxu0 0.0
  %2002 = vmatpush1.msra.mxu0 0.0
  %2003 = vmatprep.subr.mxu0 0.0
  %2004 = vmatpush1.msra.mxu0 0.0
  %2005 = vmatprep.subr.mxu0 0.0
  %2006 = vmatpush1.msra.mxu0 0.0
  %2007 = vmatprep.subr.mxu0 0.0
  %2008 = vmatpush1.msra.mxu0 0.0
  %2009 = vmatprep.subr.mxu0 0.0
  %2010 = vmatpush1.msra.mxu0 0.0
  %2011 = vmatprep.subr.mxu0 0.0
  %2012 = vmatpush1.msra.mxu0 0.0
  %2013 = vmatprep.subr.mxu0 0.0
  %2014 = vmatpush1.msra.mxu0 0.0
  %2015 = vmatprep.subr.mxu0 0.0
  %2016 = vmatpush1.msra.mxu0 0.0
  %2017 = vmatprep.subr.mxu0 0.0
  %2018 = vmatpush1.msra.mxu0 0.0
  %2019 = vmatprep.subr.mxu0 0.0
  %2020 = vmatpush1.msra.mxu0 0.0
  %2021 = vmatprep.subr.mxu0 0.0
  %2022 = vmatpush1.msra.mxu0 0.0
  %2023 = vmatprep.subr.mxu0 0.0
  %2024 = vmatpush1.msra.mxu0 0.0
  %2025 = vmatprep.subr.mxu0 0.0
  %2026 = vmatpush1.msra.mxu0 0.0
  %2027 = vmatprep.subr.mxu0 0.0
  %2028 = vmatpush1.msra.mxu0 0.0
  %2029 = vmatprep.subr.mxu0 0.0
  %2030 = vmatpush1.msra.mxu0 0.0
  %2031 = vmatprep.subr.mxu0 0.0
  %2032 = vmatpush1.msra.mxu0 0.0
  %2033 = vmatprep.subr.mxu0 0.0
  %2034 = vmatpush1.msra.mxu0 0.0
  %2035 = vmatprep.subr.mxu0 0.0
  %2036 = vmatpush1.msra.mxu0 0.0
  %2037 = vmatprep.subr.mxu0 0.0
  %2038 = vmatpush1.msra.mxu0 0.0
  %2039 = vmatprep.mubr.f32.mxu0 0.0
  %2040 = vmatmul.mubr.f32.gmra.mrb[0].mxu0 %v1973
  %v2041 = vpop.f32.mrb[0].mxu0
  %v2042 = vadd.f32 %v1963, %v2041
  %v2043 = vpop.f32.mrb[0].mxu0
  %v2044 = vadd.f32 %v1967, %v2043
  %2045 = vdwg.mxu0
  %v2046 = vmul.f32 %v2042, 0.5
  %v2047 = vtanh.pop %v2046
  %v2048 = vmul.f32 %v2047, 0.5
  %v2049 = vadd.f32 %v2048, 0.5
  %v2050 = vtanh.pop %v2044
  %v2051 = vmul.f32 %v2044, 0.5
  %v2052 = vtanh.pop %v2051
  %v2053 = vmul.f32 %v2052, 0.5
  %v2054 = vadd.f32 %v2053, 0.5
  %v2055 = vmul.f32 %v2049, 0.0
  %v2056 = vmul.f32 %v2049, %v2050
  %2058 = vrot.lane.b32.xlu0 %v2056, 64
  %v2059 = vpop.permute.xlu0 %2058
  %v2061 = vadd.f32 %v2055, %v2059
  %v2062 = vtanh.pop %v2061
  %v2063 = vmul.f32 %v2054, %v2062
  %2065 = vrot.lane.b32.xlu0 %v2063, 64
  %v2066 = vpop.permute.xlu0 %2065
  %v2068 = vsel %vm220, %v2066, 0.0
  %v2070 = vlaneseq
  %v2071 = vshrl.u32 %v2070, 7
  %v2072 = vsub.s32 0, %v2071
  %v2073 = vrot.slane %v1949, %v2072
  %v2074 = vlaneseq
  %v2075 = vshrl.u32 %v2074, 7
  %v2076 = vsub.s32 1, %v2075
  %v2077 = vrot.slane %v1949, %v2076
  %2080 = vmatprep.subr.mxu0 %v1918
  %2081 = vmatpush1.msra.mxu0 %v1917
  %2082 = vmatprep.subr.mxu0 %v1920
  %2083 = vmatpush1.msra.mxu0 %v1919
  %2084 = vmatprep.subr.mxu0 %v1922
  %2085 = vmatpush1.msra.mxu0 %v1921
  %2086 = vmatprep.subr.mxu0 %v1924
  %2087 = vmatpush1.msra.mxu0 %v1923
  %2088 = vmatprep.subr.mxu0 %v1926
  %2089 = vmatpush1.msra.mxu0 %v1925
  %2090 = vmatprep.subr.mxu0 %v1928
  %2091 = vmatpush1.msra.mxu0 %v1927
  %2092 = vmatprep.subr.mxu0 %v1930
  %2093 = vmatpush1.msra.mxu0 %v1929
  %2094 = vmatprep.subr.mxu0 %v1932
  %2095 = vmatpush1.msra.mxu0 %v1931
  %2096 = vmatprep.subr.mxu0 %v1934
  %2097 = vmatpush1.msra.mxu0 %v1933
  %2098 = vmatprep.subr.mxu0 %v1936
  %2099 = vmatpush1.msra.mxu0 %v1935
  %2100 = vmatprep.subr.mxu0 %v1938
  %2101 = vmatpush1.msra.mxu0 %v1937
  %2102 = vmatprep.subr.mxu0 %v1940
  %2103 = vmatpush1.msra.mxu0 %v1939
  %2104 = vmatprep.subr.mxu0 %v1942
  %2105 = vmatpush1.msra.mxu0 %v1941
  %2106 = vmatprep.subr.mxu0 %v1944
  %2107 = vmatpush1.msra.mxu0 %v1943
  %2108 = vmatprep.subr.mxu0 %v1946
  %2109 = vmatpush1.msra.mxu0 %v1945
  %2110 = vmatprep.subr.mxu0 %v1948
  %2111 = vmatpush1.msra.mxu0 %v1947
  %2112 = vmatprep.subr.mxu0 0.0
  %2113 = vmatpush1.msra.mxu0 0.0
  %2114 = vmatprep.subr.mxu0 0.0
  %2115 = vmatpush1.msra.mxu0 0.0
  %2116 = vmatprep.subr.mxu0 0.0
  %2117 = vmatpush1.msra.mxu0 0.0
  %2118 = vmatprep.subr.mxu0 0.0
  %2119 = vmatpush1.msra.mxu0 0.0
  %2120 = vmatprep.subr.mxu0 0.0
  %2121 = vmatpush1.msra.mxu0 0.0
  %2122 = vmatprep.subr.mxu0 0.0
  %2123 = vmatpush1.msra.mxu0 0.0
  %2124 = vmatprep.subr.mxu0 0.0
  %2125 = vmatpush1.msra.mxu0 0.0
  %2126 = vmatprep.subr.mxu0 0.0
  %2127 = vmatpush1.msra.mxu0 0.0
  %2128 = vmatprep.subr.mxu0 0.0
  %2129 = vmatpush1.msra.mxu0 0.0
  %2130 = vmatprep.subr.mxu0 0.0
  %2131 = vmatpush1.msra.mxu0 0.0
  %2132 = vmatprep.subr.mxu0 0.0
  %2133 = vmatpush1.msra.mxu0 0.0
  %2134 = vmatprep.subr.mxu0 0.0
  %2135 = vmatpush1.msra.mxu0 0.0
  %2136 = vmatprep.subr.mxu0 0.0
  %2137 = vmatpush1.msra.mxu0 0.0
  %2138 = vmatprep.subr.mxu0 0.0
  %2139 = vmatpush1.msra.mxu0 0.0
  %2140 = vmatprep.subr.mxu0 0.0
  %2141 = vmatpush1.msra.mxu0 0.0
  %2142 = vmatprep.subr.mxu0 0.0
  %2143 = vmatpush1.msra.mxu0 0.0
  %2144 = vmatprep.mubr.f32.mxu0 0.0
  %2145 = vmatmul.mubr.f32.gmra.mrb[0].mxu0 %v2068
  %v2146 = vpop.f32.mrb[0].mxu0
  %v2147 = vadd.f32 %v2073, %v2146
  %v2148 = vpop.f32.mrb[0].mxu0
  %v2149 = vadd.f32 %v2077, %v2148
  %2150 = vdwg.mxu0
  %v2151 = vmul.f32 %v2147, 0.5
  %v2152 = vtanh.pop %v2151
  %v2153 = vmul.f32 %v2152, 0.5
  %v2154 = vadd.f32 %v2153, 0.5
  %v2155 = vtanh.pop %v2149
  %v2156 = vmul.f32 %v2149, 0.5
  %v2157 = vtanh.pop %v2156
  %v2158 = vmul.f32 %v2157, 0.5
  %v2159 = vadd.f32 %v2158, 0.5
  %v2160 = vmul.f32 %v2154, 0.0
  %v2161 = vmul.f32 %v2154, %v2155
  %2163 = vrot.lane.b32.xlu0 %v2161, 64
  %v2164 = vpop.permute.xlu0 %2163
  %v2166 = vadd.f32 %v2160, %v2164
  %v2167 = vtanh.pop %v2166
  %v2168 = vmul.f32 %v2159, %v2167
  %2170 = vrot.lane.b32.xlu0 %v2168, 64
  %v2171 = vpop.permute.xlu0 %2170
  %2173 = vst.msk [vmem:[#allocation3] sm:$0xff] %vm220, %v2171
  %v2174 = vsel %vm220, %v2066, 0
  %2176 = vmatprep.subr.mxu0 %v1902
  %2177 = vmatpush1.msra.mxu0 %v1901
  %2178 = vmatprep.subr.mxu0 %v1904
  %2179 = vmatpush1.msra.mxu0 %v1903
  %2180 = vmatprep.subr.mxu0 %v1906
  %2181 = vmatpush1.msra.mxu0 %v1905
  %2182 = vmatprep.subr.mxu0 %v1908
  %2183 = vmatpush1.msra.mxu0 %v1907
  %2184 = vmatprep.subr.mxu0 %v1910
  %2185 = vmatpush1.msra.mxu0 %v1909
  %2186 = vmatprep.subr.mxu0 %v1912
  %2187 = vmatpush1.msra.mxu0 %v1911
  %2188 = vmatprep.subr.mxu0 %v1914
  %2189 = vmatpush1.msra.mxu0 %v1913
  %2190 = vmatprep.subr.mxu0 %v1916
  %2191 = vmatpush1.msra.mxu0 %v1915
  %2192 = vmatprep.subr.mxu0 0.0
  %2193 = vmatpush1.msra.mxu0 0.0
  %2194 = vmatprep.subr.mxu0 0.0
  %2195 = vmatpush1.msra.mxu0 0.0
  %2196 = vmatprep.subr.mxu0 0.0
  %2197 = vmatpush1.msra.mxu0 0.0
  %2198 = vmatprep.subr.mxu0 0.0
  %2199 = vmatpush1.msra.mxu0 0.0
  %2200 = vmatprep.subr.mxu0 0.0
  %2201 = vmatpush1.msra.mxu0 0.0
  %2202 = vmatprep.subr.mxu0 0.0
  %2203 = vmatpush1.msra.mxu0 0.0
  %2204 = vmatprep.subr.mxu0 0.0
  %2205 = vmatpush1.msra.mxu0 0.0
  %2206 = vmatprep.subr.mxu0 0.0
  %2207 = vmatpush1.msra.mxu0 0.0
  %2208 = vmatprep.subr.mxu0 0.0
  %2209 = vmatpush1.msra.mxu0 0.0
  %2210 = vmatprep.subr.mxu0 0.0
  %2211 = vmatpush1.msra.mxu0 0.0
  %2212 = vmatprep.subr.mxu0 0.0
  %2213 = vmatpush1.msra.mxu0 0.0
  %2214 = vmatprep.subr.mxu0 0.0
  %2215 = vmatpush1.msra.mxu0 0.0
  %2216 = vmatprep.subr.mxu0 0.0
  %2217 = vmatpush1.msra.mxu0 0.0
  %2218 = vmatprep.subr.mxu0 0.0
  %2219 = vmatpush1.msra.mxu0 0.0
  %2220 = vmatprep.subr.mxu0 0.0
  %2221 = vmatpush1.msra.mxu0 0.0
  %2222 = vmatprep.subr.mxu0 0.0
  %2223 = vmatpush1.msra.mxu0 0.0
  %2224 = vmatprep.subr.mxu0 0.0
  %2225 = vmatpush1.msra.mxu0 0.0
  %2226 = vmatprep.subr.mxu0 0.0
  %2227 = vmatpush1.msra.mxu0 0.0
  %2228 = vmatprep.subr.mxu0 0.0
  %2229 = vmatpush1.msra.mxu0 0.0
  %2230 = vmatprep.subr.mxu0 0.0
  %2231 = vmatpush1.msra.mxu0 0.0
  %2232 = vmatprep.subr.mxu0 0.0
  %2233 = vmatpush1.msra.mxu0 0.0
  %2234 = vmatprep.subr.mxu0 0.0
  %2235 = vmatpush1.msra.mxu0 0.0
  %2236 = vmatprep.subr.mxu0 0.0
  %2237 = vmatpush1.msra.mxu0 0.0
  %2238 = vmatprep.subr.mxu0 0.0
  %2239 = vmatpush1.msra.mxu0 0.0
  %2240 = vmatprep.mubr.f32.mxu0 0.0
  %2241 = vmatmul.mubr.f32.gmra.mrb[0].mxu0 %v2174
  %v2242 = vpop.f32.mrb[0].mxu0
  %v2243 = vadd.f32 0.0, %v2242
  %v2244 = vpop.f32.mrb[0].mxu0
  %v2245 = vadd.f32 0.0, %v2244
  %2246 = vdwg.mxu0
  %v2247 = vadd.f32 %v2042, %v2243
  %v2248 = vadd.f32 %v2044, %v2245
  %v2249 = vmul.f32 %v2247, 0.5
  %v2250 = vtanh.pop %v2249
  %v2251 = vmul.f32 %v2250, 0.5
  %v2252 = vadd.f32 %v2251, 0.5
  %v2253 = vtanh.pop %v2248
  %v2254 = vmul.f32 %v2248, 0.5
  %v2255 = vtanh.pop %v2254
  %v2256 = vmul.f32 %v2255, 0.5
  %v2257 = vadd.f32 %v2256, 0.5
  %v2258 = vmul.f32 %v2252, %v2061
  %v2259 = vmul.f32 %v2252, %v2253
  %2261 = vrot.lane.b32.xlu0 %v2259, 64
  %v2262 = vpop.permute.xlu0 %2261
  %v2264 = vadd.f32 %v2258, %v2262
  %v2265 = vtanh.pop %v2264
  %v2266 = vmul.f32 %v2257, %v2265
  %2268 = vrot.lane.b32.xlu0 %v2266, 64
  %v2269 = vpop.permute.xlu0 %2268
  %v2271 = vsel %vm220, %v2269, %v2168
  %2272 = vmatprep.subr.mxu0 %v1918
  %2273 = vmatpush1.msra.mxu0 %v1917
  %2274 = vmatprep.subr.mxu0 %v1920
  %2275 = vmatpush1.msra.mxu0 %v1919
  %2276 = vmatprep.subr.mxu0 %v1922
  %2277 = vmatpush1.msra.mxu0 %v1921
  %2278 = vmatprep.subr.mxu0 %v1924
  %2279 = vmatpush1.msra.mxu0 %v1923
  %2280 = vmatprep.subr.mxu0 %v1926
  %2281 = vmatpush1.msra.mxu0 %v1925
  %2282 = vmatprep.subr.mxu0 %v1928
  %2283 = vmatpush1.msra.mxu0 %v1927
  %2284 = vmatprep.subr.mxu0 %v1930
  %2285 = vmatpush1.msra.mxu0 %v1929
  %2286 = vmatprep.subr.mxu0 %v1932
  %2287 = vmatpush1.msra.mxu0 %v1931
  %2288 = vmatprep.subr.mxu0 %v1934
  %2289 = vmatpush1.msra.mxu0 %v1933
  %2290 = vmatprep.subr.mxu0 %v1936
  %2291 = vmatpush1.msra.mxu0 %v1935
  %2292 = vmatprep.subr.mxu0 %v1938
  %2293 = vmatpush1.msra.mxu0 %v1937
  %2294 = vmatprep.subr.mxu0 %v1940
  %2295 = vmatpush1.msra.mxu0 %v1939
  %2296 = vmatprep.subr.mxu0 %v1942
  %2297 = vmatpush1.msra.mxu0 %v1941
  %2298 = vmatprep.subr.mxu0 %v1944
  %2299 = vmatpush1.msra.mxu0 %v1943
  %2300 = vmatprep.subr.mxu0 %v1946
  %2301 = vmatpush1.msra.mxu0 %v1945
  %2302 = vmatprep.subr.mxu0 %v1948
  %2303 = vmatpush1.msra.mxu0 %v1947
  %2304 = vmatprep.subr.mxu0 0.0
  %2305 = vmatpush1.msra.mxu0 0.0
  %2306 = vmatprep.subr.mxu0 0.0
  %2307 = vmatpush1.msra.mxu0 0.0
  %2308 = vmatprep.subr.mxu0 0.0
  %2309 = vmatpush1.msra.mxu0 0.0
  %2310 = vmatprep.subr.mxu0 0.0
  %2311 = vmatpush1.msra.mxu0 0.0
  %2312 = vmatprep.subr.mxu0 0.0
  %2313 = vmatpush1.msra.mxu0 0.0
  %2314 = vmatprep.subr.mxu0 0.0
  %2315 = vmatpush1.msra.mxu0 0.0
  %2316 = vmatprep.subr.mxu0 0.0
  %2317 = vmatpush1.msra.mxu0 0.0
  %2318 = vmatprep.subr.mxu0 0.0
  %2319 = vmatpush1.msra.mxu0 0.0
  %2320 = vmatprep.subr.mxu0 0.0
  %2321 = vmatpush1.msra.mxu0 0.0
  %2322 = vmatprep.subr.mxu0 0.0
  %2323 = vmatpush1.msra.mxu0 0.0
  %2324 = vmatprep.subr.mxu0 0.0
  %2325 = vmatpush1.msra.mxu0 0.0
  %2326 = vmatprep.subr.mxu0 0.0
  %2327 = vmatpush1.msra.mxu0 0.0
  %2328 = vmatprep.subr.mxu0 0.0
  %2329 = vmatpush1.msra.mxu0 0.0
  %2330 = vmatprep.subr.mxu0 0.0
  %2331 = vmatpush1.msra.mxu0 0.0
  %2332 = vmatprep.subr.mxu0 0.0
  %2333 = vmatpush1.msra.mxu0 0.0
  %2334 = vmatprep.subr.mxu0 0.0
  %2335 = vmatpush1.msra.mxu0 0.0
  %2336 = vmatprep.mubr.f32.mxu0 0.0
  %2337 = vmatmul.mubr.f32.gmra.mrb[0].mxu0 %v2271
  %v2338 = vpop.f32.mrb[0].mxu0
  %v2339 = vadd.f32 %v2073, %v2338
  %v2340 = vpop.f32.mrb[0].mxu0
  %v2341 = vadd.f32 %v2077, %v2340
  %2342 = vdwg.mxu0
  %v2343 = vmul.f32 %v2339, 0.5
  %v2344 = vtanh.pop %v2343
  %v2345 = vmul.f32 %v2344, 0.5
  %v2346 = vadd.f32 %v2345, 0.5
  %v2347 = vtanh.pop %v2341
  %v2348 = vmul.f32 %v2341, 0.5
  %v2349 = vtanh.pop %v2348
  %v2350 = vmul.f32 %v2349, 0.5
  %v2351 = vadd.f32 %v2350, 0.5
  %v2352 = vmul.f32 %v2346, %v2166
  %v2353 = vmul.f32 %v2346, %v2347
  %2355 = vrot.lane.b32.xlu0 %v2353, 64
  %v2356 = vpop.permute.xlu0 %2355
  %v2358 = vadd.f32 %v2352, %v2356
  %v2359 = vtanh.pop %v2358
  %v2360 = vmul.f32 %v2351, %v2359
  %2362 = vrot.lane.b32.xlu0 %v2360, 64
  %v2363 = vpop.permute.xlu0 %2362
  %2365 = vst.msk [vmem:[#allocation3 + $0x8] sm:$0xff] %vm220, %v2363
  %v2366 = vsel %vm220, %v2269, 0
  %2368 = vmatprep.subr.mxu0 %v1902
  %2369 = vmatpush1.msra.mxu0 %v1901
  %2370 = vmatprep.subr.mxu0 %v1904
  %2371 = vmatpush1.msra.mxu0 %v1903
  %2372 = vmatprep.subr.mxu0 %v1906
  %2373 = vmatpush1.msra.mxu0 %v1905
  %2374 = vmatprep.subr.mxu0 %v1908
  %2375 = vmatpush1.msra.mxu0 %v1907
  %2376 = vmatprep.subr.mxu0 %v1910
  %2377 = vmatpush1.msra.mxu0 %v1909
  %2378 = vmatprep.subr.mxu0 %v1912
  %2379 = vmatpush1.msra.mxu0 %v1911
  %2380 = vmatprep.subr.mxu0 %v1914
  %2381 = vmatpush1.msra.mxu0 %v1913
  %2382 = vmatprep.subr.mxu0 %v1916
  %2383 = vmatpush1.msra.mxu0 %v1915
  %2384 = vmatprep.subr.mxu0 0.0
  %2385 = vmatpush1.msra.mxu0 0.0
  %2386 = vmatprep.subr.mxu0 0.0
  %2387 = vmatpush1.msra.mxu0 0.0
  %2388 = vmatprep.subr.mxu0 0.0
  %2389 = vmatpush1.msra.mxu0 0.0
  %2390 = vmatprep.subr.mxu0 0.0
  %2391 = vmatpush1.msra.mxu0 0.0
  %2392 = vmatprep.subr.mxu0 0.0
  %2393 = vmatpush1.msra.mxu0 0.0
  %2394 = vmatprep.subr.mxu0 0.0
  %2395 = vmatpush1.msra.mxu0 0.0
  %2396 = vmatprep.subr.mxu0 0.0
  %2397 = vmatpush1.msra.mxu0 0.0
  %2398 = vmatprep.subr.mxu0 0.0
  %2399 = vmatpush1.msra.mxu0 0.0
  %2400 = vmatprep.subr.mxu0 0.0
  %2401 = vmatpush1.msra.mxu0 0.0
  %2402 = vmatprep.subr.mxu0 0.0
  %2403 = vmatpush1.msra.mxu0 0.0
  %2404 = vmatprep.subr.mxu0 0.0
  %2405 = vmatpush1.msra.mxu0 0.0
  %2406 = vmatprep.subr.mxu0 0.0
  %2407 = vmatpush1.msra.mxu0 0.0
  %2408 = vmatprep.subr.mxu0 0.0
  %2409 = vmatpush1.msra.mxu0 0.0
  %2410 = vmatprep.subr.mxu0 0.0
  %2411 = vmatpush1.msra.mxu0 0.0
  %2412 = vmatprep.subr.mxu0 0.0
  %2413 = vmatpush1.msra.mxu0 0.0
  %2414 = vmatprep.subr.mxu0 0.0
  %2415 = vmatpush1.msra.mxu0 0.0
  %2416 = vmatprep.subr.mxu0 0.0
  %2417 = vmatpush1.msra.mxu0 0.0
  %2418 = vmatprep.subr.mxu0 0.0
  %2419 = vmatpush1.msra.mxu0 0.0
  %2420 = vmatprep.subr.mxu0 0.0
  %2421 = vmatpush1.msra.mxu0 0.0
  %2422 = vmatprep.subr.mxu0 0.0
  %2423 = vmatpush1.msra.mxu0 0.0
  %2424 = vmatprep.subr.mxu0 0.0
  %2425 = vmatpush1.msra.mxu0 0.0
  %2426 = vmatprep.subr.mxu0 0.0
  %2427 = vmatpush1.msra.mxu0 0.0
  %2428 = vmatprep.subr.mxu0 0.0
  %2429 = vmatpush1.msra.mxu0 0.0
  %2430 = vmatprep.subr.mxu0 0.0
  %2431 = vmatpush1.msra.mxu0 0.0
  %2432 = vmatprep.mubr.f32.mxu0 0.0
  %2433 = vmatmul.mubr.f32.gmra.mrb[0].mxu0 %v2366
  %v2434 = vpop.f32.mrb[0].mxu0
  %v2435 = vadd.f32 0.0, %v2434
  %v2436 = vpop.f32.mrb[0].mxu0
  %v2437 = vadd.f32 0.0, %v2436
  %2438 = vdwg.mxu0
  %v2439 = vadd.f32 %v2042, %v2435
  %v2440 = vadd.f32 %v2044, %v2437
  %v2441 = vmul.f32 %v2439, 0.5
  %v2442 = vtanh.pop %v2441
  %v2443 = vmul.f32 %v2442, 0.5
  %v2444 = vadd.f32 %v2443, 0.5
  %v2445 = vtanh.pop %v2440
  %v2446 = vmul.f32 %v2440, 0.5
  %v2447 = vtanh.pop %v2446
  %v2448 = vmul.f32 %v2447, 0.5
  %v2449 = vadd.f32 %v2448, 0.5
  %v2450 = vmul.f32 %v2444, %v2264
  %v2451 = vmul.f32 %v2444, %v2445
  %2453 = vrot.lane.b32.xlu0 %v2451, 64
  %v2454 = vpop.permute.xlu0 %2453
  %v2456 = vadd.f32 %v2450, %v2454
  %v2457 = vtanh.pop %v2456
  %v2458 = vmul.f32 %v2449, %v2457
  %2460 = vrot.lane.b32.xlu0 %v2458, 64
  %v2461 = vpop.permute.xlu0 %2460
  %v2463 = vsel %vm220, %v2461, %v2360
  %2464 = vmatprep.subr.mxu0 %v1918
  %2465 = vmatpush1.msra.mxu0 %v1917
  %2466 = vmatprep.subr.mxu0 %v1920
  %2467 = vmatpush1.msra.mxu0 %v1919
  %2468 = vmatprep.subr.mxu0 %v1922
  %2469 = vmatpush1.msra.mxu0 %v1921
  %2470 = vmatprep.subr.mxu0 %v1924
  %2471 = vmatpush1.msra.mxu0 %v1923
  %2472 = vmatprep.subr.mxu0 %v1926
  %2473 = vmatpush1.msra.mxu0 %v1925
  %2474 = vmatprep.subr.mxu0 %v1928
  %2475 = vmatpush1.msra.mxu0 %v1927
  %2476 = vmatprep.subr.mxu0 %v1930
  %2477 = vmatpush1.msra.mxu0 %v1929
  %2478 = vmatprep.subr.mxu0 %v1932
  %2479 = vmatpush1.msra.mxu0 %v1931
  %2480 = vmatprep.subr.mxu0 %v1934
  %2481 = vmatpush1.msra.mxu0 %v1933
  %2482 = vmatprep.subr.mxu0 %v1936
  %2483 = vmatpush1.msra.mxu0 %v1935
  %2484 = vmatprep.subr.mxu0 %v1938
  %2485 = vmatpush1.msra.mxu0 %v1937
  %2486 = vmatprep.subr.mxu0 %v1940
  %2487 = vmatpush1.msra.mxu0 %v1939
  %2488 = vmatprep.subr.mxu0 %v1942
  %2489 = vmatpush1.msra.mxu0 %v1941
  %2490 = vmatprep.subr.mxu0 %v1944
  %2491 = vmatpush1.msra.mxu0 %v1943
  %2492 = vmatprep.subr.mxu0 %v1946
  %2493 = vmatpush1.msra.mxu0 %v1945
  %2494 = vmatprep.subr.mxu0 %v1948
  %2495 = vmatpush1.msra.mxu0 %v1947
  %2496 = vmatprep.subr.mxu0 0.0
  %2497 = vmatpush1.msra.mxu0 0.0
  %2498 = vmatprep.subr.mxu0 0.0
  %2499 = vmatpush1.msra.mxu0 0.0
  %2500 = vmatprep.subr.mxu0 0.0
  %2501 = vmatpush1.msra.mxu0 0.0
  %2502 = vmatprep.subr.mxu0 0.0
  %2503 = vmatpush1.msra.mxu0 0.0
  %2504 = vmatprep.subr.mxu0 0.0
  %2505 = vmatpush1.msra.mxu0 0.0
  %2506 = vmatprep.subr.mxu0 0.0
  %2507 = vmatpush1.msra.mxu0 0.0
  %2508 = vmatprep.subr.mxu0 0.0
  %2509 = vmatpush1.msra.mxu0 0.0
  %2510 = vmatprep.subr.mxu0 0.0
  %2511 = vmatpush1.msra.mxu0 0.0
  %2512 = vmatprep.subr.mxu0 0.0
  %2513 = vmatpush1.msra.mxu0 0.0
  %2514 = vmatprep.subr.mxu0 0.0
  %2515 = vmatpush1.msra.mxu0 0.0
  %2516 = vmatprep.subr.mxu0 0.0
  %2517 = vmatpush1.msra.mxu0 0.0
  %2518 = vmatprep.subr.mxu0 0.0
  %2519 = vmatpush1.msra.mxu0 0.0
  %2520 = vmatprep.subr.mxu0 0.0
  %2521 = vmatpush1.msra.mxu0 0.0
  %2522 = vmatprep.subr.mxu0 0.0
  %2523 = vmatpush1.msra.mxu0 0.0
  %2524 = vmatprep.subr.mxu0 0.0
  %2525 = vmatpush1.msra.mxu0 0.0
  %2526 = vmatprep.subr.mxu0 0.0
  %2527 = vmatpush1.msra.mxu0 0.0
  %2528 = vmatprep.mubr.f32.mxu0 0.0
  %2529 = vmatmul.mubr.f32.gmra.mrb[0].mxu0 %v2463
  %v2530 = vpop.f32.mrb[0].mxu0
  %v2531 = vadd.f32 %v2073, %v2530
  %v2532 = vpop.f32.mrb[0].mxu0
  %v2533 = vadd.f32 %v2077, %v2532
  %2534 = vdwg.mxu0
  %v2535 = vmul.f32 %v2531, 0.5
  %v2536 = vtanh.pop %v2535
  %v2537 = vmul.f32 %v2536, 0.5
  %v2538 = vadd.f32 %v2537, 0.5
  %v2539 = vtanh.pop %v2533
  %v2540 = vmul.f32 %v2533, 0.5
  %v2541 = vtanh.pop %v2540
  %v2542 = vmul.f32 %v2541, 0.5
  %v2543 = vadd.f32 %v2542, 0.5
  %v2544 = vmul.f32 %v2538, %v2358
  %v2545 = vmul.f32 %v2538, %v2539
  %2547 = vrot.lane.b32.xlu0 %v2545, 64
  %v2548 = vpop.permute.xlu0 %2547
  %v2550 = vadd.f32 %v2544, %v2548
  %v2551 = vtanh.pop %v2550
  %v2552 = vmul.f32 %v2543, %v2551
  %2554 = vrot.lane.b32.xlu0 %v2552, 64
  %v2555 = vpop.permute.xlu0 %2554
  %2557 = vst.msk [vmem:[#allocation3 + $0x10] sm:$0xff] %vm220, %v2555
  %v2558 = vsel %vm220, %v2461, 0
  %2560 = vmatprep.subr.mxu0 %v1902
  %2561 = vmatpush1.msra.mxu0 %v1901
  %2562 = vmatprep.subr.mxu0 %v1904
  %2563 = vmatpush1.msra.mxu0 %v1903
  %2564 = vmatprep.subr.mxu0 %v1906
  %2565 = vmatpush1.msra.mxu0 %v1905
  %2566 = vmatprep.subr.mxu0 %v1908
  %2567 = vmatpush1.msra.mxu0 %v1907
  %2568 = vmatprep.subr.mxu0 %v1910
  %2569 = vmatpush1.msra.mxu0 %v1909
  %2570 = vmatprep.subr.mxu0 %v1912
  %2571 = vmatpush1.msra.mxu0 %v1911
  %2572 = vmatprep.subr.mxu0 %v1914
  %2573 = vmatpush1.msra.mxu0 %v1913
  %2574 = vmatprep.subr.mxu0 %v1916
  %2575 = vmatpush1.msra.mxu0 %v1915
  %2576 = vmatprep.subr.mxu0 0.0
  %2577 = vmatpush1.msra.mxu0 0.0
  %2578 = vmatprep.subr.mxu0 0.0
  %2579 = vmatpush1.msra.mxu0 0.0
  %2580 = vmatprep.subr.mxu0 0.0
  %2581 = vmatpush1.msra.mxu0 0.0
  %2582 = vmatprep.subr.mxu0 0.0
  %2583 = vmatpush1.msra.mxu0 0.0
  %2584 = vmatprep.subr.mxu0 0.0
  %2585 = vmatpush1.msra.mxu0 0.0
  %2586 = vmatprep.subr.mxu0 0.0
  %2587 = vmatpush1.msra.mxu0 0.0
  %2588 = vmatprep.subr.mxu0 0.0
  %2589 = vmatpush1.msra.mxu0 0.0
  %2590 = vmatprep.subr.mxu0 0.0
  %2591 = vmatpush1.msra.mxu0 0.0
  %2592 = vmatprep.subr.mxu0 0.0
  %2593 = vmatpush1.msra.mxu0 0.0
  %2594 = vmatprep.subr.mxu0 0.0
  %2595 = vmatpush1.msra.mxu0 0.0
  %2596 = vmatprep.subr.mxu0 0.0
  %2597 = vmatpush1.msra.mxu0 0.0
  %2598 = vmatprep.subr.mxu0 0.0
  %2599 = vmatpush1.msra.mxu0 0.0
  %2600 = vmatprep.subr.mxu0 0.0
  %2601 = vmatpush1.msra.mxu0 0.0
  %2602 = vmatprep.subr.mxu0 0.0
  %2603 = vmatpush1.msra.mxu0 0.0
  %2604 = vmatprep.subr.mxu0 0.0
  %2605 = vmatpush1.msra.mxu0 0.0
  %2606 = vmatprep.subr.mxu0 0.0
  %2607 = vmatpush1.msra.mxu0 0.0
  %2608 = vmatprep.subr.mxu0 0.0
  %2609 = vmatpush1.msra.mxu0 0.0
  %2610 = vmatprep.subr.mxu0 0.0
  %2611 = vmatpush1.msra.mxu0 0.0
  %2612 = vmatprep.subr.mxu0 0.0
  %2613 = vmatpush1.msra.mxu0 0.0
  %2614 = vmatprep.subr.mxu0 0.0
  %2615 = vmatpush1.msra.mxu0 0.0
  %2616 = vmatprep.subr.mxu0 0.0
  %2617 = vmatpush1.msra.mxu0 0.0
  %2618 = vmatprep.subr.mxu0 0.0
  %2619 = vmatpush1.msra.mxu0 0.0
  %2620 = vmatprep.subr.mxu0 0.0
  %2621 = vmatpush1.msra.mxu0 0.0
  %2622 = vmatprep.subr.mxu0 0.0
  %2623 = vmatpush1.msra.mxu0 0.0
  %2624 = vmatprep.mubr.f32.mxu0 0.0
  %2625 = vmatmul.mubr.f32.gmra.mrb[0].mxu0 %v2558
  %v2626 = vpop.f32.mrb[0].mxu0
  %v2627 = vadd.f32 0.0, %v2626
  %v2628 = vpop.f32.mrb[0].mxu0
  %v2629 = vadd.f32 0.0, %v2628
  %2630 = vdwg.mxu0
  %v2631 = vadd.f32 %v2042, %v2627
  %v2632 = vadd.f32 %v2044, %v2629
  %v2633 = vmul.f32 %v2631, 0.5
  %v2634 = vtanh.pop %v2633
  %v2635 = vmul.f32 %v2634, 0.5
  %v2636 = vadd.f32 %v2635, 0.5
  %v2637 = vtanh.pop %v2632
  %v2638 = vmul.f32 %v2632, 0.5
  %v2639 = vtanh.pop %v2638
  %v2640 = vmul.f32 %v2639, 0.5
  %v2641 = vadd.f32 %v2640, 0.5
  %v2642 = vmul.f32 %v2636, %v2456
  %v2643 = vmul.f32 %v2636, %v2637
  %2645 = vrot.lane.b32.xlu0 %v2643, 64
  %v2646 = vpop.permute.xlu0 %2645
  %v2648 = vadd.f32 %v2642, %v2646
  %v2649 = vtanh.pop %v2648
  %v2650 = vmul.f32 %v2641, %v2649
  %2652 = vrot.lane.b32.xlu0 %v2650, 64
  %v2653 = vpop.permute.xlu0 %2652
  %v2655 = vsel %vm220, %v2653, %v2552
  %2656 = vmatprep.subr.mxu0 %v1918
  %2657 = vmatpush1.msra.mxu0 %v1917
  %2658 = vmatprep.subr.mxu0 %v1920
  %2659 = vmatpush1.msra.mxu0 %v1919
  %2660 = vmatprep.subr.mxu0 %v1922
  %2661 = vmatpush1.msra.mxu0 %v1921
  %2662 = vmatprep.subr.mxu0 %v1924
  %2663 = vmatpush1.msra.mxu0 %v1923
  %2664 = vmatprep.subr.mxu0 %v1926
  %2665 = vmatpush1.msra.mxu0 %v1925
  %2666 = vmatprep.subr.mxu0 %v1928
  %2667 = vmatpush1.msra.mxu0 %v1927
  %2668 = vmatprep.subr.mxu0 %v1930
  %2669 = vmatpush1.msra.mxu0 %v1929
  %2670 = vmatprep.subr.mxu0 %v1932
  %2671 = vmatpush1.msra.mxu0 %v1931
  %2672 = vmatprep.subr.mxu0 %v1934
  %2673 = vmatpush1.msra.mxu0 %v1933
  %2674 = vmatprep.subr.mxu0 %v1936
  %2675 = vmatpush1.msra.mxu0 %v1935
  %2676 = vmatprep.subr.mxu0 %v1938
  %2677 = vmatpush1.msra.mxu0 %v1937
  %2678 = vmatprep.subr.mxu0 %v1940
  %2679 = vmatpush1.msra.mxu0 %v1939
  %2680 = vmatprep.subr.mxu0 %v1942
  %2681 = vmatpush1.msra.mxu0 %v1941
  %2682 = vmatprep.subr.mxu0 %v1944
  %2683 = vmatpush1.msra.mxu0 %v1943
  %2684 = vmatprep.subr.mxu0 %v1946
  %2685 = vmatpush1.msra.mxu0 %v1945
  %2686 = vmatprep.subr.mxu0 %v1948
  %2687 = vmatpush1.msra.mxu0 %v1947
  %2688 = vmatprep.subr.mxu0 0.0
  %2689 = vmatpush1.msra.mxu0 0.0
  %2690 = vmatprep.subr.mxu0 0.0
  %2691 = vmatpush1.msra.mxu0 0.0
  %2692 = vmatprep.subr.mxu0 0.0
  %2693 = vmatpush1.msra.mxu0 0.0
  %2694 = vmatprep.subr.mxu0 0.0
  %2695 = vmatpush1.msra.mxu0 0.0
  %2696 = vmatprep.subr.mxu0 0.0
  %2697 = vmatpush1.msra.mxu0 0.0
  %2698 = vmatprep.subr.mxu0 0.0
  %2699 = vmatpush1.msra.mxu0 0.0
  %2700 = vmatprep.subr.mxu0 0.0
  %2701 = vmatpush1.msra.mxu0 0.0
  %2702 = vmatprep.subr.mxu0 0.0
  %2703 = vmatpush1.msra.mxu0 0.0
  %2704 = vmatprep.subr.mxu0 0.0
  %2705 = vmatpush1.msra.mxu0 0.0
  %2706 = vmatprep.subr.mxu0 0.0
  %2707 = vmatpush1.msra.mxu0 0.0
  %2708 = vmatprep.subr.mxu0 0.0
  %2709 = vmatpush1.msra.mxu0 0.0
  %2710 = vmatprep.subr.mxu0 0.0
  %2711 = vmatpush1.msra.mxu0 0.0
  %2712 = vmatprep.subr.mxu0 0.0
  %2713 = vmatpush1.msra.mxu0 0.0
  %2714 = vmatprep.subr.mxu0 0.0
  %2715 = vmatpush1.msra.mxu0 0.0
  %2716 = vmatprep.subr.mxu0 0.0
  %2717 = vmatpush1.msra.mxu0 0.0
  %2718 = vmatprep.subr.mxu0 0.0
  %2719 = vmatpush1.msra.mxu0 0.0
  %2720 = vmatprep.mubr.f32.mxu0 0.0
  %2721 = vmatmul.mubr.f32.gmra.mrb[0].mxu0 %v2655
  %v2722 = vpop.f32.mrb[0].mxu0
  %v2723 = vadd.f32 %v2073, %v2722
  %v2724 = vpop.f32.mrb[0].mxu0
  %v2725 = vadd.f32 %v2077, %v2724
  %2726 = vdwg.mxu0
  %v2727 = vmul.f32 %v2723, 0.5
  %v2728 = vtanh.pop %v2727
  %v2729 = vmul.f32 %v2728, 0.5
  %v2730 = vadd.f32 %v2729, 0.5
  %v2731 = vtanh.pop %v2725
  %v2732 = vmul.f32 %v2725, 0.5
  %v2733 = vtanh.pop %v2732
  %v2734 = vmul.f32 %v2733, 0.5
  %v2735 = vadd.f32 %v2734, 0.5
  %v2736 = vmul.f32 %v2730, %v2550
  %v2737 = vmul.f32 %v2730, %v2731
  %2739 = vrot.lane.b32.xlu0 %v2737, 64
  %v2740 = vpop.permute.xlu0 %2739
  %v2742 = vadd.f32 %v2736, %v2740
  %v2743 = vtanh.pop %v2742
  %v2744 = vmul.f32 %v2735, %v2743
  %2746 = vrot.lane.b32.xlu0 %v2744, 64
  %v2747 = vpop.permute.xlu0 %2746
  %2749 = vst.msk [vmem:[#allocation3 + $0x18] sm:$0xff] %vm220, %v2747
  %v2750 = vsel %vm220, %v2653, 0
  %2752 = vmatprep.subr.mxu0 %v1902
  %2753 = vmatpush1.msra.mxu0 %v1901
  %2754 = vmatprep.subr.mxu0 %v1904
  %2755 = vmatpush1.msra.mxu0 %v1903
  %2756 = vmatprep.subr.mxu0 %v1906
  %2757 = vmatpush1.msra.mxu0 %v1905
  %2758 = vmatprep.subr.mxu0 %v1908
  %2759 = vmatpush1.msra.mxu0 %v1907
  %2760 = vmatprep.subr.mxu0 %v1910
  %2761 = vmatpush1.msra.mxu0 %v1909
  %2762 = vmatprep.subr.mxu0 %v1912
  %2763 = vmatpush1.msra.mxu0 %v1911
  %2764 = vmatprep.subr.mxu0 %v1914
  %2765 = vmatpush1.msra.mxu0 %v1913
  %2766 = vmatprep.subr.mxu0 %v1916
  %2767 = vmatpush1.msra.mxu0 %v1915
  %2768 = vmatprep.subr.mxu0 0.0
  %2769 = vmatpush1.msra.mxu0 0.0
  %2770 = vmatprep.subr.mxu0 0.0
  %2771 = vmatpush1.msra.mxu0 0.0
  %2772 = vmatprep.subr.mxu0 0.0
  %2773 = vmatpush1.msra.mxu0 0.0
  %2774 = vmatprep.subr.mxu0 0.0
  %2775 = vmatpush1.msra.mxu0 0.0
  %2776 = vmatprep.subr.mxu0 0.0
  %2777 = vmatpush1.msra.mxu0 0.0
  %2778 = vmatprep.subr.mxu0 0.0
  %2779 = vmatpush1.msra.mxu0 0.0
  %2780 = vmatprep.subr.mxu0 0.0
  %2781 = vmatpush1.msra.mxu0 0.0
  %2782 = vmatprep.subr.mxu0 0.0
  %2783 = vmatpush1.msra.mxu0 0.0
  %2784 = vmatprep.subr.mxu0 0.0
  %2785 = vmatpush1.msra.mxu0 0.0
  %2786 = vmatprep.subr.mxu0 0.0
  %2787 = vmatpush1.msra.mxu0 0.0
  %2788 = vmatprep.subr.mxu0 0.0
  %2789 = vmatpush1.msra.mxu0 0.0
  %2790 = vmatprep.subr.mxu0 0.0
  %2791 = vmatpush1.msra.mxu0 0.0
  %2792 = vmatprep.subr.mxu0 0.0
  %2793 = vmatpush1.msra.mxu0 0.0
  %2794 = vmatprep.subr.mxu0 0.0
  %2795 = vmatpush1.msra.mxu0 0.0
  %2796 = vmatprep.subr.mxu0 0.0
  %2797 = vmatpush1.msra.mxu0 0.0
  %2798 = vmatprep.subr.mxu0 0.0
  %2799 = vmatpush1.msra.mxu0 0.0
  %2800 = vmatprep.subr.mxu0 0.0
  %2801 = vmatpush1.msra.mxu0 0.0
  %2802 = vmatprep.subr.mxu0 0.0
  %2803 = vmatpush1.msra.mxu0 0.0
  %2804 = vmatprep.subr.mxu0 0.0
  %2805 = vmatpush1.msra.mxu0 0.0
  %2806 = vmatprep.subr.mxu0 0.0
  %2807 = vmatpush1.msra.mxu0 0.0
  %2808 = vmatprep.subr.mxu0 0.0
  %2809 = vmatpush1.msra.mxu0 0.0
  %2810 = vmatprep.subr.mxu0 0.0
  %2811 = vmatpush1.msra.mxu0 0.0
  %2812 = vmatprep.subr.mxu0 0.0
  %2813 = vmatpush1.msra.mxu0 0.0
  %2814 = vmatprep.subr.mxu0 0.0
  %2815 = vmatpush1.msra.mxu0 0.0
  %2816 = vmatprep.mubr.f32.mxu0 0.0
  %2817 = vmatmul.mubr.f32.gmra.mrb[0].mxu0 %v2750
  %v2818 = vpop.f32.mrb[0].mxu0
  %v2819 = vadd.f32 0.0, %v2818
  %v2820 = vpop.f32.mrb[0].mxu0
  %v2821 = vadd.f32 0.0, %v2820
  %2822 = vdwg.mxu0
  %v2823 = vadd.f32 %v2042, %v2819
  %v2824 = vadd.f32 %v2044, %v2821
  %v2825 = vmul.f32 %v2823, 0.5
  %v2826 = vtanh.pop %v2825
  %v2827 = vmul.f32 %v2826, 0.5
  %v2828 = vadd.f32 %v2827, 0.5
  %v2829 = vtanh.pop %v2824
  %v2830 = vmul.f32 %v2824, 0.5
  %v2831 = vtanh.pop %v2830
  %v2832 = vmul.f32 %v2831, 0.5
  %v2833 = vadd.f32 %v2832, 0.5
  %v2834 = vmul.f32 %v2828, %v2648
  %v2835 = vmul.f32 %v2828, %v2829
  %2837 = vrot.lane.b32.xlu0 %v2835, 64
  %v2838 = vpop.permute.xlu0 %2837
  %v2840 = vadd.f32 %v2834, %v2838
  %v2841 = vtanh.pop %v2840
  %v2842 = vmul.f32 %v2833, %v2841
  %2844 = vrot.lane.b32.xlu0 %v2842, 64
  %v2845 = vpop.permute.xlu0 %2844
  %v2847 = vsel %vm220, %v2845, %v2744
  %2848 = vmatprep.subr.mxu0 %v1918
  %2849 = vmatpush1.msra.mxu0 %v1917
  %2850 = vmatprep.subr.mxu0 %v1920
  %2851 = vmatpush1.msra.mxu0 %v1919
  %2852 = vmatprep.subr.mxu0 %v1922
  %2853 = vmatpush1.msra.mxu0 %v1921
  %2854 = vmatprep.subr.mxu0 %v1924
  %2855 = vmatpush1.msra.mxu0 %v1923
  %2856 = vmatprep.subr.mxu0 %v1926
  %2857 = vmatpush1.msra.mxu0 %v1925
  %2858 = vmatprep.subr.mxu0 %v1928
  %2859 = vmatpush1.msra.mxu0 %v1927
  %2860 = vmatprep.subr.mxu0 %v1930
  %2861 = vmatpush1.msra.mxu0 %v1929
  %2862 = vmatprep.subr.mxu0 %v1932
  %2863 = vmatpush1.msra.mxu0 %v1931
  %2864 = vmatprep.subr.mxu0 %v1934
  %2865 = vmatpush1.msra.mxu0 %v1933
  %2866 = vmatprep.subr.mxu0 %v1936
  %2867 = vmatpush1.msra.mxu0 %v1935
  %2868 = vmatprep.subr.mxu0 %v1938
  %2869 = vmatpush1.msra.mxu0 %v1937
  %2870 = vmatprep.subr.mxu0 %v1940
  %2871 = vmatpush1.msra.mxu0 %v1939
  %2872 = vmatprep.subr.mxu0 %v1942
  %2873 = vmatpush1.msra.mxu0 %v1941
  %2874 = vmatprep.subr.mxu0 %v1944
  %2875 = vmatpush1.msra.mxu0 %v1943
  %2876 = vmatprep.subr.mxu0 %v1946
  %2877 = vmatpush1.msra.mxu0 %v1945
  %2878 = vmatprep.subr.mxu0 %v1948
  %2879 = vmatpush1.msra.mxu0 %v1947
  %2880 = vmatprep.subr.mxu0 0.0
  %2881 = vmatpush1.msra.mxu0 0.0
  %2882 = vmatprep.subr.mxu0 0.0
  %2883 = vmatpush1.msra.mxu0 0.0
  %2884 = vmatprep.subr.mxu0 0.0
  %2885 = vmatpush1.msra.mxu0 0.0
  %2886 = vmatprep.subr.mxu0 0.0
  %2887 = vmatpush1.msra.mxu0 0.0
  %2888 = vmatprep.subr.mxu0 0.0
  %2889 = vmatpush1.msra.mxu0 0.0
  %2890 = vmatprep.subr.mxu0 0.0
  %2891 = vmatpush1.msra.mxu0 0.0
  %2892 = vmatprep.subr.mxu0 0.0
  %2893 = vmatpush1.msra.mxu0 0.0
  %2894 = vmatprep.subr.mxu0 0.0
  %2895 = vmatpush1.msra.mxu0 0.0
  %2896 = vmatprep.subr.mxu0 0.0
  %2897 = vmatpush1.msra.mxu0 0.0
  %2898 = vmatprep.subr.mxu0 0.0
  %2899 = vmatpush1.msra.mxu0 0.0
  %2900 = vmatprep.subr.mxu0 0.0
  %2901 = vmatpush1.msra.mxu0 0.0
  %2902 = vmatprep.subr.mxu0 0.0
  %2903 = vmatpush1.msra.mxu0 0.0
  %2904 = vmatprep.subr.mxu0 0.0
  %2905 = vmatpush1.msra.mxu0 0.0
  %2906 = vmatprep.subr.mxu0 0.0
  %2907 = vmatpush1.msra.mxu0 0.0
  %2908 = vmatprep.subr.mxu0 0.0
  %2909 = vmatpush1.msra.mxu0 0.0
  %2910 = vmatprep.subr.mxu0 0.0
  %2911 = vmatpush1.msra.mxu0 0.0
  %2912 = vmatprep.mubr.f32.mxu0 0.0
  %2913 = vmatmul.mubr.f32.gmra.mrb[0].mxu0 %v2847
  %v2914 = vpop.f32.mrb[0].mxu0
  %v2915 = vadd.f32 %v2073, %v2914
  %v2916 = vpop.f32.mrb[0].mxu0
  %v2917 = vadd.f32 %v2077, %v2916
  %2918 = vdwg.mxu0
  %v2919 = vmul.f32 %v2915, 0.5
  %v2920 = vtanh.pop %v2919
  %v2921 = vmul.f32 %v2920, 0.5
  %v2922 = vadd.f32 %v2921, 0.5
  %v2923 = vtanh.pop %v2917
  %v2924 = vmul.f32 %v2917, 0.5
  %v2925 = vtanh.pop %v2924
  %v2926 = vmul.f32 %v2925, 0.5
  %v2927 = vadd.f32 %v2926, 0.5
  %v2928 = vmul.f32 %v2922, %v2742
  %v2929 = vmul.f32 %v2922, %v2923
  %2931 = vrot.lane.b32.xlu0 %v2929, 64
  %v2932 = vpop.permute.xlu0 %2931
  %v2934 = vadd.f32 %v2928, %v2932
  %v2935 = vtanh.pop %v2934
  %v2936 = vmul.f32 %v2927, %v2935
  %2938 = vrot.lane.b32.xlu0 %v2936, 64
  %v2939 = vpop.permute.xlu0 %2938
  %2941 = vst.msk [vmem:[#allocation3 + $0x20] sm:$0xff] %vm220, %v2939
  %v2942 = vsel %vm220, %v2845, 0
  %2944 = vmatprep.subr.mxu0 %v1902
  %2945 = vmatpush1.msra.mxu0 %v1901
  %2946 = vmatprep.subr.mxu0 %v1904
  %2947 = vmatpush1.msra.mxu0 %v1903
  %2948 = vmatprep.subr.mxu0 %v1906
  %2949 = vmatpush1.msra.mxu0 %v1905
  %2950 = vmatprep.subr.mxu0 %v1908
  %2951 = vmatpush1.msra.mxu0 %v1907
  %2952 = vmatprep.subr.mxu0 %v1910
  %2953 = vmatpush1.msra.mxu0 %v1909
  %2954 = vmatprep.subr.mxu0 %v1912
  %2955 = vmatpush1.msra.mxu0 %v1911
  %2956 = vmatprep.subr.mxu0 %v1914
  %2957 = vmatpush1.msra.mxu0 %v1913
  %2958 = vmatprep.subr.mxu0 %v1916
  %2959 = vmatpush1.msra.mxu0 %v1915
  %2960 = vmatprep.subr.mxu0 0.0
  %2961 = vmatpush1.msra.mxu0 0.0
  %2962 = vmatprep.subr.mxu0 0.0
  %2963 = vmatpush1.msra.mxu0 0.0
  %2964 = vmatprep.subr.mxu0 0.0
  %2965 = vmatpush1.msra.mxu0 0.0
  %2966 = vmatprep.subr.mxu0 0.0
  %2967 = vmatpush1.msra.mxu0 0.0
  %2968 = vmatprep.subr.mxu0 0.0
  %2969 = vmatpush1.msra.mxu0 0.0
  %2970 = vmatprep.subr.mxu0 0.0
  %2971 = vmatpush1.msra.mxu0 0.0
  %2972 = vmatprep.subr.mxu0 0.0
  %2973 = vmatpush1.msra.mxu0 0.0
  %2974 = vmatprep.subr.mxu0 0.0
  %2975 = vmatpush1.msra.mxu0 0.0
  %2976 = vmatprep.subr.mxu0 0.0
  %2977 = vmatpush1.msra.mxu0 0.0
  %2978 = vmatprep.subr.mxu0 0.0
  %2979 = vmatpush1.msra.mxu0 0.0
  %2980 = vmatprep.subr.mxu0 0.0
  %2981 = vmatpush1.msra.mxu0 0.0
  %2982 = vmatprep.subr.mxu0 0.0
  %2983 = vmatpush1.msra.mxu0 0.0
  %2984 = vmatprep.subr.mxu0 0.0
  %2985 = vmatpush1.msra.mxu0 0.0
  %2986 = vmatprep.subr.mxu0 0.0
  %2987 = vmatpush1.msra.mxu0 0.0
  %2988 = vmatprep.subr.mxu0 0.0
  %2989 = vmatpush1.msra.mxu0 0.0
  %2990 = vmatprep.subr.mxu0 0.0
  %2991 = vmatpush1.msra.mxu0 0.0
  %2992 = vmatprep.subr.mxu0 0.0
  %2993 = vmatpush1.msra.mxu0 0.0
  %2994 = vmatprep.subr.mxu0 0.0
  %2995 = vmatpush1.msra.mxu0 0.0
  %2996 = vmatprep.subr.mxu0 0.0
  %2997 = vmatpush1.msra.mxu0 0.0
  %2998 = vmatprep.subr.mxu0 0.0
  %2999 = vmatpush1.msra.mxu0 0.0
  %3000 = vmatprep.subr.mxu0 0.0
  %3001 = vmatpush1.msra.mxu0 0.0
  %3002 = vmatprep.subr.mxu0 0.0
  %3003 = vmatpush1.msra.mxu0 0.0
  %3004 = vmatprep.subr.mxu0 0.0
  %3005 = vmatpush1.msra.mxu0 0.0
  %3006 = vmatprep.subr.mxu0 0.0
  %3007 = vmatpush1.msra.mxu0 0.0
  %3008 = vmatprep.mubr.f32.mxu0 0.0
  %3009 = vmatmul.mubr.f32.gmra.mrb[0].mxu0 %v2942
  %v3010 = vpop.f32.mrb[0].mxu0
  %v3011 = vadd.f32 0.0, %v3010
  %v3012 = vpop.f32.mrb[0].mxu0
  %v3013 = vadd.f32 0.0, %v3012
  %3014 = vdwg.mxu0
  %v3015 = vadd.f32 %v2042, %v3011
  %v3016 = vadd.f32 %v2044, %v3013
  %v3017 = vmul.f32 %v3015, 0.5
  %v3018 = vtanh.pop %v3017
  %v3019 = vmul.f32 %v3018, 0.5
  %v3020 = vadd.f32 %v3019, 0.5
  %v3021 = vtanh.pop %v3016
  %v3022 = vmul.f32 %v3016, 0.5
  %v3023 = vtanh.pop %v3022
  %v3024 = vmul.f32 %v3023, 0.5
  %v3025 = vadd.f32 %v3024, 0.5
  %v3026 = vmul.f32 %v3020, %v2840
  %v3027 = vmul.f32 %v3020, %v3021
  %3029 = vrot.lane.b32.xlu0 %v3027, 64
  %v3030 = vpop.permute.xlu0 %3029
  %v3032 = vadd.f32 %v3026, %v3030
  %v3033 = vtanh.pop %v3032
  %v3034 = vmul.f32 %v3025, %v3033
  %3036 = vrot.lane.b32.xlu0 %v3034, 64
  %v3037 = vpop.permute.xlu0 %3036
  %v3039 = vsel %vm220, %v3037, %v2936
  %3040 = vmatprep.subr.mxu0 %v1918
  %3041 = vmatpush1.msra.mxu0 %v1917
  %3042 = vmatprep.subr.mxu0 %v1920
  %3043 = vmatpush1.msra.mxu0 %v1919
  %3044 = vmatprep.subr.mxu0 %v1922
  %3045 = vmatpush1.msra.mxu0 %v1921
  %3046 = vmatprep.subr.mxu0 %v1924
  %3047 = vmatpush1.msra.mxu0 %v1923
  %3048 = vmatprep.subr.mxu0 %v1926
  %3049 = vmatpush1.msra.mxu0 %v1925
  %3050 = vmatprep.subr.mxu0 %v1928
  %3051 = vmatpush1.msra.mxu0 %v1927
  %3052 = vmatprep.subr.mxu0 %v1930
  %3053 = vmatpush1.msra.mxu0 %v1929
  %3054 = vmatprep.subr.mxu0 %v1932
  %3055 = vmatpush1.msra.mxu0 %v1931
  %3056 = vmatprep.subr.mxu0 %v1934
  %3057 = vmatpush1.msra.mxu0 %v1933
  %3058 = vmatprep.subr.mxu0 %v1936
  %3059 = vmatpush1.msra.mxu0 %v1935
  %3060 = vmatprep.subr.mxu0 %v1938
  %3061 = vmatpush1.msra.mxu0 %v1937
  %3062 = vmatprep.subr.mxu0 %v1940
  %3063 = vmatpush1.msra.mxu0 %v1939
  %3064 = vmatprep.subr.mxu0 %v1942
  %3065 = vmatpush1.msra.mxu0 %v1941
  %3066 = vmatprep.subr.mxu0 %v1944
  %3067 = vmatpush1.msra.mxu0 %v1943
  %3068 = vmatprep.subr.mxu0 %v1946
  %3069 = vmatpush1.msra.mxu0 %v1945
  %3070 = vmatprep.subr.mxu0 %v1948
  %3071 = vmatpush1.msra.mxu0 %v1947
  %3072 = vmatprep.subr.mxu0 0.0
  %3073 = vmatpush1.msra.mxu0 0.0
  %3074 = vmatprep.subr.mxu0 0.0
  %3075 = vmatpush1.msra.mxu0 0.0
  %3076 = vmatprep.subr.mxu0 0.0
  %3077 = vmatpush1.msra.mxu0 0.0
  %3078 = vmatprep.subr.mxu0 0.0
  %3079 = vmatpush1.msra.mxu0 0.0
  %3080 = vmatprep.subr.mxu0 0.0
  %3081 = vmatpush1.msra.mxu0 0.0
  %3082 = vmatprep.subr.mxu0 0.0
  %3083 = vmatpush1.msra.mxu0 0.0
  %3084 = vmatprep.subr.mxu0 0.0
  %3085 = vmatpush1.msra.mxu0 0.0
  %3086 = vmatprep.subr.mxu0 0.0
  %3087 = vmatpush1.msra.mxu0 0.0
  %3088 = vmatprep.subr.mxu0 0.0
  %3089 = vmatpush1.msra.mxu0 0.0
  %3090 = vmatprep.subr.mxu0 0.0
  %3091 = vmatpush1.msra.mxu0 0.0
  %3092 = vmatprep.subr.mxu0 0.0
  %3093 = vmatpush1.msra.mxu0 0.0
  %3094 = vmatprep.subr.mxu0 0.0
  %3095 = vmatpush1.msra.mxu0 0.0
  %3096 = vmatprep.subr.mxu0 0.0
  %3097 = vmatpush1.msra.mxu0 0.0
  %3098 = vmatprep.subr.mxu0 0.0
  %3099 = vmatpush1.msra.mxu0 0.0
  %3100 = vmatprep.subr.mxu0 0.0
  %3101 = vmatpush1.msra.mxu0 0.0
  %3102 = vmatprep.subr.mxu0 0.0
  %3103 = vmatpush1.msra.mxu0 0.0
  %3104 = vmatprep.mubr.f32.mxu0 0.0
  %3105 = vmatmul.mubr.f32.gmra.mrb[0].mxu0 %v3039
  %v3106 = vpop.f32.mrb[0].mxu0
  %v3107 = vadd.f32 %v2073, %v3106
  %v3108 = vpop.f32.mrb[0].mxu0
  %v3109 = vadd.f32 %v2077, %v3108
  %3110 = vdwg.mxu0
  %v3111 = vmul.f32 %v3107, 0.5
  %v3112 = vtanh.pop %v3111
  %v3113 = vmul.f32 %v3112, 0.5
  %v3114 = vadd.f32 %v3113, 0.5
  %v3115 = vtanh.pop %v3109
  %v3116 = vmul.f32 %v3109, 0.5
  %v3117 = vtanh.pop %v3116
  %v3118 = vmul.f32 %v3117, 0.5
  %v3119 = vadd.f32 %v3118, 0.5
  %v3120 = vmul.f32 %v3114, %v2934
  %v3121 = vmul.f32 %v3114, %v3115
  %3123 = vrot.lane.b32.xlu0 %v3121, 64
  %v3124 = vpop.permute.xlu0 %3123
  %v3126 = vadd.f32 %v3120, %v3124
  %v3127 = vtanh.pop %v3126
  %v3128 = vmul.f32 %v3119, %v3127
  %3130 = vrot.lane.b32.xlu0 %v3128, 64
  %v3131 = vpop.permute.xlu0 %3130
  %3133 = vst.msk [vmem:[#allocation3 + $0x28] sm:$0xff] %vm220, %v3131
  %v3134 = vsel %vm220, %v3037, 0
  %3136 = vmatprep.subr.mxu0 %v1902
  %3137 = vmatpush1.msra.mxu0 %v1901
  %3138 = vmatprep.subr.mxu0 %v1904
  %3139 = vmatpush1.msra.mxu0 %v1903
  %3140 = vmatprep.subr.mxu0 %v1906
  %3141 = vmatpush1.msra.mxu0 %v1905
  %3142 = vmatprep.subr.mxu0 %v1908
  %3143 = vmatpush1.msra.mxu0 %v1907
  %3144 = vmatprep.subr.mxu0 %v1910
  %3145 = vmatpush1.msra.mxu0 %v1909
  %3146 = vmatprep.subr.mxu0 %v1912
  %3147 = vmatpush1.msra.mxu0 %v1911
  %3148 = vmatprep.subr.mxu0 %v1914
  %3149 = vmatpush1.msra.mxu0 %v1913
  %3150 = vmatprep.subr.mxu0 %v1916
  %3151 = vmatpush1.msra.mxu0 %v1915
  %3152 = vmatprep.subr.mxu0 0.0
  %3153 = vmatpush1.msra.mxu0 0.0
  %3154 = vmatprep.subr.mxu0 0.0
  %3155 = vmatpush1.msra.mxu0 0.0
  %3156 = vmatprep.subr.mxu0 0.0
  %3157 = vmatpush1.msra.mxu0 0.0
  %3158 = vmatprep.subr.mxu0 0.0
  %3159 = vmatpush1.msra.mxu0 0.0
  %3160 = vmatprep.subr.mxu0 0.0
  %3161 = vmatpush1.msra.mxu0 0.0
  %3162 = vmatprep.subr.mxu0 0.0
  %3163 = vmatpush1.msra.mxu0 0.0
  %3164 = vmatprep.subr.mxu0 0.0
  %3165 = vmatpush1.msra.mxu0 0.0
  %3166 = vmatprep.subr.mxu0 0.0
  %3167 = vmatpush1.msra.mxu0 0.0
  %3168 = vmatprep.subr.mxu0 0.0
  %3169 = vmatpush1.msra.mxu0 0.0
  %3170 = vmatprep.subr.mxu0 0.0
  %3171 = vmatpush1.msra.mxu0 0.0
  %3172 = vmatprep.subr.mxu0 0.0
  %3173 = vmatpush1.msra.mxu0 0.0
  %3174 = vmatprep.subr.mxu0 0.0
  %3175 = vmatpush1.msra.mxu0 0.0
  %3176 = vmatprep.subr.mxu0 0.0
  %3177 = vmatpush1.msra.mxu0 0.0
  %3178 = vmatprep.subr.mxu0 0.0
  %3179 = vmatpush1.msra.mxu0 0.0
  %3180 = vmatprep.subr.mxu0 0.0
  %3181 = vmatpush1.msra.mxu0 0.0
  %3182 = vmatprep.subr.mxu0 0.0
  %3183 = vmatpush1.msra.mxu0 0.0
  %3184 = vmatprep.subr.mxu0 0.0
  %3185 = vmatpush1.msra.mxu0 0.0
  %3186 = vmatprep.subr.mxu0 0.0
  %3187 = vmatpush1.msra.mxu0 0.0
  %3188 = vmatprep.subr.mxu0 0.0
  %3189 = vmatpush1.msra.mxu0 0.0
  %3190 = vmatprep.subr.mxu0 0.0
  %3191 = vmatpush1.msra.mxu0 0.0
  %3192 = vmatprep.subr.mxu0 0.0
  %3193 = vmatpush1.msra.mxu0 0.0
  %3194 = vmatprep.subr.mxu0 0.0
  %3195 = vmatpush1.msra.mxu0 0.0
  %3196 = vmatprep.subr.mxu0 0.0
  %3197 = vmatpush1.msra.mxu0 0.0
  %3198 = vmatprep.subr.mxu0 0.0
  %3199 = vmatpush1.msra.mxu0 0.0
  %3200 = vmatprep.mubr.f32.mxu0 0.0
  %3201 = vmatmul.mubr.f32.gmra.mrb[0].mxu0 %v3134
  %v3202 = vpop.f32.mrb[0].mxu0
  %v3203 = vadd.f32 0.0, %v3202
  %v3204 = vpop.f32.mrb[0].mxu0
  %v3205 = vadd.f32 0.0, %v3204
  %3206 = vdwg.mxu0
  %v3207 = vadd.f32 %v2042, %v3203
  %v3208 = vadd.f32 %v2044, %v3205
  %v3209 = vmul.f32 %v3207, 0.5
  %v3210 = vtanh.pop %v3209
  %v3211 = vmul.f32 %v3210, 0.5
  %v3212 = vadd.f32 %v3211, 0.5
  %v3213 = vtanh.pop %v3208
  %v3214 = vmul.f32 %v3208, 0.5
  %v3215 = vtanh.pop %v3214
  %v3216 = vmul.f32 %v3215, 0.5
  %v3217 = vadd.f32 %v3216, 0.5
  %v3218 = vmul.f32 %v3212, %v3032
  %v3219 = vmul.f32 %v3212, %v3213
  %3221 = vrot.lane.b32.xlu0 %v3219, 64
  %v3222 = vpop.permute.xlu0 %3221
  %v3224 = vadd.f32 %v3218, %v3222
  %v3225 = vtanh.pop %v3224
  %v3226 = vmul.f32 %v3217, %v3225
  %3228 = vrot.lane.b32.xlu0 %v3226, 64
  %v3229 = vpop.permute.xlu0 %3228
  %v3231 = vsel %vm220, %v3229, %v3128
  %3232 = vmatprep.subr.mxu0 %v1918
  %3233 = vmatpush1.msra.mxu0 %v1917
  %3234 = vmatprep.subr.mxu0 %v1920
  %3235 = vmatpush1.msra.mxu0 %v1919
  %3236 = vmatprep.subr.mxu0 %v1922
  %3237 = vmatpush1.msra.mxu0 %v1921
  %3238 = vmatprep.subr.mxu0 %v1924
  %3239 = vmatpush1.msra.mxu0 %v1923
  %3240 = vmatprep.subr.mxu0 %v1926
  %3241 = vmatpush1.msra.mxu0 %v1925
  %3242 = vmatprep.subr.mxu0 %v1928
  %3243 = vmatpush1.msra.mxu0 %v1927
  %3244 = vmatprep.subr.mxu0 %v1930
  %3245 = vmatpush1.msra.mxu0 %v1929
  %3246 = vmatprep.subr.mxu0 %v1932
  %3247 = vmatpush1.msra.mxu0 %v1931
  %3248 = vmatprep.subr.mxu0 %v1934
  %3249 = vmatpush1.msra.mxu0 %v1933
  %3250 = vmatprep.subr.mxu0 %v1936
  %3251 = vmatpush1.msra.mxu0 %v1935
  %3252 = vmatprep.subr.mxu0 %v1938
  %3253 = vmatpush1.msra.mxu0 %v1937
  %3254 = vmatprep.subr.mxu0 %v1940
  %3255 = vmatpush1.msra.mxu0 %v1939
  %3256 = vmatprep.subr.mxu0 %v1942
  %3257 = vmatpush1.msra.mxu0 %v1941
  %3258 = vmatprep.subr.mxu0 %v1944
  %3259 = vmatpush1.msra.mxu0 %v1943
  %3260 = vmatprep.subr.mxu0 %v1946
  %3261 = vmatpush1.msra.mxu0 %v1945
  %3262 = vmatprep.subr.mxu0 %v1948
  %3263 = vmatpush1.msra.mxu0 %v1947
  %3264 = vmatprep.subr.mxu0 0.0
  %3265 = vmatpush1.msra.mxu0 0.0
  %3266 = vmatprep.subr.mxu0 0.0
  %3267 = vmatpush1.msra.mxu0 0.0
  %3268 = vmatprep.subr.mxu0 0.0
  %3269 = vmatpush1.msra.mxu0 0.0
  %3270 = vmatprep.subr.mxu0 0.0
  %3271 = vmatpush1.msra.mxu0 0.0
  %3272 = vmatprep.subr.mxu0 0.0
  %3273 = vmatpush1.msra.mxu0 0.0
  %3274 = vmatprep.subr.mxu0 0.0
  %3275 = vmatpush1.msra.mxu0 0.0
  %3276 = vmatprep.subr.mxu0 0.0
  %3277 = vmatpush1.msra.mxu0 0.0
  %3278 = vmatprep.subr.mxu0 0.0
  %3279 = vmatpush1.msra.mxu0 0.0
  %3280 = vmatprep.subr.mxu0 0.0
  %3281 = vmatpush1.msra.mxu0 0.0
  %3282 = vmatprep.subr.mxu0 0.0
  %3283 = vmatpush1.msra.mxu0 0.0
  %3284 = vmatprep.subr.mxu0 0.0
  %3285 = vmatpush1.msra.mxu0 0.0
  %3286 = vmatprep.subr.mxu0 0.0
  %3287 = vmatpush1.msra.mxu0 0.0
  %3288 = vmatprep.subr.mxu0 0.0
  %3289 = vmatpush1.msra.mxu0 0.0
  %3290 = vmatprep.subr.mxu0 0.0
  %3291 = vmatpush1.msra.mxu0 0.0
  %3292 = vmatprep.subr.mxu0 0.0
  %3293 = vmatpush1.msra.mxu0 0.0
  %3294 = vmatprep.subr.mxu0 0.0
  %3295 = vmatpush1.msra.mxu0 0.0
  %3296 = vmatprep.mubr.f32.mxu0 0.0
  %3297 = vmatmul.mubr.f32.gmra.mrb[0].mxu0 %v3231
  %v3298 = vpop.f32.mrb[0].mxu0
  %v3299 = vadd.f32 %v2073, %v3298
  %v3300 = vpop.f32.mrb[0].mxu0
  %v3301 = vadd.f32 %v2077, %v3300
  %3302 = vdwg.mxu0
  %v3303 = vmul.f32 %v3299, 0.5
  %v3304 = vtanh.pop %v3303
  %v3305 = vmul.f32 %v3304, 0.5
  %v3306 = vadd.f32 %v3305, 0.5
  %v3307 = vtanh.pop %v3301
  %v3308 = vmul.f32 %v3301, 0.5
  %v3309 = vtanh.pop %v3308
  %v3310 = vmul.f32 %v3309, 0.5
  %v3311 = vadd.f32 %v3310, 0.5
  %v3312 = vmul.f32 %v3306, %v3126
  %v3313 = vmul.f32 %v3306, %v3307
  %3315 = vrot.lane.b32.xlu0 %v3313, 64
  %v3316 = vpop.permute.xlu0 %3315
  %v3318 = vadd.f32 %v3312, %v3316
  %v3319 = vtanh.pop %v3318
  %v3320 = vmul.f32 %v3311, %v3319
  %3322 = vrot.lane.b32.xlu0 %v3320, 64
  %v3323 = vpop.permute.xlu0 %3322
  %3325 = vst.msk [vmem:[#allocation3 + $0x30] sm:$0xff] %vm220, %v3323
  %v3326 = vsel %vm220, %v3229, 0
  %3328 = vmatprep.subr.mxu0 %v1902
  %3329 = vmatpush1.msra.mxu0 %v1901
  %3330 = vmatprep.subr.mxu0 %v1904
  %3331 = vmatpush1.msra.mxu0 %v1903
  %3332 = vmatprep.subr.mxu0 %v1906
  %3333 = vmatpush1.msra.mxu0 %v1905
  %3334 = vmatprep.subr.mxu0 %v1908
  %3335 = vmatpush1.msra.mxu0 %v1907
  %3336 = vmatprep.subr.mxu0 %v1910
  %3337 = vmatpush1.msra.mxu0 %v1909
  %3338 = vmatprep.subr.mxu0 %v1912
  %3339 = vmatpush1.msra.mxu0 %v1911
  %3340 = vmatprep.subr.mxu0 %v1914
  %3341 = vmatpush1.msra.mxu0 %v1913
  %3342 = vmatprep.subr.mxu0 %v1916
  %3343 = vmatpush1.msra.mxu0 %v1915
  %3344 = vmatprep.subr.mxu0 0.0
  %3345 = vmatpush1.msra.mxu0 0.0
  %3346 = vmatprep.subr.mxu0 0.0
  %3347 = vmatpush1.msra.mxu0 0.0
  %3348 = vmatprep.subr.mxu0 0.0
  %3349 = vmatpush1.msra.mxu0 0.0
  %3350 = vmatprep.subr.mxu0 0.0
  %3351 = vmatpush1.msra.mxu0 0.0
  %3352 = vmatprep.subr.mxu0 0.0
  %3353 = vmatpush1.msra.mxu0 0.0
  %3354 = vmatprep.subr.mxu0 0.0
  %3355 = vmatpush1.msra.mxu0 0.0
  %3356 = vmatprep.subr.mxu0 0.0
  %3357 = vmatpush1.msra.mxu0 0.0
  %3358 = vmatprep.subr.mxu0 0.0
  %3359 = vmatpush1.msra.mxu0 0.0
  %3360 = vmatprep.subr.mxu0 0.0
  %3361 = vmatpush1.msra.mxu0 0.0
  %3362 = vmatprep.subr.mxu0 0.0
  %3363 = vmatpush1.msra.mxu0 0.0
  %3364 = vmatprep.subr.mxu0 0.0
  %3365 = vmatpush1.msra.mxu0 0.0
  %3366 = vmatprep.subr.mxu0 0.0
  %3367 = vmatpush1.msra.mxu0 0.0
  %3368 = vmatprep.subr.mxu0 0.0
  %3369 = vmatpush1.msra.mxu0 0.0
  %3370 = vmatprep.subr.mxu0 0.0
  %3371 = vmatpush1.msra.mxu0 0.0
  %3372 = vmatprep.subr.mxu0 0.0
  %3373 = vmatpush1.msra.mxu0 0.0
  %3374 = vmatprep.subr.mxu0 0.0
  %3375 = vmatpush1.msra.mxu0 0.0
  %3376 = vmatprep.subr.mxu0 0.0
  %3377 = vmatpush1.msra.mxu0 0.0
  %3378 = vmatprep.subr.mxu0 0.0
  %3379 = vmatpush1.msra.mxu0 0.0
  %3380 = vmatprep.subr.mxu0 0.0
  %3381 = vmatpush1.msra.mxu0 0.0
  %3382 = vmatprep.subr.mxu0 0.0
  %3383 = vmatpush1.msra.mxu0 0.0
  %3384 = vmatprep.subr.mxu0 0.0
  %3385 = vmatpush1.msra.mxu0 0.0
  %3386 = vmatprep.subr.mxu0 0.0
  %3387 = vmatpush1.msra.mxu0 0.0
  %3388 = vmatprep.subr.mxu0 0.0
  %3389 = vmatpush1.msra.mxu0 0.0
  %3390 = vmatprep.subr.mxu0 0.0
  %3391 = vmatpush1.msra.mxu0 0.0
  %3392 = vmatprep.mubr.f32.mxu0 0.0
  %3393 = vmatmul.mubr.f32.gmra.mrb[0].mxu0 %v3326
  %v3394 = vpop.f32.mrb[0].mxu0
  %v3395 = vadd.f32 0.0, %v3394
  %v3396 = vpop.f32.mrb[0].mxu0
  %v3397 = vadd.f32 0.0, %v3396
  %3398 = vdwg.mxu0
  %v3399 = vadd.f32 %v2042, %v3395
  %v3400 = vadd.f32 %v2044, %v3397
  %v3401 = vmul.f32 %v3399, 0.5
  %v3402 = vtanh.pop %v3401
  %v3403 = vmul.f32 %v3402, 0.5
  %v3404 = vadd.f32 %v3403, 0.5
  %v3405 = vtanh.pop %v3400
  %v3406 = vmul.f32 %v3400, 0.5
  %v3407 = vtanh.pop %v3406
  %v3408 = vmul.f32 %v3407, 0.5
  %v3409 = vadd.f32 %v3408, 0.5
  %v3410 = vmul.f32 %v3404, %v3224
  %v3411 = vmul.f32 %v3404, %v3405
  %3413 = vrot.lane.b32.xlu0 %v3411, 64
  %v3414 = vpop.permute.xlu0 %3413
  %v3416 = vadd.f32 %v3410, %v3414
  %v3417 = vtanh.pop %v3416
  %v3418 = vmul.f32 %v3409, %v3417
  %3420 = vrot.lane.b32.xlu0 %v3418, 64
  %v3421 = vpop.permute.xlu0 %3420
  %v3423 = vsel %vm220, %v3421, %v3320
  %3424 = vmatprep.subr.mxu0 %v1918
  %3425 = vmatpush1.msra.mxu0 %v1917
  %3426 = vmatprep.subr.mxu0 %v1920
  %3427 = vmatpush1.msra.mxu0 %v1919
  %3428 = vmatprep.subr.mxu0 %v1922
  %3429 = vmatpush1.msra.mxu0 %v1921
  %3430 = vmatprep.subr.mxu0 %v1924
  %3431 = vmatpush1.msra.mxu0 %v1923
  %3432 = vmatprep.subr.mxu0 %v1926
  %3433 = vmatpush1.msra.mxu0 %v1925
  %3434 = vmatprep.subr.mxu0 %v1928
  %3435 = vmatpush1.msra.mxu0 %v1927
  %3436 = vmatprep.subr.mxu0 %v1930
  %3437 = vmatpush1.msra.mxu0 %v1929
  %3438 = vmatprep.subr.mxu0 %v1932
  %3439 = vmatpush1.msra.mxu0 %v1931
  %3440 = vmatprep.subr.mxu0 %v1934
  %3441 = vmatpush1.msra.mxu0 %v1933
  %3442 = vmatprep.subr.mxu0 %v1936
  %3443 = vmatpush1.msra.mxu0 %v1935
  %3444 = vmatprep.subr.mxu0 %v1938
  %3445 = vmatpush1.msra.mxu0 %v1937
  %3446 = vmatprep.subr.mxu0 %v1940
  %3447 = vmatpush1.msra.mxu0 %v1939
  %3448 = vmatprep.subr.mxu0 %v1942
  %3449 = vmatpush1.msra.mxu0 %v1941
  %3450 = vmatprep.subr.mxu0 %v1944
  %3451 = vmatpush1.msra.mxu0 %v1943
  %3452 = vmatprep.subr.mxu0 %v1946
  %3453 = vmatpush1.msra.mxu0 %v1945
  %3454 = vmatprep.subr.mxu0 %v1948
  %3455 = vmatpush1.msra.mxu0 %v1947
  %3456 = vmatprep.subr.mxu0 0.0
  %3457 = vmatpush1.msra.mxu0 0.0
  %3458 = vmatprep.subr.mxu0 0.0
  %3459 = vmatpush1.msra.mxu0 0.0
  %3460 = vmatprep.subr.mxu0 0.0
  %3461 = vmatpush1.msra.mxu0 0.0
  %3462 = vmatprep.subr.mxu0 0.0
  %3463 = vmatpush1.msra.mxu0 0.0
  %3464 = vmatprep.subr.mxu0 0.0
  %3465 = vmatpush1.msra.mxu0 0.0
  %3466 = vmatprep.subr.mxu0 0.0
  %3467 = vmatpush1.msra.mxu0 0.0
  %3468 = vmatprep.subr.mxu0 0.0
  %3469 = vmatpush1.msra.mxu0 0.0
  %3470 = vmatprep.subr.mxu0 0.0
  %3471 = vmatpush1.msra.mxu0 0.0
  %3472 = vmatprep.subr.mxu0 0.0
  %3473 = vmatpush1.msra.mxu0 0.0
  %3474 = vmatprep.subr.mxu0 0.0
  %3475 = vmatpush1.msra.mxu0 0.0
  %3476 = vmatprep.subr.mxu0 0.0
  %3477 = vmatpush1.msra.mxu0 0.0
  %3478 = vmatprep.subr.mxu0 0.0
  %3479 = vmatpush1.msra.mxu0 0.0
  %3480 = vmatprep.subr.mxu0 0.0
  %3481 = vmatpush1.msra.mxu0 0.0
  %3482 = vmatprep.subr.mxu0 0.0
  %3483 = vmatpush1.msra.mxu0 0.0
  %3484 = vmatprep.subr.mxu0 0.0
  %3485 = vmatpush1.msra.mxu0 0.0
  %3486 = vmatprep.subr.mxu0 0.0
  %3487 = vmatpush1.msra.mxu0 0.0
  %3488 = vmatprep.mubr.f32.mxu0 0.0
  %3489 = vmatmul.mubr.f32.gmra.mrb[0].mxu0 %v3423
  %v3490 = vpop.f32.mrb[0].mxu0
  %v3491 = vadd.f32 %v2073, %v3490
  %v3492 = vpop.f32.mrb[0].mxu0
  %v3493 = vadd.f32 %v2077, %v3492
  %3494 = vdwg.mxu0
  %v3495 = vmul.f32 %v3491, 0.5
  %v3496 = vtanh.pop %v3495
  %v3497 = vmul.f32 %v3496, 0.5
  %v3498 = vadd.f32 %v3497, 0.5
  %v3499 = vtanh.pop %v3493
  %v3500 = vmul.f32 %v3493, 0.5
  %v3501 = vtanh.pop %v3500
  %v3502 = vmul.f32 %v3501, 0.5
  %v3503 = vadd.f32 %v3502, 0.5
  %v3504 = vmul.f32 %v3498, %v3318
  %v3505 = vmul.f32 %v3498, %v3499
  %3507 = vrot.lane.b32.xlu0 %v3505, 64
  %v3508 = vpop.permute.xlu0 %3507
  %v3510 = vadd.f32 %v3504, %v3508
  %v3511 = vtanh.pop %v3510
  %v3512 = vmul.f32 %v3503, %v3511
  %3514 = vrot.lane.b32.xlu0 %v3512, 64
  %v3515 = vpop.permute.xlu0 %3514
  %3517 = vst.msk [vmem:[#allocation3 + $0x38] sm:$0xff] %vm220, %v3515
  %v3518 = vld [vmem:[#allocation3] sm:$0xff]
  %v3519 = vld [vmem:[#allocation3 + $0x8] sm:$0xff]
  %v3520 = vld [vmem:[#allocation3 + $0x10] sm:$0xff]
  %v3521 = vld [vmem:[#allocation3 + $0x18] sm:$0xff]
  %v3522 = vld [vmem:[#allocation3 + $0x20] sm:$0xff]
  %v3523 = vld [vmem:[#allocation3 + $0x28] sm:$0xff]
  %v3524 = vld [vmem:[#allocation3 + $0x30] sm:$0xff]
  %v3525 = vld [vmem:[#allocation3 + $0x38] sm:$0xff]
  %v3526 = vld [vmem:[%s13] sm:$0xff]
  %v3527 = vld [vmem:[%s13 + $0x8] sm:$0xff]
  %v3528 = vld [vmem:[%s13 + $0x10] sm:$0xff]
  %v3529 = vld [vmem:[%s13 + $0x18] sm:$0xff]
  %v3530 = vld [vmem:[%s13 + $0x20] sm:$0xff]
  %v3531 = vld [vmem:[%s13 + $0x28] sm:$0xff]
  %v3532 = vld [vmem:[%s13 + $0x30] sm:$0xff]
  %v3533 = vld [vmem:[%s13 + $0x38] sm:$0xff]
  %v3534 = vld [vmem:[%s14] sm:$0x1]
  %v3536 = vlaneseq
  %v3537 = vshrl.u32 %v3536, 7
  %v3538 = vsub.s32 0, %v3537
  %v3539 = vrot.slane %v3534, %v3538
  %v3542 = vsel %vm220, %v3518, 0
  %v3545 = vsel %vm220, %v3519, 0
  %v3548 = vsel %vm220, %v3520, 0
  %v3551 = vsel %vm220, %v3521, 0
  %v3554 = vsel %vm220, %v3522, 0
  %v3557 = vsel %vm220, %v3523, 0
  %v3560 = vsel %vm220, %v3524, 0
  %v3563 = vsel %vm220, %v3525, 0
  %3565 = vmatprep.subr.mxu0 0.0
  %3566 = vmatpush1.msra.mxu0 %v3526
  %3567 = vmatprep.subr.mxu0 0.0
  %3568 = vmatpush1.msra.mxu0 %v3527
  %3569 = vmatprep.subr.mxu0 0.0
  %3570 = vmatpush1.msra.mxu0 %v3528
  %3571 = vmatprep.subr.mxu0 0.0
  %3572 = vmatpush1.msra.mxu0 %v3529
  %3573 = vmatprep.subr.mxu0 0.0
  %3574 = vmatpush1.msra.mxu0 %v3530
  %3575 = vmatprep.subr.mxu0 0.0
  %3576 = vmatpush1.msra.mxu0 %v3531
  %3577 = vmatprep.subr.mxu0 0.0
  %3578 = vmatpush1.msra.mxu0 %v3532
  %3579 = vmatprep.subr.mxu0 0.0
  %3580 = vmatpush1.msra.mxu0 %v3533
  %3581 = vmatprep.subr.mxu0 0.0
  %3582 = vmatpush1.msra.mxu0 0.0
  %3583 = vmatprep.subr.mxu0 0.0
  %3584 = vmatpush1.msra.mxu0 0.0
  %3585 = vmatprep.subr.mxu0 0.0
  %3586 = vmatpush1.msra.mxu0 0.0
  %3587 = vmatprep.subr.mxu0 0.0
  %3588 = vmatpush1.msra.mxu0 0.0
  %3589 = vmatprep.subr.mxu0 0.0
  %3590 = vmatpush1.msra.mxu0 0.0
  %3591 = vmatprep.subr.mxu0 0.0
  %3592 = vmatpush1.msra.mxu0 0.0
  %3593 = vmatprep.subr.mxu0 0.0
  %3594 = vmatpush1.msra.mxu0 0.0
  %3595 = vmatprep.subr.mxu0 0.0
  %3596 = vmatpush1.msra.mxu0 0.0
  %3597 = vmatprep.subr.mxu0 0.0
  %3598 = vmatpush1.msra.mxu0 0.0
  %3599 = vmatprep.subr.mxu0 0.0
  %3600 = vmatpush1.msra.mxu0 0.0
  %3601 = vmatprep.subr.mxu0 0.0
  %3602 = vmatpush1.msra.mxu0 0.0
  %3603 = vmatprep.subr.mxu0 0.0
  %3604 = vmatpush1.msra.mxu0 0.0
  %3605 = vmatprep.subr.mxu0 0.0
  %3606 = vmatpush1.msra.mxu0 0.0
  %3607 = vmatprep.subr.mxu0 0.0
  %3608 = vmatpush1.msra.mxu0 0.0
  %3609 = vmatprep.subr.mxu0 0.0
  %3610 = vmatpush1.msra.mxu0 0.0
  %3611 = vmatprep.subr.mxu0 0.0
  %3612 = vmatpush1.msra.mxu0 0.0
  %3613 = vmatprep.subr.mxu0 0.0
  %3614 = vmatpush1.msra.mxu0 0.0
  %3615 = vmatprep.subr.mxu0 0.0
  %3616 = vmatpush1.msra.mxu0 0.0
  %3617 = vmatprep.subr.mxu0 0.0
  %3618 = vmatpush1.msra.mxu0 0.0
  %3619 = vmatprep.subr.mxu0 0.0
  %3620 = vmatpush1.msra.mxu0 0.0
  %3621 = vmatprep.subr.mxu0 0.0
  %3622 = vmatpush1.msra.mxu0 0.0
  %3623 = vmatprep.subr.mxu0 0.0
  %3624 = vmatpush1.msra.mxu0 0.0
  %3625 = vmatprep.subr.mxu0 0.0
  %3626 = vmatpush1.msra.mxu0 0.0
  %3627 = vmatprep.subr.mxu0 0.0
  %3628 = vmatpush1.msra.mxu0 0.0
  %3629 = vmatprep.mubr.f32.mxu0 0.0
  %3630 = vmatmul.mubr.f32.gmra.mrb[0].mxu0 %v3542
  %v3631 = vpop.f32.mrb[0].mxu0
  %v3632 = vadd.f32 %v3539, %v3631
  %v3633 = vpop.f32.mrb[0].mxu0
  %3634 = vmatprep.mubr.f32.mxu0 0.0
  %3635 = vmatmul.mubr.f32.gmra.mrb[0].mxu0 %v3545
  %v3636 = vpop.f32.mrb[0].mxu0
  %v3637 = vadd.f32 %v3539, %v3636
  %v3638 = vpop.f32.mrb[0].mxu0
  %3639 = vmatprep.mubr.f32.mxu0 0.0
  %3640 = vmatmul.mubr.f32.gmra.mrb[0].mxu0 %v3548
  %v3641 = vpop.f32.mrb[0].mxu0
  %v3642 = vadd.f32 %v3539, %v3641
  %v3643 = vpop.f32.mrb[0].mxu0
  %3644 = vmatprep.mubr.f32.mxu0 0.0
  %3645 = vmatmul.mubr.f32.gmra.mrb[0].mxu0 %v3551
  %v3646 = vpop.f32.mrb[0].mxu0
  %v3647 = vadd.f32 %v3539, %v3646
  %v3648 = vpop.f32.mrb[0].mxu0
  %3649 = vmatprep.mubr.f32.mxu0 0.0
  %3650 = vmatmul.mubr.f32.gmra.mrb[0].mxu0 %v3554
  %v3651 = vpop.f32.mrb[0].mxu0
  %v3652 = vadd.f32 %v3539, %v3651
  %v3653 = vpop.f32.mrb[0].mxu0
  %3654 = vmatprep.mubr.f32.mxu0 0.0
  %3655 = vmatmul.mubr.f32.gmra.mrb[0].mxu0 %v3557
  %v3656 = vpop.f32.mrb[0].mxu0
  %v3657 = vadd.f32 %v3539, %v3656
  %v3658 = vpop.f32.mrb[0].mxu0
  %3659 = vmatprep.mubr.f32.mxu0 0.0
  %3660 = vmatmul.mubr.f32.gmra.mrb[0].mxu0 %v3560
  %v3661 = vpop.f32.mrb[0].mxu0
  %v3662 = vadd.f32 %v3539, %v3661
  %v3663 = vpop.f32.mrb[0].mxu0
  %3664 = vmatprep.mubr.f32.mxu0 0.0
  %3665 = vmatmul.mubr.f32.gmra.mrb[0].mxu0 %v3563
  %v3666 = vpop.f32.mrb[0].mxu0
  %v3667 = vadd.f32 %v3539, %v3666
  %v3668 = vpop.f32.mrb[0].mxu0
  %3669 = vdwg.mxu0
  %3670 = vst.msk [vmem:[%s15] sm:$0xff] %vm67, %v3632
  %3671 = vst.msk [vmem:[%s15 + $0x8] sm:$0xff] %vm67, %v3637
  %3672 = vst.msk [vmem:[%s15 + $0x10] sm:$0xff] %vm67, %v3642
  %3673 = vst.msk [vmem:[%s15 + $0x18] sm:$0xff] %vm67, %v3647
  %3674 = vst.msk [vmem:[%s15 + $0x20] sm:$0xff] %vm67, %v3652
  %3675 = vst.msk [vmem:[%s15 + $0x28] sm:$0xff] %vm67, %v3657
  %3676 = vst.msk [vmem:[%s15 + $0x30] sm:$0xff] %vm67, %v3662
  %3677 = vst.msk [vmem:[%s15 + $0x38] sm:$0xff] %vm67, %v3667
  // Predicated region
  $region62: #{item_autoencoder_forward.1} parent=0 // pred_check
    _
  $region63: #{item_autoencoder_forward.1} parent=0 // pred_check_branch
    %3679 = sbr.rel (0) target = $region65
  $region64: #{item_autoencoder_forward.1} parent=0 // pred_region
    _
  $region65: #{item_autoencoder_forward.1} parent=0 // pred_fallthru
    _
  // Predicated region
  $region66: #{item_autoencoder_forward.1} parent=0 // pred_check
    _
  $region67: #{item_autoencoder_forward.1} parent=0 // pred_check_branch
    %3681 = sbr.rel (0) target = $region69
  $region68: #{item_autoencoder_forward.1} parent=0 // pred_region
    _
  $region69: #{item_autoencoder_forward.1} parent=0 // pred_fallthru
    _

</llo_original>
